<compile_context>
chip_gen: v7x
topology: tpu7x:2x2x1
jax: 0.10.0
libtpu: 0.0.40
codegen_flags: <defaults>
</compile_context>

<pallas_src>
import functools

import numpy as np
import jax
import jax.numpy as jnp
from jax import lax
from jax.experimental import pallas as pl
from jax.experimental.pallas import tpu as pltpu


_CPAD = 128  # channel padding -> full 128-lane vregs / MXU N dim


# ----------------------------------------------------------------------------
# VMEM planning / tile selection.
# ----------------------------------------------------------------------------
def _vmem_plan():
    """Per-TensorCore (tile budget, compiler vmem limit) from the actual chip."""
    try:
        cap = int(pltpu.get_tpu_info().vmem_capacity_bytes)
    except Exception:
        cap = 64 * 1024 * 1024                      # conservative (v7x-sized) fallback
    budget = min(max(int(cap * 0.70), 24 * 1024 * 1024), 100 * 1024 * 1024)
    limit = min(max(int(cap * 0.85), 32 * 1024 * 1024), 120 * 1024 * 1024)
    return budget, limit


def _tile_vmem_bytes(wt, h, cp=_CPAD):
    """Rough per-grid-step VMEM working set for a (wt, h) tile (worst-case layer)."""
    px = wt * h
    slab = px * 9 * cp * 2                  # in-kernel im2col slab (bf16)
    acc = px * 2 * cp * 4                   # conv|gate matmul result (f32)
    epi = px * cp * 4                       # gated-BN intermediate (f32)
    io = 2 * 2 * px * cp * 2                # double-buffered input + output tiles (bf16)
    wts = 2 * 9 * cp * 2 * cp * 2           # double-buffered conv|gate weights (bf16)
    return slab + acc + epi + io + wts + (1 << 20)


def _pick_wt_tile(n, w, h, budget, min_steps=4):
    """Largest time tile fitting the VMEM budget, keeping >= min_steps grid steps."""
    # The head's output block puts wt_tile on the lane dim -> multiple of 128
    # (or the full W when W has no such divisor).
    cands = sorted({d for d in range(128, w + 1, 128) if w % d == 0} | {w})
    fit = [d for d in cands if _tile_vmem_bytes(d, h) <= budget] or cands[:1]
    wt = fit[-1]
    for d in reversed(fit):                 # prefer the largest tile that still gives
        if n * (w // d) >= min_steps:       # both TensorCores (v7x) work to do
            wt = d
            break
    # TODO(synk): no guard for a very long W with no 128-multiple divisor (the
    # single whole-W tile could exceed the budget).
    return wt


# ----------------------------------------------------------------------------
# In-kernel helpers.
# ----------------------------------------------------------------------------
def _gated_bn(acc, p_ref, cp):
    """(conv + bc) * sigmoid(gate + bg), then folded eval-mode BatchNorm."""
    conv = acc[:, :cp] + p_ref[0:1, :]
    gate = acc[:, cp:] + p_ref[1:2, :]
    y = conv * jax.nn.sigmoid(gate)
    return y * p_ref[2:3, :] + p_ref[3:4, :]


def _conv_slab(x_ref, hal_ref):
    """(WT*H, 9*Cin) im2col slab for a 3x3 / stride-1 / 'same' conv over one tile."""
    x = x_ref[0]                                    # (WT, H, Cin)
    halo = hal_ref[0]                               # (2, H, Cin): [left | right] column
    wt, h, cin = x.shape
    xw = jnp.concatenate([halo[0:1], x, halo[1:2]], axis=0)       # time halo
    zrow = jnp.zeros((wt + 2, 1, cin), x.dtype)
    xp = jnp.concatenate([zrow, xw, zrow], axis=1)                # zero freq border
    slab = jnp.concatenate(
        [xp[b:b + wt, a:a + h, :] for a in range(3) for b in range(3)], axis=-1)
    return slab.reshape(wt * h, 9 * cin), wt, h


# ----------------------------------------------------------------------------
# Kernel 1: gated 3x3 conv (stride 1, "same" padding) + folded BatchNorm.
# ----------------------------------------------------------------------------
def _gated_conv_bn_kernel(x_ref, hal_ref, w_ref, p_ref, o_ref):
    slab, wt, h = _conv_slab(x_ref, hal_ref)
    acc = jnp.dot(slab, w_ref[...], preferred_element_type=jnp.float32)  # (WT*H, 2Cp)
    cp = o_ref.shape[-1]
    y = _gated_bn(acc, p_ref, cp)
    o_ref[0] = y.reshape(wt, h, cp).astype(o_ref.dtype)


# ----------------------------------------------------------------------------
# Kernel 1b: same, but the 3x3 patches were assembled in XLA (layer 0, tiny Cin).
# ----------------------------------------------------------------------------
def _gated_conv_bn_im2col_kernel(x_ref, w_ref, p_ref, o_ref):
    _, wt, h, k = x_ref.shape
    slab = x_ref[0].reshape(wt * h, k)
    acc = jnp.dot(slab, w_ref[...], preferred_element_type=jnp.float32)
    cp = o_ref.shape[-1]
    y = _gated_bn(acc, p_ref, cp)
    o_ref[0] = y.reshape(wt, h, cp).astype(o_ref.dtype)


# ----------------------------------------------------------------------------
# Kernel 2: last gated 3x3 conv + BN, fused with the head:
#   1x1 gated conv (Cp -> 1) + BN + abs + message-band mask + freq normalization.
# ----------------------------------------------------------------------------
def _gated_conv_bn_head_kernel(x_ref, hal_ref, w_ref, p_ref, wh_ref, hs_ref, o_ref,
                               *, msg_band, ensure_neg, normalize):
    slab, wt, h = _conv_slab(x_ref, hal_ref)
    acc = jnp.dot(slab, w_ref[...], preferred_element_type=jnp.float32)
    cp = wh_ref.shape[0]
    y = _gated_bn(acc, p_ref, cp)                               # (WT*H, Cp) f32

    # Head 1x1 gated conv on the MXU: conv weights replicated in lanes [0, Cp/2),
    # gate weights in [Cp/2, Cp).  Lanes within each half are bit-identical, so a
    # lane-max extracts the scalar exactly and the epilogue runs densely on (WT, H).
    hz = jnp.dot(y.astype(wh_ref.dtype), wh_ref[...],
                 preferred_element_type=jnp.float32)            # (WT*H, Cp)
    hz3 = hz.reshape(wt, h, cp)
    half = cp // 2
    conv_s = jnp.max(hz3[:, :, :half], axis=-1)                 # (WT, H)
    gate_s = jnp.max(hz3[:, :, half:], axis=-1)

    hm = (conv_s + hs_ref[0]) * jax.nn.sigmoid(gate_s + hs_ref[1])
    hm = hm * hs_ref[2] + hs_ref[3]                             # folded BN (Cout = 1)
    if ensure_neg:
        hm = jnp.abs(hm)                                        # ensure_negative_message

    freq = lax.broadcasted_iota(jnp.int32, hm.shape, 1)
    hm = jnp.where(freq < msg_band, hm, 0.0)                    # zero freq rows >= band

    if normalize:
        # TODO(synk): no epsilon (matches the PyTorch module) -> inf/NaN if an
        # entire in-band column is exactly zero.
        denom = jnp.sqrt(jnp.mean(hm * hm, axis=1, keepdims=True))
        hm = hm / denom * hs_ref[4]                             # hs[4] = 10**(-sdr/20)

    # Lane-dense output: (H, WT) with the time tile on the 128-lane dim.
    o_ref[0] = jnp.transpose(hm, (1, 0)).astype(o_ref.dtype)


# ----------------------------------------------------------------------------
# Wrappers (pallas_call + BlockSpecs).
# ----------------------------------------------------------------------------
def _compiler_params(vmem_limit):
    return pltpu.CompilerParams(
        dimension_semantics=("parallel", "parallel"),
        vmem_limit_bytes=int(vmem_limit),
    )


def _build_halos(x, wt_tile):
    """Per-tile neighbour time columns: (N, 2*n_wt, H, C), [left, right] per tile.

    TODO(synk): this is still a small XLA-side gather per layer; emitting the
    boundary columns from the producing kernel would remove it entirely.
    """
    n, w, h, c = x.shape
    n_wt = w // wt_tile
    zcol = jnp.zeros((n, 1, h, c), x.dtype)
    if n_wt > 1:
        lcols = x[:, wt_tile - 1 : w - 1 : wt_tile]   # cols WT-1, 2WT-1, ...
        rcols = x[:, wt_tile : w : wt_tile]           # cols WT, 2WT, ...
        left = jnp.concatenate([zcol, lcols], axis=1)
        right = jnp.concatenate([rcols, zcol], axis=1)
    else:
        left, right = zcol, zcol
    hal = jnp.stack([left, right], axis=2)            # (N, n_wt, 2, H, C)
    return hal.reshape(n, 2 * n_wt, h, c)


def _gated_layer(x, lp, wt_tile, vmem_limit):
    """x: (N, W, H, Cin[_patches]) bf16 -> (N, W, H, 128) bf16."""
    n, w, h, cin = x.shape
    assert w % wt_tile == 0
    n_wt = w // wt_tile
    cp = lp["p"].shape[1]
    kdim = lp["w"].shape[0]
    x_spec = pl.BlockSpec((1, wt_tile, h, cin), lambda i, j: (i, j, 0, 0))
    w_spec = pl.BlockSpec((kdim, 2 * cp), lambda i, j: (0, 0))
    p_spec = pl.BlockSpec((4, cp), lambda i, j: (0, 0))
    if lp["pre_im2col"]:
        kern = _gated_conv_bn_im2col_kernel
        in_specs = [x_spec, w_spec, p_spec]
        args = (x, lp["w"], lp["p"])
    else:
        hal = _build_halos(x, wt_tile)
        hal_spec = pl.BlockSpec((1, 2, h, cin), lambda i, j: (i, j, 0, 0))
        kern = _gated_conv_bn_kernel
        in_specs = [x_spec, hal_spec, w_spec, p_spec]
        args = (x, hal, lp["w"], lp["p"])
    return pl.pallas_call(
        kern,
        out_shape=jax.ShapeDtypeStruct((n, w, h, cp), jnp.bfloat16),
        grid_spec=pltpu.PrefetchScalarGridSpec(
            num_scalar_prefetch=0,
            grid=(n, n_wt),
            in_specs=in_specs,
            out_specs=pl.BlockSpec((1, wt_tile, h, cp), lambda i, j: (i, j, 0, 0)),
        ),
        compiler_params=_compiler_params(vmem_limit),
    )(*args)


def _gated_head_layer(x, lp, hp, wt_tile, vmem_limit, *, msg_band, ensure_neg,
                      normalize):
    """Last gated conv + fused head: x (N, W, H, 128) -> (N, H, W) f32."""
    n, w, h, cin = x.shape
    assert w % wt_tile == 0
    n_wt = w // wt_tile
    cp = lp["p"].shape[1]
    kdim = lp["w"].shape[0]
    hal = _build_halos(x, wt_tile)
    kern = functools.partial(_gated_conv_bn_head_kernel, msg_band=msg_band,
                             ensure_neg=ensure_neg, normalize=normalize)
    return pl.pallas_call(
        kern,
        out_shape=jax.ShapeDtypeStruct((n, h, w), jnp.float32),
        grid_spec=pltpu.PrefetchScalarGridSpec(
            num_scalar_prefetch=0,
            grid=(n, n_wt),
            in_specs=[
                pl.BlockSpec((1, wt_tile, h, cin), lambda i, j: (i, j, 0, 0)),
                pl.BlockSpec((1, 2, h, cin), lambda i, j: (i, j, 0, 0)),
                pl.BlockSpec((kdim, 2 * cp), lambda i, j: (0, 0)),
                pl.BlockSpec((4, cp), lambda i, j: (0, 0)),
                pl.BlockSpec((cp, cp), lambda i, j: (0, 0)),
                pl.BlockSpec(memory_space=pltpu.MemorySpace.SMEM),
            ],
            out_specs=pl.BlockSpec((1, h, wt_tile), lambda i, j: (i, 0, j)),
        ),
        compiler_params=_compiler_params(vmem_limit),
    )(x, hal, lp["w"], lp["p"], hp["wh"], hp["hs"])


# ----------------------------------------------------------------------------
# Parameter preparation (pad channels to 128, concatenate conv|gate, bf16).
# ----------------------------------------------------------------------------
def prepare_kernel_params(params, message_sdr):
    cp = _CPAD
    body = []
    for i, p in enumerate(params["body"]):
        _, _, cin, cout = p["wc"].shape
        cin_pad = cin if i == 0 else cp           # layer 0 keeps its raw (tiny) Cin

        def _padw(wgt):
            return jnp.pad(wgt, ((0, 0), (0, 0),
                                 (0, cin_pad - cin), (0, cp - cout)))

        w = jnp.concatenate([_padw(p["wc"]), _padw(p["wg"])], axis=-1)  # (3,3,cin_pad,2cp)
        wk = w.reshape(9 * cin_pad, 2 * cp).astype(jnp.bfloat16)        # K = 9*cin_pad

        def _padv(v):
            return jnp.pad(jnp.reshape(v, (-1,)).astype(jnp.float32), (0, cp - cout))

        pvec = jnp.stack([_padv(p["bc"]), _padv(p["bg"]),
                          _padv(p["scale"]), _padv(p["shift"])], axis=0)  # (4, cp) f32
        body.append(dict(w=wk, p=pvec, pre_im2col=(i == 0)))

    hp = params["head"]
    nch = hp["wc"].shape[0]
    half = cp // 2
    whc = jnp.pad(hp["wc"].astype(jnp.float32), (0, cp - nch))
    whg = jnp.pad(hp["wg"].astype(jnp.float32), (0, cp - nch))
    wh = jnp.concatenate([jnp.tile(whc[:, None], (1, half)),
                          jnp.tile(whg[:, None], (1, half))],
                         axis=1).astype(jnp.bfloat16)                    # (cp, cp)
    inv_sdr = jnp.asarray(1.0 / (10.0 ** (float(message_sdr) / 20.0)), jnp.float32)
    hs = jnp.stack([jnp.asarray(hp["bc"], jnp.float32),
                    jnp.asarray(hp["bg"], jnp.float32),
                    jnp.asarray(hp["scale"], jnp.float32),
                    jnp.asarray(hp["shift"], jnp.float32),
                    inv_sdr])
    return dict(body=body, head=dict(wh=wh, hs=hs))


def _im2col_xla(x):
    """(N, W, H, C) -> (N, W, H, 9*C): 3x3 'same' patches, (freq_tap, time_tap, c)."""
    n, w, h, c = x.shape
    xp = jnp.pad(x, ((0, 0), (1, 1), (1, 1), (0, 0)))
    return jnp.concatenate(
        [xp[:, b:b + w, a:a + h, :] for a in range(3) for b in range(3)], axis=-1)


# ----------------------------------------------------------------------------
# Full forward (NCHW in, NCHW out).
# ----------------------------------------------------------------------------
def carrier_decoder_forward(x_nchw, message_sdr, params, *, message_band_size,
                            ensure_negative_message=True, no_normalization=False):
    kp = prepare_kernel_params(params, message_sdr)
    assert len(kp["body"]) >= 2
    # NCHW -> (N, W, H, C): channels -> lanes, freq -> sublanes, time -> grid tiles.
    x = jnp.transpose(x_nchw, (0, 3, 2, 1)).astype(jnp.bfloat16)
    n, w, h, _ = x.shape
    budget, vmem_limit = _vmem_plan()
    wt_tile = _pick_wt_tile(n, w, h, budget)
    x = _im2col_xla(x)                       # layer-0 patches (9*conv_dim channels)
    for lp in kp["body"][:-1]:
        x = _gated_layer(x, lp, wt_tile, vmem_limit)
    res = _gated_head_layer(x, kp["body"][-1], kp["head"], wt_tile, vmem_limit,
                            msg_band=message_band_size,
                            ensure_neg=ensure_negative_message,
                            normalize=not no_normalization)      # (N, H, W) f32
    return res[:, None, :, :]                                    # (N, 1, H, W)


# ----------------------------------------------------------------------------
# Pure-JAX reference (mirrors the bf16 storage so the check is tight).
# ----------------------------------------------------------------------------
def carrier_decoder_ref(x_nchw, message_sdr, params, *, message_band_size,
                        ensure_negative_message=True, no_normalization=False):
    f32, bf16 = jnp.float32, jnp.bfloat16
    x = jnp.transpose(x_nchw, (0, 2, 3, 1)).astype(bf16).astype(f32)   # NHWC
    for p in params["body"]:
        wc = p["wc"].astype(bf16).astype(f32)
        wg = p["wg"].astype(bf16).astype(f32)
        dn = lax.conv_dimension_numbers(x.shape, wc.shape, ("NHWC", "HWIO", "NHWC"))
        conv = lax.conv_general_dilated(x, wc, (1, 1), [(1, 1), (1, 1)],
                                        dimension_numbers=dn) + p["bc"].reshape(1, 1, 1, -1)
        gate = lax.conv_general_dilated(x, wg, (1, 1), [(1, 1), (1, 1)],
                                        dimension_numbers=dn) + p["bg"].reshape(1, 1, 1, -1)
        y = conv * jax.nn.sigmoid(gate)
        y = y * p["scale"].reshape(1, 1, 1, -1) + p["shift"].reshape(1, 1, 1, -1)
        x = y.astype(bf16).astype(f32)                 # mirror bf16 inter-layer storage
    hp = params["head"]
    wc = hp["wc"].astype(bf16).astype(f32)
    wg = hp["wg"].astype(bf16).astype(f32)
    conv = jnp.einsum("nhwc,c->nhw", x, wc) + hp["bc"]
    gate = jnp.einsum("nhwc,c->nhw", x, wg) + hp["bg"]
    h = (conv * jax.nn.sigmoid(gate)) * hp["scale"] + hp["shift"]
    if ensure_negative_message:
        h = jnp.abs(h)
    hdim = h.shape[1]
    mask = (jnp.arange(hdim) < message_band_size).astype(h.dtype)[None, :, None]
    h = h * mask
    if not no_normalization:
        denom = jnp.sqrt(jnp.mean(h ** 2, axis=1, keepdims=True))
        h = h / denom / (10.0 ** (float(message_sdr) / 20.0))
    return h[:, None, :, :]                             # (N, 1, H, W)


# ----------------------------------------------------------------------------
# Deterministic parameter init (synthetic; not a checkpoint).
# ----------------------------------------------------------------------------
def _init_layer(key, cin, cout, k):
    ks = jax.random.split(key, 8)
    bound = 1.0 / np.sqrt(cin * k * k)
    u = lambda kk, shape: jax.random.uniform(kk, shape, jnp.float32, -bound, bound)
    wc = u(ks[0], (k, k, cin, cout))                    # HWIO
    bc = u(ks[1], (cout,))
    wg = u(ks[2], (k, k, cin, cout))
    bg = u(ks[3], (cout,))
    gamma = jax.random.uniform(ks[4], (cout,), jnp.float32, 0.5, 1.5)
    beta = 0.1 * jax.random.normal(ks[5], (cout,), jnp.float32)
    rmean = 0.1 * jax.random.normal(ks[6], (cout,), jnp.float32)
    rvar = jax.random.uniform(ks[7], (cout,), jnp.float32, 0.5, 1.5)
    scale = gamma / jnp.sqrt(rvar + 1e-5)
    shift = beta - rmean * scale
    return dict(wc=wc, bc=bc, wg=wg, bg=bg, scale=scale, shift=shift)


def init_params(key, conv_dim, n_layers=4):
    dims = [conv_dim] + [96] * (n_layers - 1)
    body = []
    for i in range(n_layers - 1):
        key, sub = jax.random.split(key)
        body.append(_init_layer(sub, dims[i], 96, 3))
    key, sub = jax.random.split(key)
    hp = _init_layer(sub, 96, 1, 1)
    head = dict(wc=hp["wc"].reshape(96), bc=hp["bc"].reshape(()),
                wg=hp["wg"].reshape(96), bg=hp["bg"].reshape(()),
                scale=hp["scale"].reshape(()), shift=hp["shift"].reshape(()))
    return dict(body=body, head=head)


if __name__ == "__main__":
    key = jax.random.PRNGKey(0)
    kx, kp = jax.random.split(key)

    # batch, conv_dim, freq bins, time frames (W=256 -> two 128-column time tiles)
    N, C, H, W = 2, 4, 16, 256
    message_band_size = 10
    message_sdr = 30.0

    x = jax.random.normal(kx, (N, C, H, W), jnp.float32)
    params = init_params(kp, conv_dim=C, n_layers=4)

    out = carrier_decoder_forward(x, message_sdr, params,
                                  message_band_size=message_band_size,
                                  ensure_negative_message=True,
                                  no_normalization=False)
    out = jax.block_until_ready(out)

    ref = carrier_decoder_ref(x, message_sdr, params,
                              message_band_size=message_band_size,
                              ensure_negative_message=True,
                              no_normalization=False)
    ref = jax.block_until_ready(ref)

    assert out.shape == (N, 1, H, W), out.shape
    np.testing.assert_allclose(np.asarray(out), np.asarray(ref), rtol=1e-2, atol=1e-2)
    print("KERNEL_OK")
</pallas_src>

<mosaic_0001>
module attributes {stable_mosaic.version = 11 : i64} {
  func.func @_gated_conv_bn_im2col_kernel(%arg0: i32, %arg1: i32, %arg2: memref<1x128x16x36xbf16, #tpu.memory_space<vmem>>, %arg3: memref<36x256xbf16, #tpu.memory_space<vmem>>, %arg4: memref<4x128xf32, #tpu.memory_space<vmem>>, %arg5: memref<1x128x16x128xbf16, #tpu.memory_space<vmem>>) attributes {dimension_semantics = [#tpu.dimension_semantics<parallel>, #tpu.dimension_semantics<parallel>], iteration_bounds = array<i64: 2, 2>, scalar_prefetch = 0 : i64, scratch_operands = 0 : i64, tpu.core_type = #tpu.core_type<tc>, window_params = [{transform_indices = @transform_0, window_bounds = array<i64: 1, 128, 16, 36>}, {pipeline_mode = #tpu.pipeline_mode<synchronous>, transform_indices = @transform_1, window_bounds = array<i64: 36, 256>}, {pipeline_mode = #tpu.pipeline_mode<synchronous>, transform_indices = @transform_2, window_bounds = array<i64: 4, 128>}, {transform_indices = @transform_3, window_bounds = array<i64: 1, 128, 16, 128>}]} {
    %c0 = arith.constant 0 : index
    %c0_0 = arith.constant 0 : index
    %c0_1 = arith.constant 0 : index
    %c0_2 = arith.constant 0 : index
    %0 = vector.load %arg2[%c0, %c0_0, %c0_1, %c0_2] : memref<1x128x16x36xbf16, #tpu.memory_space<vmem>>, vector<1x128x16x36xbf16>
    %1 = vector.shape_cast %0 : vector<1x128x16x36xbf16> to vector<128x16x36xbf16>
    %2 = vector.shape_cast %1 : vector<128x16x36xbf16> to vector<2048x36xbf16>
    %c0_3 = arith.constant 0 : index
    %c0_4 = arith.constant 0 : index
    %3 = vector.load %arg3[%c0_3, %c0_4] : memref<36x256xbf16, #tpu.memory_space<vmem>>, vector<36x256xbf16>
    %cst = arith.constant dense<0.000000e+00> : vector<2048x256xf32>
    %4 = tpu.matmul %2, %3, %cst {dimension_numbers = #tpu.dot_dimension_numbers<[1], [0], [0], [1], [0, 0, 1, 1], [], []>} : vector<2048x36xbf16>, vector<36x256xbf16>, vector<2048x256xf32> -> vector<2048x256xf32>
    %5 = vector.extract_strided_slice %4 {offsets = [0, 0], sizes = [2048, 128], strides = [1, 1]} : vector<2048x256xf32> to vector<2048x128xf32>
    %c0_5 = arith.constant 0 : index
    %c0_6 = arith.constant 0 : index
    %6 = vector.load %arg4[%c0_5, %c0_6] : memref<4x128xf32, #tpu.memory_space<vmem>>, vector<1x128xf32>
    %7 = vector.broadcast %6 : vector<1x128xf32> to vector<2048x128xf32>
    %8 = arith.addf %5, %7 : vector<2048x128xf32>
    %9 = vector.extract_strided_slice %4 {offsets = [0, 128], sizes = [2048, 128], strides = [1, 1]} : vector<2048x256xf32> to vector<2048x128xf32>
    %c1 = arith.constant 1 : index
    %c0_7 = arith.constant 0 : index
    %10 = vector.load %arg4[%c1, %c0_7] : memref<4x128xf32, #tpu.memory_space<vmem>>, vector<1x128xf32>
    %11 = vector.broadcast %10 : vector<1x128xf32> to vector<2048x128xf32>
    %12 = arith.addf %9, %11 : vector<2048x128xf32>
    %13 = arith.negf %12 : vector<2048x128xf32>
    %14 = math.exp %13 : vector<2048x128xf32>
    %cst_8 = arith.constant 1.000000e+00 : f32
    %15 = vector.broadcast %cst_8 : f32 to vector<2048x128xf32>
    %16 = arith.addf %15, %14 : vector<2048x128xf32>
    %17 = arith.divf %15, %16 : vector<2048x128xf32>
    %18 = arith.mulf %8, %17 : vector<2048x128xf32>
    %c2 = arith.constant 2 : index
    %c0_9 = arith.constant 0 : index
    %19 = vector.load %arg4[%c2, %c0_9] : memref<4x128xf32, #tpu.memory_space<vmem>>, vector<1x128xf32>
    %20 = vector.broadcast %19 : vector<1x128xf32> to vector<2048x128xf32>
    %21 = arith.mulf %18, %20 : vector<2048x128xf32>
    %c3 = arith.constant 3 : index
    %c0_10 = arith.constant 0 : index
    %22 = vector.load %arg4[%c3, %c0_10] : memref<4x128xf32, #tpu.memory_space<vmem>>, vector<1x128xf32>
    %23 = vector.broadcast %22 : vector<1x128xf32> to vector<2048x128xf32>
    %24 = arith.addf %21, %23 : vector<2048x128xf32>
    %25 = vector.shape_cast %24 : vector<2048x128xf32> to vector<128x16x128xf32>
    %26 = arith.truncf %25 : vector<128x16x128xf32> to vector<128x16x128xbf16>
    %c0_11 = arith.constant 0 : index
    %c0_12 = arith.constant 0 : index
    %c0_13 = arith.constant 0 : index
    %c0_14 = arith.constant 0 : index
    %27 = vector.load %arg5[%c0_11, %c0_12, %c0_13, %c0_14] : memref<1x128x16x128xbf16, #tpu.memory_space<vmem>>, vector<1x128x16x128xbf16>
    %28 = vector.shape_cast %27 : vector<1x128x16x128xbf16> to vector<128x16x128xbf16>
    %29 = vector.shape_cast %26 : vector<128x16x128xbf16> to vector<1x128x16x128xbf16>
    tpu.vector_store %arg5[%c0_11, %c0_12, %c0_13, %c0_14], %29 {strides = array<i32>} : memref<1x128x16x128xbf16, #tpu.memory_space<vmem>>, vector<1x128x16x128xbf16>,
    return
  }
  func.func @transform_0(%arg0: i32, %arg1: i32) -> (i32, i32, i32, i32) {
    %c0_i32 = arith.constant 0 : i32
    %c0_i32_0 = arith.constant 0 : i32
    %c0_i32_1 = arith.constant 0 : i32
    return %arg0, %arg1, %c0_i32, %c0_i32_0 : i32, i32, i32, i32
  }
  func.func @transform_1(%arg0: i32, %arg1: i32) -> (i32, i32) {
    %c0_i32 = arith.constant 0 : i32
    %c0_i32_0 = arith.constant 0 : i32
    %c0_i32_1 = arith.constant 0 : i32
    return %c0_i32, %c0_i32_0 : i32, i32
  }
  func.func @transform_2(%arg0: i32, %arg1: i32) -> (i32, i32) {
    %c0_i32 = arith.constant 0 : i32
    %c0_i32_0 = arith.constant 0 : i32
    %c0_i32_1 = arith.constant 0 : i32
    return %c0_i32, %c0_i32_0 : i32, i32
  }
  func.func @transform_3(%arg0: i32, %arg1: i32) -> (i32, i32, i32, i32) {
    %c0_i32 = arith.constant 0 : i32
    %c0_i32_0 = arith.constant 0 : i32
    %c0_i32_1 = arith.constant 0 : i32
    return %arg0, %arg1, %c0_i32, %c0_i32_0 : i32, i32, i32, i32
  }
}

</mosaic_0001>

<llo_original>
// kernel: tpu_custom_call.1
$region0: #{tpu_custom_call.1}
  #allocation0 [shape = 'u32[]', space=smem, size = 0x4, offset = 0x4, fixed_abs, tag = 'smem constant byte address 0x4 - core index']
  #allocation1 [shape = 'u32[144,128]{1,0:T(1,128)}', space=vmem, size = 0x12000, scoped, tag = 'internal scratch']
  %s0 = inlined_call_operand.vmem [shape: bf16[2,256,16,36], index: 0, kind: input, shape index: {}]
  %s1 = inlined_call_operand.vmem [shape: bf16[36,256], index: 1, kind: input, shape index: {}]
  %s2 = inlined_call_operand.vmem [shape: f32[4,128], index: 2, kind: input, shape index: {}]
  %s3 = inlined_call_operand.hbm [shape: bf16[2,256,16,128], index: 3, kind: output, shape index: {}]
  %s4 = sld [smem:[#allocation0]]
  $region45: #{tpu_custom_call.1} parent=0
    _
  %s6 = ssub.s32 1, %s4
  %s7 = scalar_select 0, %s6, %s4
  $region1: #{tpu_custom_call.1} parent=0
    #allocation2 [shape = 'u8[1048576]{0}', space=vmem, size = 0x100000, scoped, tag = 'output window, operand 0']
    #allocation3 [shape = 's32[2]{0}', space=sflag, size = 0x8, scoped, tag = 'scoped memory for tpu_custom_call.1']
    %8 = vsyncpa [#allocation3], 0
    %s9 = scalar_lea.sflag [#allocation3], 1
    %10 = vsyncpa %s9, 0
    loop: start=0, step=1, limit=6
    $region2: #{tpu_custom_call.1} parent=1 // loop_pre_header
      _
    $region3: #{tpu_custom_call.1} parent=1 // loop_header
      %s12 = sphi 0, %s16
      %p13 = scmp.ge.s32.totalorder %s12, 6
      %s19 = sphi 0, %s31
      %s20 = sphi 0, %s27
      %s21 = sphi 0, %s19
      %s22 = sphi 0, %s20
      %s23 = sphi 0, %s21
      %s24 = sphi 0, %s22
      %s36 = sphi 0, %s38
      %s39 = sphi 0, %s36
      %s40 = sphi 0, %s39
      %s56 = sphi 0, %s40
      %s60 = sphi 0, %s60
      %s62 = sphi 0, %s60
      %s63 = sphi 0, %s62
      %s77 = sphi 0, %s63
      %s81 = sphi 0, %s81
      %s83 = sphi 0, %s81
      %s84 = sphi 0, %s83
      %s98 = sphi 0, %s84
      %s106 = sphi 0, %s108
      %s109 = sphi 0, %s106
      %s110 = sphi 0, %s109
      %s126 = sphi 0, %s110
    $region4: #{tpu_custom_call.1} parent=1 // loop_header_branch
      %15 = sbr.rel (%p13) target = $region8
    $region5: #{tpu_custom_call.1} parent=1 // loop_body
      %s17 = ssub.s32 %s12, 1
      %s18 = ssub.s32 %s12, 2
      %s25 = sadd.s32 1, %s20
      %p26 = scmp.ge.s32.totalorder %s25, 2
      %s27 = scalar_select %p26, 0, %s25
      %s28 = sadd.s32 1, %s19
      %s29 = scalar_select %p26, %s28, %s19
      %p30 = scmp.ge.s32.totalorder %s29, 2
      %s31 = scalar_select %p30, 0, %s29
      %s32 = ssub.s32 %s19, %s31
      %s33 = ssub.s32 %s20, %s27
      %s34 = sor.u32 %s32, %s33
      %p35 = scmp.eq.s32.totalorder %s34, 0
      %s37 = sadd.s32 %s36, 1
      %s38 = scalar_select %p35, %s36, %s37
      %p41 = pneg %p35
      %p42 = scmp.eq.s32.totalorder %s12, 3
      %p43 = por %p41, %p42
      %p44 = scmp.ne.s32.totalorder %s36, %s39
      %p45 = scmp.eq.s32.totalorder %s12, 0
      %p46 = por %p44, %p45
      %p47 = scmp.ne.s32.totalorder %s36, %s39
      %p48 = scmp.eq.s32.totalorder %s17, 3
      %p49 = por %p47, %p48
      %p50 = scmp.ne.s32.totalorder %s39, %s40
      %p51 = scmp.eq.s32.totalorder %s17, 0
      %p52 = por %p50, %p51
      %p53 = scmp.ne.s32.totalorder %s39, %s40
      %p54 = scmp.eq.s32.totalorder %s18, 3
      %p55 = por %p53, %p54
      %p57 = scmp.ne.s32.totalorder %s40, %s56
      %p58 = scmp.eq.s32.totalorder %s18, 0
      %p59 = por %p57, %p58
      %s61 = sadd.s32 %s60, 1
      %p64 = scmp.eq.s32.totalorder %s12, 3
      %p65 = scmp.ne.s32.totalorder %s60, %s62
      %p66 = scmp.eq.s32.totalorder %s12, 0
      %p67 = por %p65, %p66
      %p68 = scmp.ne.s32.totalorder %s60, %s62
      %p69 = scmp.eq.s32.totalorder %s17, 3
      %p70 = por %p68, %p69
      %p71 = scmp.ne.s32.totalorder %s62, %s63
      %p72 = scmp.eq.s32.totalorder %s17, 0
      %p73 = por %p71, %p72
      %p74 = scmp.ne.s32.totalorder %s62, %s63
      %p75 = scmp.eq.s32.totalorder %s18, 3
      %p76 = por %p74, %p75
      %p78 = scmp.ne.s32.totalorder %s63, %s77
      %p79 = scmp.eq.s32.totalorder %s18, 0
      %p80 = por %p78, %p79
      %s82 = sadd.s32 %s81, 1
      %p85 = scmp.eq.s32.totalorder %s12, 3
      %p86 = scmp.ne.s32.totalorder %s81, %s83
      %p87 = scmp.eq.s32.totalorder %s12, 0
      %p88 = por %p86, %p87
      %p89 = scmp.ne.s32.totalorder %s81, %s83
      %p90 = scmp.eq.s32.totalorder %s17, 3
      %p91 = por %p89, %p90
      %p92 = scmp.ne.s32.totalorder %s83, %s84
      %p93 = scmp.eq.s32.totalorder %s17, 0
      %p94 = por %p92, %p93
      %p95 = scmp.ne.s32.totalorder %s83, %s84
      %p96 = scmp.eq.s32.totalorder %s18, 3
      %p97 = por %p95, %p96
      %p99 = scmp.ne.s32.totalorder %s84, %s98
      %p100 = scmp.eq.s32.totalorder %s18, 0
      %p101 = por %p99, %p100
      %s102 = ssub.s32 %s19, %s31
      %s103 = ssub.s32 %s20, %s27
      %s104 = sor.u32 %s102, %s103
      %p105 = scmp.eq.s32.totalorder %s104, 0
      %s107 = sadd.s32 %s106, 1
      %s108 = scalar_select %p105, %s106, %s107
      %p111 = pneg %p105
      %p112 = scmp.eq.s32.totalorder %s12, 3
      %p113 = por %p111, %p112
      %p114 = scmp.ne.s32.totalorder %s106, %s109
      %p115 = scmp.eq.s32.totalorder %s12, 0
      %p116 = por %p114, %p115
      %p117 = scmp.ne.s32.totalorder %s106, %s109
      %p118 = scmp.eq.s32.totalorder %s17, 3
      %p119 = por %p117, %p118
      %p120 = scmp.ne.s32.totalorder %s109, %s110
      %p121 = scmp.eq.s32.totalorder %s17, 0
      %p122 = por %p120, %p121
      %p123 = scmp.ne.s32.totalorder %s109, %s110
      %p124 = scmp.eq.s32.totalorder %s18, 3
      %p125 = por %p123, %p124
      %p127 = scmp.ne.s32.totalorder %s110, %s126
      %p128 = scmp.eq.s32.totalorder %s18, 0
      %p129 = por %p127, %p128
      %p130 = scmp.le.s32.totalorder 1, %s12
      %p131 = scmp.lt.s32.totalorder %s12, 5
      %p132 = pnand %p130, %p131
      %p133 = pneg %p132
      // Predicated region
      $region9: #{tpu_custom_call.1} parent=5 // pred_check
        _
      $region10: #{tpu_custom_call.1} parent=5 // pred_check_branch
        %135 = sbr.rel (%p132) target = $region12
      $region11: #{tpu_custom_call.1} parent=5 // pred_region
        %s136 = ssub.s32 %s12, 1
        // Predicated region
        $region13: #{tpu_custom_call.1} parent=11 // pred_check
          %p137 = pneg %p73
        $region14: #{tpu_custom_call.1} parent=11 // pred_check_branch
          %139 = sbr.rel (%p137) target = $region16
        $region15: #{tpu_custom_call.1} parent=11 // pred_region
          _
        $region16: #{tpu_custom_call.1} parent=11 // pred_fallthru
          _
        // Predicated region
        $region17: #{tpu_custom_call.1} parent=11 // pred_check
          %p140 = pneg %p94
        $region18: #{tpu_custom_call.1} parent=11 // pred_check_branch
          %142 = sbr.rel (%p140) target = $region20
        $region19: #{tpu_custom_call.1} parent=11 // pred_region
          _
        $region20: #{tpu_custom_call.1} parent=11 // pred_fallthru
          _
      $region12: #{tpu_custom_call.1} parent=5 // pred_fallthru
        _
      %p143 = scmp.lt.s32.totalorder %s12, 4
      // Predicated region
      $region21: #{tpu_custom_call.1} parent=5 // pred_check
        %p144 = pneg %p143
      $region22: #{tpu_custom_call.1} parent=5 // pred_check_branch
        %146 = sbr.rel (%p144) target = $region24
      $region23: #{tpu_custom_call.1} parent=5 // pred_region
        // Predicated region
        $region25: #{tpu_custom_call.1} parent=23 // pred_check
          %p147 = pneg %p46
        $region26: #{tpu_custom_call.1} parent=23 // pred_check_branch
          %149 = sbr.rel (%p147) target = $region28
        $region27: #{tpu_custom_call.1} parent=23 // pred_region
          %s150 = smul.u32 128, %s20
          %p151 = scmp.lt.s32.totalorder %s19, 1
          %s152 = scalar_select %p151, %s19, 1
          %p153 = scmp.lt.s32.totalorder %s150, 255
          %s154 = scalar_select %p153, %s150, 255
          %s155 = smul.addr %s154, 2
          %s156 = smul.addr %s152, 512
          %s157 = sadd.s32 %s155, %s156
          %s158 = smul.addr %s157, 4
          %s159 = scalar_lea.vmem %s0, %s158
          %s160 = smul.u32 128, %s20
        $region28: #{tpu_custom_call.1} parent=23 // pred_fallthru
          _
      $region24: #{tpu_custom_call.1} parent=5 // pred_fallthru
        _
      %p161 = scmp.le.s32.totalorder 1, %s12
      %p162 = scmp.lt.s32.totalorder %s12, 5
      %p163 = pnand %p161, %p162
      %p164 = pneg %p163
      // Predicated region
      $region29: #{tpu_custom_call.1} parent=5 // pred_check
        _
      $region30: #{tpu_custom_call.1} parent=5 // pred_check_branch
        %166 = sbr.rel (%p163) target = $region32
      $region31: #{tpu_custom_call.1} parent=5 // pred_region
        %s167 = ssub.s32 %s12, 1
        %s168 = smul.u32 128, %s22
        %p169 = scmp.lt.s32.totalorder %s21, 1
        %s170 = scalar_select %p169, %s21, 1
        %p171 = scmp.lt.s32.totalorder %s168, 255
        %s172 = scalar_select %p171, %s168, 255
        %s173 = smul.addr %s172, 2
        %s174 = smul.addr %s170, 512
        %s175 = sadd.s32 %s173, %s174
        %s176 = smul.addr %s175, 4
        %s177 = scalar_lea.vmem %s0, %s176
        %p178 = pneg %p52
        %p179 = pneg %p49
        %p180 = pneg %p73
        %p181 = pneg %p70
        %p182 = pneg %p94
        %p183 = pneg %p91
        %p184 = pneg %p122
        %p185 = pneg %p119
        %s186 = sand.u32 %s109, 1
        %s187 = scalar_lea.sflag [#allocation3], %s186
        %s188 = sand.u32 %s109, 1
        %s189 = smul.addr %s188, 1024
        %s190 = scalar_lea.vmem [#allocation2], %s189
        %s191 = smul.u32 128, %s22
        %p192 = scmp.lt.s32.totalorder %s21, 1
        %s193 = scalar_select %p192, %s21, 1
        %p194 = scmp.lt.s32.totalorder %s191, 255
        %s195 = scalar_select %p194, %s191, 255
        %s196 = smul.addr %s195, 2
        %s197 = smul.addr %s193, 512
        %s198 = sadd.s32 %s196, %s197
        %s199 = smul.addr %s198, 4
        %s200 = scalar_lea.vmem %s0, %s199
        %s201 = smul.u32 128, %s22
        %s202 = smul.u32 128, %s22
        %v204 = vld [vmem:[%s200] sm:$0xf]
        %v205 = vld [vmem:[%s200 + $0x4] sm:$0xf]
        %v206 = vld [vmem:[%s200 + $0x8] sm:$0xf]
        %v207 = vld [vmem:[%s200 + $0xc] sm:$0xf]
        %v208 = vld [vmem:[%s200 + $0x10] sm:$0xf]
        %v209 = vld [vmem:[%s200 + $0x14] sm:$0xf]
        %v210 = vld [vmem:[%s200 + $0x18] sm:$0xf]
        %v211 = vld [vmem:[%s200 + $0x1c] sm:$0xf]
        %v212 = vld [vmem:[%s200 + $0x20] sm:$0xf]
        %v213 = vld [vmem:[%s200 + $0x24] sm:$0xf]
        %v214 = vld [vmem:[%s200 + $0x28] sm:$0xf]
        %v215 = vld [vmem:[%s200 + $0x2c] sm:$0xf]
        %v216 = vld [vmem:[%s200 + $0x30] sm:$0xf]
        %v217 = vld [vmem:[%s200 + $0x34] sm:$0xf]
        %v218 = vld [vmem:[%s200 + $0x38] sm:$0xf]
        %v219 = vld [vmem:[%s200 + $0x3c] sm:$0xf]
        %v220 = vld [vmem:[%s200 + $0x40] sm:$0xf]
        %v221 = vld [vmem:[%s200 + $0x44] sm:$0xf]
        %v222 = vld [vmem:[%s200 + $0x48] sm:$0xf]
        %v223 = vld [vmem:[%s200 + $0x4c] sm:$0xf]
        %v224 = vld [vmem:[%s200 + $0x50] sm:$0xf]
        %v225 = vld [vmem:[%s200 + $0x54] sm:$0xf]
        %v226 = vld [vmem:[%s200 + $0x58] sm:$0xf]
        %v227 = vld [vmem:[%s200 + $0x5c] sm:$0xf]
        %v228 = vld [vmem:[%s200 + $0x60] sm:$0xf]
        %v229 = vld [vmem:[%s200 + $0x64] sm:$0xf]
        %v230 = vld [vmem:[%s200 + $0x68] sm:$0xf]
        %v231 = vld [vmem:[%s200 + $0x6c] sm:$0xf]
        %v232 = vld [vmem:[%s200 + $0x70] sm:$0xf]
        %v233 = vld [vmem:[%s200 + $0x74] sm:$0xf]
        %v234 = vld [vmem:[%s200 + $0x78] sm:$0xf]
        %v235 = vld [vmem:[%s200 + $0x7c] sm:$0xf]
        %v236 = vld [vmem:[%s200 + $0x80] sm:$0xf]
        %v237 = vld [vmem:[%s200 + $0x84] sm:$0xf]
        %v238 = vld [vmem:[%s200 + $0x88] sm:$0xf]
        %v239 = vld [vmem:[%s200 + $0x8c] sm:$0xf]
        %v240 = vld [vmem:[%s200 + $0x90] sm:$0xf]
        %v241 = vld [vmem:[%s200 + $0x94] sm:$0xf]
        %v242 = vld [vmem:[%s200 + $0x98] sm:$0xf]
        %v243 = vld [vmem:[%s200 + $0x9c] sm:$0xf]
        %v244 = vld [vmem:[%s200 + $0xa0] sm:$0xf]
        %v245 = vld [vmem:[%s200 + $0xa4] sm:$0xf]
        %v246 = vld [vmem:[%s200 + $0xa8] sm:$0xf]
        %v247 = vld [vmem:[%s200 + $0xac] sm:$0xf]
        %v248 = vld [vmem:[%s200 + $0xb0] sm:$0xf]
        %v249 = vld [vmem:[%s200 + $0xb4] sm:$0xf]
        %v250 = vld [vmem:[%s200 + $0xb8] sm:$0xf]
        %v251 = vld [vmem:[%s200 + $0xbc] sm:$0xf]
        %v252 = vld [vmem:[%s200 + $0xc0] sm:$0xf]
        %v253 = vld [vmem:[%s200 + $0xc4] sm:$0xf]
        %v254 = vld [vmem:[%s200 + $0xc8] sm:$0xf]
        %v255 = vld [vmem:[%s200 + $0xcc] sm:$0xf]
        %v256 = vld [vmem:[%s200 + $0xd0] sm:$0xf]
        %v257 = vld [vmem:[%s200 + $0xd4] sm:$0xf]
        %v258 = vld [vmem:[%s200 + $0xd8] sm:$0xf]
        %v259 = vld [vmem:[%s200 + $0xdc] sm:$0xf]
        %v260 = vld [vmem:[%s200 + $0xe0] sm:$0xf]
        %v261 = vld [vmem:[%s200 + $0xe4] sm:$0xf]
        %v262 = vld [vmem:[%s200 + $0xe8] sm:$0xf]
        %v263 = vld [vmem:[%s200 + $0xec] sm:$0xf]
        %v264 = vld [vmem:[%s200 + $0xf0] sm:$0xf]
        %v265 = vld [vmem:[%s200 + $0xf4] sm:$0xf]
        %v266 = vld [vmem:[%s200 + $0xf8] sm:$0xf]
        %v267 = vld [vmem:[%s200 + $0xfc] sm:$0xf]
        %v268 = vld [vmem:[%s200 + $0x100] sm:$0xf]
        %v269 = vld [vmem:[%s200 + $0x104] sm:$0xf]
        %v270 = vld [vmem:[%s200 + $0x108] sm:$0xf]
        %v271 = vld [vmem:[%s200 + $0x10c] sm:$0xf]
        %v272 = vld [vmem:[%s200 + $0x110] sm:$0xf]
        %v273 = vld [vmem:[%s200 + $0x114] sm:$0xf]
        %v274 = vld [vmem:[%s200 + $0x118] sm:$0xf]
        %v275 = vld [vmem:[%s200 + $0x11c] sm:$0xf]
        %v276 = vld [vmem:[%s200 + $0x120] sm:$0xf]
        %v277 = vld [vmem:[%s200 + $0x124] sm:$0xf]
        %v278 = vld [vmem:[%s200 + $0x128] sm:$0xf]
        %v279 = vld [vmem:[%s200 + $0x12c] sm:$0xf]
        %v280 = vld [vmem:[%s200 + $0x130] sm:$0xf]
        %v281 = vld [vmem:[%s200 + $0x134] sm:$0xf]
        %v282 = vld [vmem:[%s200 + $0x138] sm:$0xf]
        %v283 = vld [vmem:[%s200 + $0x13c] sm:$0xf]
        %v284 = vld [vmem:[%s200 + $0x140] sm:$0xf]
        %v285 = vld [vmem:[%s200 + $0x144] sm:$0xf]
        %v286 = vld [vmem:[%s200 + $0x148] sm:$0xf]
        %v287 = vld [vmem:[%s200 + $0x14c] sm:$0xf]
        %v288 = vld [vmem:[%s200 + $0x150] sm:$0xf]
        %v289 = vld [vmem:[%s200 + $0x154] sm:$0xf]
        %v290 = vld [vmem:[%s200 + $0x158] sm:$0xf]
        %v291 = vld [vmem:[%s200 + $0x15c] sm:$0xf]
        %v292 = vld [vmem:[%s200 + $0x160] sm:$0xf]
        %v293 = vld [vmem:[%s200 + $0x164] sm:$0xf]
        %v294 = vld [vmem:[%s200 + $0x168] sm:$0xf]
        %v295 = vld [vmem:[%s200 + $0x16c] sm:$0xf]
        %v296 = vld [vmem:[%s200 + $0x170] sm:$0xf]
        %v297 = vld [vmem:[%s200 + $0x174] sm:$0xf]
        %v298 = vld [vmem:[%s200 + $0x178] sm:$0xf]
        %v299 = vld [vmem:[%s200 + $0x17c] sm:$0xf]
        %v300 = vld [vmem:[%s200 + $0x180] sm:$0xf]
        %v301 = vld [vmem:[%s200 + $0x184] sm:$0xf]
        %v302 = vld [vmem:[%s200 + $0x188] sm:$0xf]
        %v303 = vld [vmem:[%s200 + $0x18c] sm:$0xf]
        %v304 = vld [vmem:[%s200 + $0x190] sm:$0xf]
        %v305 = vld [vmem:[%s200 + $0x194] sm:$0xf]
        %v306 = vld [vmem:[%s200 + $0x198] sm:$0xf]
        %v307 = vld [vmem:[%s200 + $0x19c] sm:$0xf]
        %v308 = vld [vmem:[%s200 + $0x1a0] sm:$0xf]
        %v309 = vld [vmem:[%s200 + $0x1a4] sm:$0xf]
        %v310 = vld [vmem:[%s200 + $0x1a8] sm:$0xf]
        %v311 = vld [vmem:[%s200 + $0x1ac] sm:$0xf]
        %v312 = vld [vmem:[%s200 + $0x1b0] sm:$0xf]
        %v313 = vld [vmem:[%s200 + $0x1b4] sm:$0xf]
        %v314 = vld [vmem:[%s200 + $0x1b8] sm:$0xf]
        %v315 = vld [vmem:[%s200 + $0x1bc] sm:$0xf]
        %v316 = vld [vmem:[%s200 + $0x1c0] sm:$0xf]
        %v317 = vld [vmem:[%s200 + $0x1c4] sm:$0xf]
        %v318 = vld [vmem:[%s200 + $0x1c8] sm:$0xf]
        %v319 = vld [vmem:[%s200 + $0x1cc] sm:$0xf]
        %v320 = vld [vmem:[%s200 + $0x1d0] sm:$0xf]
        %v321 = vld [vmem:[%s200 + $0x1d4] sm:$0xf]
        %v322 = vld [vmem:[%s200 + $0x1d8] sm:$0xf]
        %v323 = vld [vmem:[%s200 + $0x1dc] sm:$0xf]
        %v324 = vld [vmem:[%s200 + $0x1e0] sm:$0xf]
        %v325 = vld [vmem:[%s200 + $0x1e4] sm:$0xf]
        %v326 = vld [vmem:[%s200 + $0x1e8] sm:$0xf]
        %v327 = vld [vmem:[%s200 + $0x1ec] sm:$0xf]
        %v328 = vld [vmem:[%s200 + $0x1f0] sm:$0xf]
        %v329 = vld [vmem:[%s200 + $0x1f4] sm:$0xf]
        %v330 = vld [vmem:[%s200 + $0x1f8] sm:$0xf]
        %v331 = vld [vmem:[%s200 + $0x1fc] sm:$0xf]
        %v332 = vld [vmem:[%s200 + $0x200] sm:$0xf]
        %v333 = vld [vmem:[%s200 + $0x204] sm:$0xf]
        %v334 = vld [vmem:[%s200 + $0x208] sm:$0xf]
        %v335 = vld [vmem:[%s200 + $0x20c] sm:$0xf]
        %v336 = vld [vmem:[%s200 + $0x210] sm:$0xf]
        %v337 = vld [vmem:[%s200 + $0x214] sm:$0xf]
        %v338 = vld [vmem:[%s200 + $0x218] sm:$0xf]
        %v339 = vld [vmem:[%s200 + $0x21c] sm:$0xf]
        %v340 = vld [vmem:[%s200 + $0x220] sm:$0xf]
        %v341 = vld [vmem:[%s200 + $0x224] sm:$0xf]
        %v342 = vld [vmem:[%s200 + $0x228] sm:$0xf]
        %v343 = vld [vmem:[%s200 + $0x22c] sm:$0xf]
        %v344 = vld [vmem:[%s200 + $0x230] sm:$0xf]
        %v345 = vld [vmem:[%s200 + $0x234] sm:$0xf]
        %v346 = vld [vmem:[%s200 + $0x238] sm:$0xf]
        %v347 = vld [vmem:[%s200 + $0x23c] sm:$0xf]
        %v348 = vld [vmem:[%s200 + $0x240] sm:$0xf]
        %v349 = vld [vmem:[%s200 + $0x244] sm:$0xf]
        %v350 = vld [vmem:[%s200 + $0x248] sm:$0xf]
        %v351 = vld [vmem:[%s200 + $0x24c] sm:$0xf]
        %v352 = vld [vmem:[%s200 + $0x250] sm:$0xf]
        %v353 = vld [vmem:[%s200 + $0x254] sm:$0xf]
        %v354 = vld [vmem:[%s200 + $0x258] sm:$0xf]
        %v355 = vld [vmem:[%s200 + $0x25c] sm:$0xf]
        %v356 = vld [vmem:[%s200 + $0x260] sm:$0xf]
        %v357 = vld [vmem:[%s200 + $0x264] sm:$0xf]
        %v358 = vld [vmem:[%s200 + $0x268] sm:$0xf]
        %v359 = vld [vmem:[%s200 + $0x26c] sm:$0xf]
        %v360 = vld [vmem:[%s200 + $0x270] sm:$0xf]
        %v361 = vld [vmem:[%s200 + $0x274] sm:$0xf]
        %v362 = vld [vmem:[%s200 + $0x278] sm:$0xf]
        %v363 = vld [vmem:[%s200 + $0x27c] sm:$0xf]
        %v364 = vld [vmem:[%s200 + $0x280] sm:$0xf]
        %v365 = vld [vmem:[%s200 + $0x284] sm:$0xf]
        %v366 = vld [vmem:[%s200 + $0x288] sm:$0xf]
        %v367 = vld [vmem:[%s200 + $0x28c] sm:$0xf]
        %v368 = vld [vmem:[%s200 + $0x290] sm:$0xf]
        %v369 = vld [vmem:[%s200 + $0x294] sm:$0xf]
        %v370 = vld [vmem:[%s200 + $0x298] sm:$0xf]
        %v371 = vld [vmem:[%s200 + $0x29c] sm:$0xf]
        %v372 = vld [vmem:[%s200 + $0x2a0] sm:$0xf]
        %v373 = vld [vmem:[%s200 + $0x2a4] sm:$0xf]
        %v374 = vld [vmem:[%s200 + $0x2a8] sm:$0xf]
        %v375 = vld [vmem:[%s200 + $0x2ac] sm:$0xf]
        %v376 = vld [vmem:[%s200 + $0x2b0] sm:$0xf]
        %v377 = vld [vmem:[%s200 + $0x2b4] sm:$0xf]
        %v378 = vld [vmem:[%s200 + $0x2b8] sm:$0xf]
        %v379 = vld [vmem:[%s200 + $0x2bc] sm:$0xf]
        %v380 = vld [vmem:[%s200 + $0x2c0] sm:$0xf]
        %v381 = vld [vmem:[%s200 + $0x2c4] sm:$0xf]
        %v382 = vld [vmem:[%s200 + $0x2c8] sm:$0xf]
        %v383 = vld [vmem:[%s200 + $0x2cc] sm:$0xf]
        %v384 = vld [vmem:[%s200 + $0x2d0] sm:$0xf]
        %v385 = vld [vmem:[%s200 + $0x2d4] sm:$0xf]
        %v386 = vld [vmem:[%s200 + $0x2d8] sm:$0xf]
        %v387 = vld [vmem:[%s200 + $0x2dc] sm:$0xf]
        %v388 = vld [vmem:[%s200 + $0x2e0] sm:$0xf]
        %v389 = vld [vmem:[%s200 + $0x2e4] sm:$0xf]
        %v390 = vld [vmem:[%s200 + $0x2e8] sm:$0xf]
        %v391 = vld [vmem:[%s200 + $0x2ec] sm:$0xf]
        %v392 = vld [vmem:[%s200 + $0x2f0] sm:$0xf]
        %v393 = vld [vmem:[%s200 + $0x2f4] sm:$0xf]
        %v394 = vld [vmem:[%s200 + $0x2f8] sm:$0xf]
        %v395 = vld [vmem:[%s200 + $0x2fc] sm:$0xf]
        %v396 = vld [vmem:[%s200 + $0x300] sm:$0xf]
        %v397 = vld [vmem:[%s200 + $0x304] sm:$0xf]
        %v398 = vld [vmem:[%s200 + $0x308] sm:$0xf]
        %v399 = vld [vmem:[%s200 + $0x30c] sm:$0xf]
        %v400 = vld [vmem:[%s200 + $0x310] sm:$0xf]
        %v401 = vld [vmem:[%s200 + $0x314] sm:$0xf]
        %v402 = vld [vmem:[%s200 + $0x318] sm:$0xf]
        %v403 = vld [vmem:[%s200 + $0x31c] sm:$0xf]
        %v404 = vld [vmem:[%s200 + $0x320] sm:$0xf]
        %v405 = vld [vmem:[%s200 + $0x324] sm:$0xf]
        %v406 = vld [vmem:[%s200 + $0x328] sm:$0xf]
        %v407 = vld [vmem:[%s200 + $0x32c] sm:$0xf]
        %v408 = vld [vmem:[%s200 + $0x330] sm:$0xf]
        %v409 = vld [vmem:[%s200 + $0x334] sm:$0xf]
        %v410 = vld [vmem:[%s200 + $0x338] sm:$0xf]
        %v411 = vld [vmem:[%s200 + $0x33c] sm:$0xf]
        %v412 = vld [vmem:[%s200 + $0x340] sm:$0xf]
        %v413 = vld [vmem:[%s200 + $0x344] sm:$0xf]
        %v414 = vld [vmem:[%s200 + $0x348] sm:$0xf]
        %v415 = vld [vmem:[%s200 + $0x34c] sm:$0xf]
        %v416 = vld [vmem:[%s200 + $0x350] sm:$0xf]
        %v417 = vld [vmem:[%s200 + $0x354] sm:$0xf]
        %v418 = vld [vmem:[%s200 + $0x358] sm:$0xf]
        %v419 = vld [vmem:[%s200 + $0x35c] sm:$0xf]
        %v420 = vld [vmem:[%s200 + $0x360] sm:$0xf]
        %v421 = vld [vmem:[%s200 + $0x364] sm:$0xf]
        %v422 = vld [vmem:[%s200 + $0x368] sm:$0xf]
        %v423 = vld [vmem:[%s200 + $0x36c] sm:$0xf]
        %v424 = vld [vmem:[%s200 + $0x370] sm:$0xf]
        %v425 = vld [vmem:[%s200 + $0x374] sm:$0xf]
        %v426 = vld [vmem:[%s200 + $0x378] sm:$0xf]
        %v427 = vld [vmem:[%s200 + $0x37c] sm:$0xf]
        %v428 = vld [vmem:[%s200 + $0x380] sm:$0xf]
        %v429 = vld [vmem:[%s200 + $0x384] sm:$0xf]
        %v430 = vld [vmem:[%s200 + $0x388] sm:$0xf]
        %v431 = vld [vmem:[%s200 + $0x38c] sm:$0xf]
        %v432 = vld [vmem:[%s200 + $0x390] sm:$0xf]
        %v433 = vld [vmem:[%s200 + $0x394] sm:$0xf]
        %v434 = vld [vmem:[%s200 + $0x398] sm:$0xf]
        %v435 = vld [vmem:[%s200 + $0x39c] sm:$0xf]
        %v436 = vld [vmem:[%s200 + $0x3a0] sm:$0xf]
        %v437 = vld [vmem:[%s200 + $0x3a4] sm:$0xf]
        %v438 = vld [vmem:[%s200 + $0x3a8] sm:$0xf]
        %v439 = vld [vmem:[%s200 + $0x3ac] sm:$0xf]
        %v440 = vld [vmem:[%s200 + $0x3b0] sm:$0xf]
        %v441 = vld [vmem:[%s200 + $0x3b4] sm:$0xf]
        %v442 = vld [vmem:[%s200 + $0x3b8] sm:$0xf]
        %v443 = vld [vmem:[%s200 + $0x3bc] sm:$0xf]
        %v444 = vld [vmem:[%s200 + $0x3c0] sm:$0xf]
        %v445 = vld [vmem:[%s200 + $0x3c4] sm:$0xf]
        %v446 = vld [vmem:[%s200 + $0x3c8] sm:$0xf]
        %v447 = vld [vmem:[%s200 + $0x3cc] sm:$0xf]
        %v448 = vld [vmem:[%s200 + $0x3d0] sm:$0xf]
        %v449 = vld [vmem:[%s200 + $0x3d4] sm:$0xf]
        %v450 = vld [vmem:[%s200 + $0x3d8] sm:$0xf]
        %v451 = vld [vmem:[%s200 + $0x3dc] sm:$0xf]
        %v452 = vld [vmem:[%s200 + $0x3e0] sm:$0xf]
        %v453 = vld [vmem:[%s200 + $0x3e4] sm:$0xf]
        %v454 = vld [vmem:[%s200 + $0x3e8] sm:$0xf]
        %v455 = vld [vmem:[%s200 + $0x3ec] sm:$0xf]
        %v456 = vld [vmem:[%s200 + $0x3f0] sm:$0xf]
        %v457 = vld [vmem:[%s200 + $0x3f4] sm:$0xf]
        %v458 = vld [vmem:[%s200 + $0x3f8] sm:$0xf]
        %v459 = vld [vmem:[%s200 + $0x3fc] sm:$0xf]
        %v460 = vld [vmem:[%s1] sm:$0xff]
        %v461 = vld [vmem:[%s1 + $0x8] sm:$0xff]
        %v462 = vld [vmem:[%s1 + $0x10] sm:$0xff]
        %v463 = vld [vmem:[%s1 + $0x18] sm:$0xff]
        %v464 = vld [vmem:[%s1 + $0x20] sm:$0x33]
        %v721 = vunpack.c.l.b16 %v204
        %v722 = vunpack.c.l.b16 %v205
        %v723 = vunpack.c.l.b16 %v206
        %v724 = vunpack.c.l.b16 %v207
        %v725 = vunpack.c.l.b16 %v208
        %v726 = vunpack.c.l.b16 %v209
        %v727 = vunpack.c.l.b16 %v210
        %v728 = vunpack.c.l.b16 %v211
        %v729 = vunpack.c.l.b16 %v212
        %v730 = vunpack.c.l.b16 %v213
        %v731 = vunpack.c.l.b16 %v214
        %v732 = vunpack.c.l.b16 %v215
        %v733 = vunpack.c.l.b16 %v216
        %v734 = vunpack.c.l.b16 %v217
        %v735 = vunpack.c.l.b16 %v218
        %v736 = vunpack.c.l.b16 %v219
        %v737 = vunpack.c.l.b16 %v220
        %v738 = vunpack.c.l.b16 %v221
        %v739 = vunpack.c.l.b16 %v222
        %v740 = vunpack.c.l.b16 %v223
        %v741 = vunpack.c.l.b16 %v224
        %v742 = vunpack.c.l.b16 %v225
        %v743 = vunpack.c.l.b16 %v226
        %v744 = vunpack.c.l.b16 %v227
        %v745 = vunpack.c.l.b16 %v228
        %v746 = vunpack.c.l.b16 %v229
        %v747 = vunpack.c.l.b16 %v230
        %v748 = vunpack.c.l.b16 %v231
        %v749 = vunpack.c.l.b16 %v232
        %v750 = vunpack.c.l.b16 %v233
        %v751 = vunpack.c.l.b16 %v234
        %v752 = vunpack.c.l.b16 %v235
        %v753 = vunpack.c.l.b16 %v236
        %v754 = vunpack.c.l.b16 %v237
        %v755 = vunpack.c.l.b16 %v238
        %v756 = vunpack.c.l.b16 %v239
        %v757 = vunpack.c.l.b16 %v240
        %v758 = vunpack.c.l.b16 %v241
        %v759 = vunpack.c.l.b16 %v242
        %v760 = vunpack.c.l.b16 %v243
        %v761 = vunpack.c.l.b16 %v244
        %v762 = vunpack.c.l.b16 %v245
        %v763 = vunpack.c.l.b16 %v246
        %v764 = vunpack.c.l.b16 %v247
        %v765 = vunpack.c.l.b16 %v248
        %v766 = vunpack.c.l.b16 %v249
        %v767 = vunpack.c.l.b16 %v250
        %v768 = vunpack.c.l.b16 %v251
        %v769 = vunpack.c.l.b16 %v252
        %v770 = vunpack.c.l.b16 %v253
        %v771 = vunpack.c.l.b16 %v254
        %v772 = vunpack.c.l.b16 %v255
        %v773 = vunpack.c.l.b16 %v256
        %v774 = vunpack.c.l.b16 %v257
        %v775 = vunpack.c.l.b16 %v258
        %v776 = vunpack.c.l.b16 %v259
        %v777 = vunpack.c.l.b16 %v260
        %v778 = vunpack.c.l.b16 %v261
        %v779 = vunpack.c.l.b16 %v262
        %v780 = vunpack.c.l.b16 %v263
        %v781 = vunpack.c.l.b16 %v264
        %v782 = vunpack.c.l.b16 %v265
        %v783 = vunpack.c.l.b16 %v266
        %v784 = vunpack.c.l.b16 %v267
        %v785 = vunpack.c.l.b16 %v268
        %v786 = vunpack.c.l.b16 %v269
        %v787 = vunpack.c.l.b16 %v270
        %v788 = vunpack.c.l.b16 %v271
        %v789 = vunpack.c.l.b16 %v272
        %v790 = vunpack.c.l.b16 %v273
        %v791 = vunpack.c.l.b16 %v274
        %v792 = vunpack.c.l.b16 %v275
        %v793 = vunpack.c.l.b16 %v276
        %v794 = vunpack.c.l.b16 %v277
        %v795 = vunpack.c.l.b16 %v278
        %v796 = vunpack.c.l.b16 %v279
        %v797 = vunpack.c.l.b16 %v280
        %v798 = vunpack.c.l.b16 %v281
        %v799 = vunpack.c.l.b16 %v282
        %v800 = vunpack.c.l.b16 %v283
        %v801 = vunpack.c.l.b16 %v284
        %v802 = vunpack.c.l.b16 %v285
        %v803 = vunpack.c.l.b16 %v286
        %v804 = vunpack.c.l.b16 %v287
        %v805 = vunpack.c.l.b16 %v288
        %v806 = vunpack.c.l.b16 %v289
        %v807 = vunpack.c.l.b16 %v290
        %v808 = vunpack.c.l.b16 %v291
        %v809 = vunpack.c.l.b16 %v292
        %v810 = vunpack.c.l.b16 %v293
        %v811 = vunpack.c.l.b16 %v294
        %v812 = vunpack.c.l.b16 %v295
        %v813 = vunpack.c.l.b16 %v296
        %v814 = vunpack.c.l.b16 %v297
        %v815 = vunpack.c.l.b16 %v298
        %v816 = vunpack.c.l.b16 %v299
        %v817 = vunpack.c.l.b16 %v300
        %v818 = vunpack.c.l.b16 %v301
        %v819 = vunpack.c.l.b16 %v302
        %v820 = vunpack.c.l.b16 %v303
        %v821 = vunpack.c.l.b16 %v304
        %v822 = vunpack.c.l.b16 %v305
        %v823 = vunpack.c.l.b16 %v306
        %v824 = vunpack.c.l.b16 %v307
        %v825 = vunpack.c.l.b16 %v308
        %v826 = vunpack.c.l.b16 %v309
        %v827 = vunpack.c.l.b16 %v310
        %v828 = vunpack.c.l.b16 %v311
        %v829 = vunpack.c.l.b16 %v312
        %v830 = vunpack.c.l.b16 %v313
        %v831 = vunpack.c.l.b16 %v314
        %v832 = vunpack.c.l.b16 %v315
        %v833 = vunpack.c.l.b16 %v316
        %v834 = vunpack.c.l.b16 %v317
        %v835 = vunpack.c.l.b16 %v318
        %v836 = vunpack.c.l.b16 %v319
        %v837 = vunpack.c.l.b16 %v320
        %v838 = vunpack.c.l.b16 %v321
        %v839 = vunpack.c.l.b16 %v322
        %v840 = vunpack.c.l.b16 %v323
        %v841 = vunpack.c.l.b16 %v324
        %v842 = vunpack.c.l.b16 %v325
        %v843 = vunpack.c.l.b16 %v326
        %v844 = vunpack.c.l.b16 %v327
        %v845 = vunpack.c.l.b16 %v328
        %v846 = vunpack.c.l.b16 %v329
        %v847 = vunpack.c.l.b16 %v330
        %v848 = vunpack.c.l.b16 %v331
        %v849 = vunpack.c.l.b16 %v332
        %v850 = vunpack.c.l.b16 %v333
        %v851 = vunpack.c.l.b16 %v334
        %v852 = vunpack.c.l.b16 %v335
        %v853 = vunpack.c.l.b16 %v336
        %v854 = vunpack.c.l.b16 %v337
        %v855 = vunpack.c.l.b16 %v338
        %v856 = vunpack.c.l.b16 %v339
        %v857 = vunpack.c.l.b16 %v340
        %v858 = vunpack.c.l.b16 %v341
        %v859 = vunpack.c.l.b16 %v342
        %v860 = vunpack.c.l.b16 %v343
        %v861 = vunpack.c.l.b16 %v344
        %v862 = vunpack.c.l.b16 %v345
        %v863 = vunpack.c.l.b16 %v346
        %v864 = vunpack.c.l.b16 %v347
        %v865 = vunpack.c.l.b16 %v348
        %v866 = vunpack.c.l.b16 %v349
        %v867 = vunpack.c.l.b16 %v350
        %v868 = vunpack.c.l.b16 %v351
        %v869 = vunpack.c.l.b16 %v352
        %v870 = vunpack.c.l.b16 %v353
        %v871 = vunpack.c.l.b16 %v354
        %v872 = vunpack.c.l.b16 %v355
        %v873 = vunpack.c.l.b16 %v356
        %v874 = vunpack.c.l.b16 %v357
        %v875 = vunpack.c.l.b16 %v358
        %v876 = vunpack.c.l.b16 %v359
        %v877 = vunpack.c.l.b16 %v360
        %v878 = vunpack.c.l.b16 %v361
        %v879 = vunpack.c.l.b16 %v362
        %v880 = vunpack.c.l.b16 %v363
        %v881 = vunpack.c.l.b16 %v364
        %v882 = vunpack.c.l.b16 %v365
        %v883 = vunpack.c.l.b16 %v366
        %v884 = vunpack.c.l.b16 %v367
        %v885 = vunpack.c.l.b16 %v368
        %v886 = vunpack.c.l.b16 %v369
        %v887 = vunpack.c.l.b16 %v370
        %v888 = vunpack.c.l.b16 %v371
        %v889 = vunpack.c.l.b16 %v372
        %v890 = vunpack.c.l.b16 %v373
        %v891 = vunpack.c.l.b16 %v374
        %v892 = vunpack.c.l.b16 %v375
        %v893 = vunpack.c.l.b16 %v376
        %v894 = vunpack.c.l.b16 %v377
        %v895 = vunpack.c.l.b16 %v378
        %v896 = vunpack.c.l.b16 %v379
        %v897 = vunpack.c.l.b16 %v380
        %v898 = vunpack.c.l.b16 %v381
        %v899 = vunpack.c.l.b16 %v382
        %v900 = vunpack.c.l.b16 %v383
        %v901 = vunpack.c.l.b16 %v384
        %v902 = vunpack.c.l.b16 %v385
        %v903 = vunpack.c.l.b16 %v386
        %v904 = vunpack.c.l.b16 %v387
        %v905 = vunpack.c.l.b16 %v388
        %v906 = vunpack.c.l.b16 %v389
        %v907 = vunpack.c.l.b16 %v390
        %v908 = vunpack.c.l.b16 %v391
        %v909 = vunpack.c.l.b16 %v392
        %v910 = vunpack.c.l.b16 %v393
        %v911 = vunpack.c.l.b16 %v394
        %v912 = vunpack.c.l.b16 %v395
        %v913 = vunpack.c.l.b16 %v396
        %v914 = vunpack.c.l.b16 %v397
        %v915 = vunpack.c.l.b16 %v398
        %v916 = vunpack.c.l.b16 %v399
        %v917 = vunpack.c.l.b16 %v400
        %v918 = vunpack.c.l.b16 %v401
        %v919 = vunpack.c.l.b16 %v402
        %v920 = vunpack.c.l.b16 %v403
        %v921 = vunpack.c.l.b16 %v404
        %v922 = vunpack.c.l.b16 %v405
        %v923 = vunpack.c.l.b16 %v406
        %v924 = vunpack.c.l.b16 %v407
        %v925 = vunpack.c.l.b16 %v408
        %v926 = vunpack.c.l.b16 %v409
        %v927 = vunpack.c.l.b16 %v410
        %v928 = vunpack.c.l.b16 %v411
        %v929 = vunpack.c.l.b16 %v412
        %v930 = vunpack.c.l.b16 %v413
        %v931 = vunpack.c.l.b16 %v414
        %v932 = vunpack.c.l.b16 %v415
        %v933 = vunpack.c.l.b16 %v416
        %v934 = vunpack.c.l.b16 %v417
        %v935 = vunpack.c.l.b16 %v418
        %v936 = vunpack.c.l.b16 %v419
        %v937 = vunpack.c.l.b16 %v420
        %v938 = vunpack.c.l.b16 %v421
        %v939 = vunpack.c.l.b16 %v422
        %v940 = vunpack.c.l.b16 %v423
        %v941 = vunpack.c.l.b16 %v424
        %v942 = vunpack.c.l.b16 %v425
        %v943 = vunpack.c.l.b16 %v426
        %v944 = vunpack.c.l.b16 %v427
        %v945 = vunpack.c.l.b16 %v428
        %v946 = vunpack.c.l.b16 %v429
        %v947 = vunpack.c.l.b16 %v430
        %v948 = vunpack.c.l.b16 %v431
        %v949 = vunpack.c.l.b16 %v432
        %v950 = vunpack.c.l.b16 %v433
        %v951 = vunpack.c.l.b16 %v434
        %v952 = vunpack.c.l.b16 %v435
        %v953 = vunpack.c.l.b16 %v436
        %v954 = vunpack.c.l.b16 %v437
        %v955 = vunpack.c.l.b16 %v438
        %v956 = vunpack.c.l.b16 %v439
        %v957 = vunpack.c.l.b16 %v440
        %v958 = vunpack.c.l.b16 %v441
        %v959 = vunpack.c.l.b16 %v442
        %v960 = vunpack.c.l.b16 %v443
        %v961 = vunpack.c.l.b16 %v444
        %v962 = vunpack.c.l.b16 %v445
        %v963 = vunpack.c.l.b16 %v446
        %v964 = vunpack.c.l.b16 %v447
        %v965 = vunpack.c.l.b16 %v448
        %v966 = vunpack.c.l.b16 %v449
        %v967 = vunpack.c.l.b16 %v450
        %v968 = vunpack.c.l.b16 %v451
        %v969 = vunpack.c.l.b16 %v452
        %v970 = vunpack.c.l.b16 %v453
        %v971 = vunpack.c.l.b16 %v454
        %v972 = vunpack.c.l.b16 %v455
        %v973 = vunpack.c.l.b16 %v456
        %v974 = vunpack.c.l.b16 %v457
        %v975 = vunpack.c.l.b16 %v458
        %v976 = vunpack.c.l.b16 %v459
        %v977 = vpack.c.b16 %v722, %v721
        %v978 = vpack.c.b16 %v724, %v723
        %v979 = vpack.c.b16 %v726, %v725
        %v980 = vpack.c.b16 %v728, %v727
        %v981 = vpack.c.b16 %v730, %v729
        %v982 = vpack.c.b16 %v732, %v731
        %v983 = vpack.c.b16 %v734, %v733
        %v984 = vpack.c.b16 %v736, %v735
        %v985 = vpack.c.b16 %v738, %v737
        %v986 = vpack.c.b16 %v740, %v739
        %v987 = vpack.c.b16 %v742, %v741
        %v988 = vpack.c.b16 %v744, %v743
        %v989 = vpack.c.b16 %v746, %v745
        %v990 = vpack.c.b16 %v748, %v747
        %v991 = vpack.c.b16 %v750, %v749
        %v992 = vpack.c.b16 %v752, %v751
        %v993 = vpack.c.b16 %v754, %v753
        %v994 = vpack.c.b16 %v756, %v755
        %v995 = vpack.c.b16 %v758, %v757
        %v996 = vpack.c.b16 %v760, %v759
        %v997 = vpack.c.b16 %v762, %v761
        %v998 = vpack.c.b16 %v764, %v763
        %v999 = vpack.c.b16 %v766, %v765
        %v1000 = vpack.c.b16 %v768, %v767
        %v1001 = vpack.c.b16 %v770, %v769
        %v1002 = vpack.c.b16 %v772, %v771
        %v1003 = vpack.c.b16 %v774, %v773
        %v1004 = vpack.c.b16 %v776, %v775
        %v1005 = vpack.c.b16 %v778, %v777
        %v1006 = vpack.c.b16 %v780, %v779
        %v1007 = vpack.c.b16 %v782, %v781
        %v1008 = vpack.c.b16 %v784, %v783
        %v1009 = vpack.c.b16 %v786, %v785
        %v1010 = vpack.c.b16 %v788, %v787
        %v1011 = vpack.c.b16 %v790, %v789
        %v1012 = vpack.c.b16 %v792, %v791
        %v1013 = vpack.c.b16 %v794, %v793
        %v1014 = vpack.c.b16 %v796, %v795
        %v1015 = vpack.c.b16 %v798, %v797
        %v1016 = vpack.c.b16 %v800, %v799
        %v1017 = vpack.c.b16 %v802, %v801
        %v1018 = vpack.c.b16 %v804, %v803
        %v1019 = vpack.c.b16 %v806, %v805
        %v1020 = vpack.c.b16 %v808, %v807
        %v1021 = vpack.c.b16 %v810, %v809
        %v1022 = vpack.c.b16 %v812, %v811
        %v1023 = vpack.c.b16 %v814, %v813
        %v1024 = vpack.c.b16 %v816, %v815
        %v1025 = vpack.c.b16 %v818, %v817
        %v1026 = vpack.c.b16 %v820, %v819
        %v1027 = vpack.c.b16 %v822, %v821
        %v1028 = vpack.c.b16 %v824, %v823
        %v1029 = vpack.c.b16 %v826, %v825
        %v1030 = vpack.c.b16 %v828, %v827
        %v1031 = vpack.c.b16 %v830, %v829
        %v1032 = vpack.c.b16 %v832, %v831
        %v1033 = vpack.c.b16 %v834, %v833
        %v1034 = vpack.c.b16 %v836, %v835
        %v1035 = vpack.c.b16 %v838, %v837
        %v1036 = vpack.c.b16 %v840, %v839
        %v1037 = vpack.c.b16 %v842, %v841
        %v1038 = vpack.c.b16 %v844, %v843
        %v1039 = vpack.c.b16 %v846, %v845
        %v1040 = vpack.c.b16 %v848, %v847
        %v1041 = vpack.c.b16 %v850, %v849
        %v1042 = vpack.c.b16 %v852, %v851
        %v1043 = vpack.c.b16 %v854, %v853
        %v1044 = vpack.c.b16 %v856, %v855
        %v1045 = vpack.c.b16 %v858, %v857
        %v1046 = vpack.c.b16 %v860, %v859
        %v1047 = vpack.c.b16 %v862, %v861
        %v1048 = vpack.c.b16 %v864, %v863
        %v1049 = vpack.c.b16 %v866, %v865
        %v1050 = vpack.c.b16 %v868, %v867
        %v1051 = vpack.c.b16 %v870, %v869
        %v1052 = vpack.c.b16 %v872, %v871
        %v1053 = vpack.c.b16 %v874, %v873
        %v1054 = vpack.c.b16 %v876, %v875
        %v1055 = vpack.c.b16 %v878, %v877
        %v1056 = vpack.c.b16 %v880, %v879
        %v1057 = vpack.c.b16 %v882, %v881
        %v1058 = vpack.c.b16 %v884, %v883
        %v1059 = vpack.c.b16 %v886, %v885
        %v1060 = vpack.c.b16 %v888, %v887
        %v1061 = vpack.c.b16 %v890, %v889
        %v1062 = vpack.c.b16 %v892, %v891
        %v1063 = vpack.c.b16 %v894, %v893
        %v1064 = vpack.c.b16 %v896, %v895
        %v1065 = vpack.c.b16 %v898, %v897
        %v1066 = vpack.c.b16 %v900, %v899
        %v1067 = vpack.c.b16 %v902, %v901
        %v1068 = vpack.c.b16 %v904, %v903
        %v1069 = vpack.c.b16 %v906, %v905
        %v1070 = vpack.c.b16 %v908, %v907
        %v1071 = vpack.c.b16 %v910, %v909
        %v1072 = vpack.c.b16 %v912, %v911
        %v1073 = vpack.c.b16 %v914, %v913
        %v1074 = vpack.c.b16 %v916, %v915
        %v1075 = vpack.c.b16 %v918, %v917
        %v1076 = vpack.c.b16 %v920, %v919
        %v1077 = vpack.c.b16 %v922, %v921
        %v1078 = vpack.c.b16 %v924, %v923
        %v1079 = vpack.c.b16 %v926, %v925
        %v1080 = vpack.c.b16 %v928, %v927
        %v1081 = vpack.c.b16 %v930, %v929
        %v1082 = vpack.c.b16 %v932, %v931
        %v1083 = vpack.c.b16 %v934, %v933
        %v1084 = vpack.c.b16 %v936, %v935
        %v1085 = vpack.c.b16 %v938, %v937
        %v1086 = vpack.c.b16 %v940, %v939
        %v1087 = vpack.c.b16 %v942, %v941
        %v1088 = vpack.c.b16 %v944, %v943
        %v1089 = vpack.c.b16 %v946, %v945
        %v1090 = vpack.c.b16 %v948, %v947
        %v1091 = vpack.c.b16 %v950, %v949
        %v1092 = vpack.c.b16 %v952, %v951
        %v1093 = vpack.c.b16 %v954, %v953
        %v1094 = vpack.c.b16 %v956, %v955
        %v1095 = vpack.c.b16 %v958, %v957
        %v1096 = vpack.c.b16 %v960, %v959
        %v1097 = vpack.c.b16 %v962, %v961
        %v1098 = vpack.c.b16 %v964, %v963
        %v1099 = vpack.c.b16 %v966, %v965
        %v1100 = vpack.c.b16 %v968, %v967
        %v1101 = vpack.c.b16 %v970, %v969
        %v1102 = vpack.c.b16 %v972, %v971
        %v1103 = vpack.c.b16 %v974, %v973
        %v1104 = vpack.c.b16 %v976, %v975
        %v1110 = vunpack.c.l.b16 %v460
        %v1111 = vunpack.c.h.b16 %v460
        %v1112 = vunpack.c.l.b16 %v461
        %v1113 = vunpack.c.h.b16 %v461
        %v1114 = vunpack.c.l.b16 %v462
        %v1115 = vunpack.c.h.b16 %v462
        %v1116 = vunpack.c.l.b16 %v463
        %v1117 = vunpack.c.h.b16 %v463
        %v1118 = vunpack.c.l.b16 %v464
        %v1119 = vunpack.c.h.b16 %v464
        %v1120 = vpack.c.b16 %v1112, %v1110
        %v1121 = vpack.c.b16 %v1113, %v1111
        %v1122 = vpack.c.b16 %v1116, %v1114
        %v1123 = vpack.c.b16 %v1117, %v1115
        %v1124 = vpack.c.b16 %v1118, %v1118
        %v1125 = vpack.c.b16 %v1119, %v1119
        %vm1130 = vcmask 293888
        %v1132 = vsel %vm1130, %v977, 0
        %v1135 = vsel %vm1130, %v978, 0
        %v1138 = vsel %vm1130, %v979, 0
        %v1141 = vsel %vm1130, %v980, 0
        %v1144 = vsel %vm1130, %v981, 0
        %v1147 = vsel %vm1130, %v982, 0
        %v1150 = vsel %vm1130, %v983, 0
        %v1153 = vsel %vm1130, %v984, 0
        %v1156 = vsel %vm1130, %v985, 0
        %v1159 = vsel %vm1130, %v986, 0
        %v1162 = vsel %vm1130, %v987, 0
        %v1165 = vsel %vm1130, %v988, 0
        %v1168 = vsel %vm1130, %v989, 0
        %v1171 = vsel %vm1130, %v990, 0
        %v1174 = vsel %vm1130, %v991, 0
        %v1177 = vsel %vm1130, %v992, 0
        %v1180 = vsel %vm1130, %v993, 0
        %v1183 = vsel %vm1130, %v994, 0
        %v1186 = vsel %vm1130, %v995, 0
        %v1189 = vsel %vm1130, %v996, 0
        %v1192 = vsel %vm1130, %v997, 0
        %v1195 = vsel %vm1130, %v998, 0
        %v1198 = vsel %vm1130, %v999, 0
        %v1201 = vsel %vm1130, %v1000, 0
        %v1204 = vsel %vm1130, %v1001, 0
        %v1207 = vsel %vm1130, %v1002, 0
        %v1210 = vsel %vm1130, %v1003, 0
        %v1213 = vsel %vm1130, %v1004, 0
        %v1216 = vsel %vm1130, %v1005, 0
        %v1219 = vsel %vm1130, %v1006, 0
        %v1222 = vsel %vm1130, %v1007, 0
        %v1225 = vsel %vm1130, %v1008, 0
        %v1228 = vsel %vm1130, %v1009, 0
        %v1231 = vsel %vm1130, %v1010, 0
        %v1234 = vsel %vm1130, %v1011, 0
        %v1237 = vsel %vm1130, %v1012, 0
        %v1240 = vsel %vm1130, %v1013, 0
        %v1243 = vsel %vm1130, %v1014, 0
        %v1246 = vsel %vm1130, %v1015, 0
        %v1249 = vsel %vm1130, %v1016, 0
        %v1252 = vsel %vm1130, %v1017, 0
        %v1255 = vsel %vm1130, %v1018, 0
        %v1258 = vsel %vm1130, %v1019, 0
        %v1261 = vsel %vm1130, %v1020, 0
        %v1264 = vsel %vm1130, %v1021, 0
        %v1267 = vsel %vm1130, %v1022, 0
        %v1270 = vsel %vm1130, %v1023, 0
        %v1273 = vsel %vm1130, %v1024, 0
        %v1276 = vsel %vm1130, %v1025, 0
        %v1279 = vsel %vm1130, %v1026, 0
        %v1282 = vsel %vm1130, %v1027, 0
        %v1285 = vsel %vm1130, %v1028, 0
        %v1288 = vsel %vm1130, %v1029, 0
        %v1291 = vsel %vm1130, %v1030, 0
        %v1294 = vsel %vm1130, %v1031, 0
        %v1297 = vsel %vm1130, %v1032, 0
        %v1300 = vsel %vm1130, %v1033, 0
        %v1303 = vsel %vm1130, %v1034, 0
        %v1306 = vsel %vm1130, %v1035, 0
        %v1309 = vsel %vm1130, %v1036, 0
        %v1312 = vsel %vm1130, %v1037, 0
        %v1315 = vsel %vm1130, %v1038, 0
        %v1318 = vsel %vm1130, %v1039, 0
        %v1321 = vsel %vm1130, %v1040, 0
        %v1324 = vsel %vm1130, %v1041, 0
        %v1327 = vsel %vm1130, %v1042, 0
        %v1330 = vsel %vm1130, %v1043, 0
        %v1333 = vsel %vm1130, %v1044, 0
        %v1336 = vsel %vm1130, %v1045, 0
        %v1339 = vsel %vm1130, %v1046, 0
        %v1342 = vsel %vm1130, %v1047, 0
        %v1345 = vsel %vm1130, %v1048, 0
        %v1348 = vsel %vm1130, %v1049, 0
        %v1351 = vsel %vm1130, %v1050, 0
        %v1354 = vsel %vm1130, %v1051, 0
        %v1357 = vsel %vm1130, %v1052, 0
        %v1360 = vsel %vm1130, %v1053, 0
        %v1363 = vsel %vm1130, %v1054, 0
        %v1366 = vsel %vm1130, %v1055, 0
        %v1369 = vsel %vm1130, %v1056, 0
        %v1372 = vsel %vm1130, %v1057, 0
        %v1375 = vsel %vm1130, %v1058, 0
        %v1378 = vsel %vm1130, %v1059, 0
        %v1381 = vsel %vm1130, %v1060, 0
        %v1384 = vsel %vm1130, %v1061, 0
        %v1387 = vsel %vm1130, %v1062, 0
        %v1390 = vsel %vm1130, %v1063, 0
        %v1393 = vsel %vm1130, %v1064, 0
        %v1396 = vsel %vm1130, %v1065, 0
        %v1399 = vsel %vm1130, %v1066, 0
        %v1402 = vsel %vm1130, %v1067, 0
        %v1405 = vsel %vm1130, %v1068, 0
        %v1408 = vsel %vm1130, %v1069, 0
        %v1411 = vsel %vm1130, %v1070, 0
        %v1414 = vsel %vm1130, %v1071, 0
        %v1417 = vsel %vm1130, %v1072, 0
        %v1420 = vsel %vm1130, %v1073, 0
        %v1423 = vsel %vm1130, %v1074, 0
        %v1426 = vsel %vm1130, %v1075, 0
        %v1429 = vsel %vm1130, %v1076, 0
        %v1432 = vsel %vm1130, %v1077, 0
        %v1435 = vsel %vm1130, %v1078, 0
        %v1438 = vsel %vm1130, %v1079, 0
        %v1441 = vsel %vm1130, %v1080, 0
        %v1444 = vsel %vm1130, %v1081, 0
        %v1447 = vsel %vm1130, %v1082, 0
        %v1450 = vsel %vm1130, %v1083, 0
        %v1453 = vsel %vm1130, %v1084, 0
        %v1456 = vsel %vm1130, %v1085, 0
        %v1459 = vsel %vm1130, %v1086, 0
        %v1462 = vsel %vm1130, %v1087, 0
        %v1465 = vsel %vm1130, %v1088, 0
        %v1468 = vsel %vm1130, %v1089, 0
        %v1471 = vsel %vm1130, %v1090, 0
        %v1474 = vsel %vm1130, %v1091, 0
        %v1477 = vsel %vm1130, %v1092, 0
        %v1480 = vsel %vm1130, %v1093, 0
        %v1483 = vsel %vm1130, %v1094, 0
        %v1486 = vsel %vm1130, %v1095, 0
        %v1489 = vsel %vm1130, %v1096, 0
        %v1492 = vsel %vm1130, %v1097, 0
        %v1495 = vsel %vm1130, %v1098, 0
        %v1498 = vsel %vm1130, %v1099, 0
        %v1501 = vsel %vm1130, %v1100, 0
        %v1504 = vsel %vm1130, %v1101, 0
        %v1507 = vsel %vm1130, %v1102, 0
        %v1510 = vsel %vm1130, %v1103, 0
        %v1513 = vsel %vm1130, %v1104, 0
        %vm1515 = vcmask 1041408
        %v1517 = vsel %vm1515, %v1124, 0
        %v1520 = vsel %vm1515, %v1125, 0
        %1522 = vmatprep.subr.bf16.mxu0 %v1121
        %1523 = vmatpush1.bf16.msra.mxu0 %v1120
        %1524 = vmatprep.subr.bf16.mxu0 %v1123
        %1525 = vmatpush1.bf16.msra.mxu0 %v1122
        %1526 = vmatprep.subr.bf16.mxu0 %v1520
        %1527 = vmatpush1.bf16.msra.mxu0 %v1517
        %1528 = vmatprep.subr.bf16.mxu0 0
        %1529 = vmatpush1.bf16.msra.mxu0 0
        %1530 = vmatprep.subr.bf16.mxu0 0
        %1531 = vmatpush1.bf16.msra.mxu0 0
        %1532 = vmatprep.subr.bf16.mxu0 0
        %1533 = vmatpush1.bf16.msra.mxu0 0
        %1534 = vmatprep.subr.bf16.mxu0 0
        %1535 = vmatpush1.bf16.msra.mxu0 0
        %1536 = vmatprep.subr.bf16.mxu0 0
        %1537 = vmatpush1.bf16.msra.mxu0 0
        %1538 = vmatprep.subr.bf16.mxu0 0
        %1539 = vmatpush1.bf16.msra.mxu0 0
        %1540 = vmatprep.subr.bf16.mxu0 0
        %1541 = vmatpush1.bf16.msra.mxu0 0
        %1542 = vmatprep.subr.bf16.mxu0 0
        %1543 = vmatpush1.bf16.msra.mxu0 0
        %1544 = vmatprep.subr.bf16.mxu0 0
        %1545 = vmatpush1.bf16.msra.mxu0 0
        %1546 = vmatprep.subr.bf16.mxu0 0
        %1547 = vmatpush1.bf16.msra.mxu0 0
        %1548 = vmatprep.subr.bf16.mxu0 0
        %1549 = vmatpush1.bf16.msra.mxu0 0
        %1550 = vmatprep.subr.bf16.mxu0 0
        %1551 = vmatpush1.bf16.msra.mxu0 0
        %1552 = vmatprep.subr.bf16.mxu0 0
        %1553 = vmatpush1.bf16.msra.mxu0 0
        %1554 = vmatprep.mubr.bf16.mxu0 0
        %1555 = vmatmul.mubr.bf16.gmra.mrb[0].mxu0 %v1132
        %v1556 = vpop.f32.mrb[0].mxu0
        %v1557 = vadd.f32 0.0, %v1556
        %v1558 = vpop.f32.mrb[0].mxu0
        %v1559 = vadd.f32 0.0, %v1558
        %v1560 = vpop.f32.mrb[0].mxu0
        %v1561 = vadd.f32 0.0, %v1560
        %v1562 = vpop.f32.mrb[0].mxu0
        %v1563 = vadd.f32 0.0, %v1562
        %1564 = vmatprep.mubr.bf16.mxu0 0
        %1565 = vmatmul.mubr.bf16.gmra.mrb[0].mxu0 %v1135
        %v1566 = vpop.f32.mrb[0].mxu0
        %v1567 = vadd.f32 0.0, %v1566
        %v1568 = vpop.f32.mrb[0].mxu0
        %v1569 = vadd.f32 0.0, %v1568
        %v1570 = vpop.f32.mrb[0].mxu0
        %v1571 = vadd.f32 0.0, %v1570
        %v1572 = vpop.f32.mrb[0].mxu0
        %v1573 = vadd.f32 0.0, %v1572
        %1574 = vmatprep.mubr.bf16.mxu0 0
        %1575 = vmatmul.mubr.bf16.gmra.mrb[0].mxu0 %v1138
        %v1576 = vpop.f32.mrb[0].mxu0
        %v1577 = vadd.f32 0.0, %v1576
        %v1578 = vpop.f32.mrb[0].mxu0
        %v1579 = vadd.f32 0.0, %v1578
        %v1580 = vpop.f32.mrb[0].mxu0
        %v1581 = vadd.f32 0.0, %v1580
        %v1582 = vpop.f32.mrb[0].mxu0
        %v1583 = vadd.f32 0.0, %v1582
        %1584 = vmatprep.mubr.bf16.mxu0 0
        %1585 = vmatmul.mubr.bf16.gmra.mrb[0].mxu0 %v1141
        %v1586 = vpop.f32.mrb[0].mxu0
        %v1587 = vadd.f32 0.0, %v1586
        %v1588 = vpop.f32.mrb[0].mxu0
        %v1589 = vadd.f32 0.0, %v1588
        %v1590 = vpop.f32.mrb[0].mxu0
        %v1591 = vadd.f32 0.0, %v1590
        %v1592 = vpop.f32.mrb[0].mxu0
        %v1593 = vadd.f32 0.0, %v1592
        %1594 = vmatprep.mubr.bf16.mxu0 0
        %1595 = vmatmul.mubr.bf16.gmra.mrb[0].mxu0 %v1144
        %v1596 = vpop.f32.mrb[0].mxu0
        %v1597 = vadd.f32 0.0, %v1596
        %v1598 = vpop.f32.mrb[0].mxu0
        %v1599 = vadd.f32 0.0, %v1598
        %v1600 = vpop.f32.mrb[0].mxu0
        %v1601 = vadd.f32 0.0, %v1600
        %v1602 = vpop.f32.mrb[0].mxu0
        %v1603 = vadd.f32 0.0, %v1602
        %1604 = vmatprep.mubr.bf16.mxu0 0
        %1605 = vmatmul.mubr.bf16.gmra.mrb[0].mxu0 %v1147
        %v1606 = vpop.f32.mrb[0].mxu0
        %v1607 = vadd.f32 0.0, %v1606
        %v1608 = vpop.f32.mrb[0].mxu0
        %v1609 = vadd.f32 0.0, %v1608
        %v1610 = vpop.f32.mrb[0].mxu0
        %v1611 = vadd.f32 0.0, %v1610
        %v1612 = vpop.f32.mrb[0].mxu0
        %v1613 = vadd.f32 0.0, %v1612
        %1614 = vmatprep.mubr.bf16.mxu0 0
        %1615 = vmatmul.mubr.bf16.gmra.mrb[0].mxu0 %v1150
        %v1616 = vpop.f32.mrb[0].mxu0
        %v1617 = vadd.f32 0.0, %v1616
        %v1618 = vpop.f32.mrb[0].mxu0
        %v1619 = vadd.f32 0.0, %v1618
        %v1620 = vpop.f32.mrb[0].mxu0
        %v1621 = vadd.f32 0.0, %v1620
        %v1622 = vpop.f32.mrb[0].mxu0
        %v1623 = vadd.f32 0.0, %v1622
        %1624 = vmatprep.mubr.bf16.mxu0 0
        %1625 = vmatmul.mubr.bf16.gmra.mrb[0].mxu0 %v1153
        %v1626 = vpop.f32.mrb[0].mxu0
        %v1627 = vadd.f32 0.0, %v1626
        %v1628 = vpop.f32.mrb[0].mxu0
        %v1629 = vadd.f32 0.0, %v1628
        %v1630 = vpop.f32.mrb[0].mxu0
        %v1631 = vadd.f32 0.0, %v1630
        %v1632 = vpop.f32.mrb[0].mxu0
        %v1633 = vadd.f32 0.0, %v1632
        %1634 = vmatprep.mubr.bf16.mxu0 0
        %1635 = vmatmul.mubr.bf16.gmra.mrb[0].mxu0 %v1156
        %v1636 = vpop.f32.mrb[0].mxu0
        %v1637 = vadd.f32 0.0, %v1636
        %v1638 = vpop.f32.mrb[0].mxu0
        %v1639 = vadd.f32 0.0, %v1638
        %v1640 = vpop.f32.mrb[0].mxu0
        %v1641 = vadd.f32 0.0, %v1640
        %v1642 = vpop.f32.mrb[0].mxu0
        %v1643 = vadd.f32 0.0, %v1642
        %1644 = vmatprep.mubr.bf16.mxu0 0
        %1645 = vmatmul.mubr.bf16.gmra.mrb[0].mxu0 %v1159
        %v1646 = vpop.f32.mrb[0].mxu0
        %v1647 = vadd.f32 0.0, %v1646
        %v1648 = vpop.f32.mrb[0].mxu0
        %v1649 = vadd.f32 0.0, %v1648
        %v1650 = vpop.f32.mrb[0].mxu0
        %v1651 = vadd.f32 0.0, %v1650
        %v1652 = vpop.f32.mrb[0].mxu0
        %v1653 = vadd.f32 0.0, %v1652
        %1654 = vmatprep.mubr.bf16.mxu0 0
        %1655 = vmatmul.mubr.bf16.gmra.mrb[0].mxu0 %v1162
        %v1656 = vpop.f32.mrb[0].mxu0
        %v1657 = vadd.f32 0.0, %v1656
        %v1658 = vpop.f32.mrb[0].mxu0
        %v1659 = vadd.f32 0.0, %v1658
        %v1660 = vpop.f32.mrb[0].mxu0
        %v1661 = vadd.f32 0.0, %v1660
        %v1662 = vpop.f32.mrb[0].mxu0
        %v1663 = vadd.f32 0.0, %v1662
        %1664 = vmatprep.mubr.bf16.mxu0 0
        %1665 = vmatmul.mubr.bf16.gmra.mrb[0].mxu0 %v1165
        %v1666 = vpop.f32.mrb[0].mxu0
        %v1667 = vadd.f32 0.0, %v1666
        %v1668 = vpop.f32.mrb[0].mxu0
        %v1669 = vadd.f32 0.0, %v1668
        %v1670 = vpop.f32.mrb[0].mxu0
        %v1671 = vadd.f32 0.0, %v1670
        %v1672 = vpop.f32.mrb[0].mxu0
        %v1673 = vadd.f32 0.0, %v1672
        %1674 = vmatprep.mubr.bf16.mxu0 0
        %1675 = vmatmul.mubr.bf16.gmra.mrb[0].mxu0 %v1168
        %v1676 = vpop.f32.mrb[0].mxu0
        %v1677 = vadd.f32 0.0, %v1676
        %v1678 = vpop.f32.mrb[0].mxu0
        %v1679 = vadd.f32 0.0, %v1678
        %v1680 = vpop.f32.mrb[0].mxu0
        %v1681 = vadd.f32 0.0, %v1680
        %v1682 = vpop.f32.mrb[0].mxu0
        %v1683 = vadd.f32 0.0, %v1682
        %1684 = vmatprep.mubr.bf16.mxu0 0
        %1685 = vmatmul.mubr.bf16.gmra.mrb[0].mxu0 %v1171
        %v1686 = vpop.f32.mrb[0].mxu0
        %v1687 = vadd.f32 0.0, %v1686
        %v1688 = vpop.f32.mrb[0].mxu0
        %v1689 = vadd.f32 0.0, %v1688
        %v1690 = vpop.f32.mrb[0].mxu0
        %v1691 = vadd.f32 0.0, %v1690
        %v1692 = vpop.f32.mrb[0].mxu0
        %v1693 = vadd.f32 0.0, %v1692
        %1694 = vmatprep.mubr.bf16.mxu0 0
        %1695 = vmatmul.mubr.bf16.gmra.mrb[0].mxu0 %v1174
        %v1696 = vpop.f32.mrb[0].mxu0
        %v1697 = vadd.f32 0.0, %v1696
        %v1698 = vpop.f32.mrb[0].mxu0
        %v1699 = vadd.f32 0.0, %v1698
        %v1700 = vpop.f32.mrb[0].mxu0
        %v1701 = vadd.f32 0.0, %v1700
        %v1702 = vpop.f32.mrb[0].mxu0
        %v1703 = vadd.f32 0.0, %v1702
        %1704 = vmatprep.mubr.bf16.mxu0 0
        %1705 = vmatmul.mubr.bf16.gmra.mrb[0].mxu0 %v1177
        %v1706 = vpop.f32.mrb[0].mxu0
        %v1707 = vadd.f32 0.0, %v1706
        %v1708 = vpop.f32.mrb[0].mxu0
        %v1709 = vadd.f32 0.0, %v1708
        %v1710 = vpop.f32.mrb[0].mxu0
        %v1711 = vadd.f32 0.0, %v1710
        %v1712 = vpop.f32.mrb[0].mxu0
        %v1713 = vadd.f32 0.0, %v1712
        %1714 = vmatprep.mubr.bf16.mxu0 0
        %1715 = vmatmul.mubr.bf16.gmra.mrb[0].mxu0 %v1180
        %v1716 = vpop.f32.mrb[0].mxu0
        %v1717 = vadd.f32 0.0, %v1716
        %v1718 = vpop.f32.mrb[0].mxu0
        %v1719 = vadd.f32 0.0, %v1718
        %v1720 = vpop.f32.mrb[0].mxu0
        %v1721 = vadd.f32 0.0, %v1720
        %v1722 = vpop.f32.mrb[0].mxu0
        %v1723 = vadd.f32 0.0, %v1722
        %1724 = vmatprep.mubr.bf16.mxu0 0
        %1725 = vmatmul.mubr.bf16.gmra.mrb[0].mxu0 %v1183
        %v1726 = vpop.f32.mrb[0].mxu0
        %v1727 = vadd.f32 0.0, %v1726
        %v1728 = vpop.f32.mrb[0].mxu0
        %v1729 = vadd.f32 0.0, %v1728
        %v1730 = vpop.f32.mrb[0].mxu0
        %v1731 = vadd.f32 0.0, %v1730
        %v1732 = vpop.f32.mrb[0].mxu0
        %v1733 = vadd.f32 0.0, %v1732
        %1734 = vmatprep.mubr.bf16.mxu0 0
        %1735 = vmatmul.mubr.bf16.gmra.mrb[0].mxu0 %v1186
        %v1736 = vpop.f32.mrb[0].mxu0
        %v1737 = vadd.f32 0.0, %v1736
        %v1738 = vpop.f32.mrb[0].mxu0
        %v1739 = vadd.f32 0.0, %v1738
        %v1740 = vpop.f32.mrb[0].mxu0
        %v1741 = vadd.f32 0.0, %v1740
        %v1742 = vpop.f32.mrb[0].mxu0
        %v1743 = vadd.f32 0.0, %v1742
        %1744 = vmatprep.mubr.bf16.mxu0 0
        %1745 = vmatmul.mubr.bf16.gmra.mrb[0].mxu0 %v1189
        %v1746 = vpop.f32.mrb[0].mxu0
        %v1747 = vadd.f32 0.0, %v1746
        %v1748 = vpop.f32.mrb[0].mxu0
        %v1749 = vadd.f32 0.0, %v1748
        %v1750 = vpop.f32.mrb[0].mxu0
        %v1751 = vadd.f32 0.0, %v1750
        %v1752 = vpop.f32.mrb[0].mxu0
        %v1753 = vadd.f32 0.0, %v1752
        %1754 = vmatprep.mubr.bf16.mxu0 0
        %1755 = vmatmul.mubr.bf16.gmra.mrb[0].mxu0 %v1192
        %v1756 = vpop.f32.mrb[0].mxu0
        %v1757 = vadd.f32 0.0, %v1756
        %v1758 = vpop.f32.mrb[0].mxu0
        %v1759 = vadd.f32 0.0, %v1758
        %v1760 = vpop.f32.mrb[0].mxu0
        %v1761 = vadd.f32 0.0, %v1760
        %v1762 = vpop.f32.mrb[0].mxu0
        %v1763 = vadd.f32 0.0, %v1762
        %1764 = vmatprep.mubr.bf16.mxu0 0
        %1765 = vmatmul.mubr.bf16.gmra.mrb[0].mxu0 %v1195
        %v1766 = vpop.f32.mrb[0].mxu0
        %v1767 = vadd.f32 0.0, %v1766
        %v1768 = vpop.f32.mrb[0].mxu0
        %v1769 = vadd.f32 0.0, %v1768
        %v1770 = vpop.f32.mrb[0].mxu0
        %v1771 = vadd.f32 0.0, %v1770
        %v1772 = vpop.f32.mrb[0].mxu0
        %v1773 = vadd.f32 0.0, %v1772
        %1774 = vmatprep.mubr.bf16.mxu0 0
        %1775 = vmatmul.mubr.bf16.gmra.mrb[0].mxu0 %v1198
        %v1776 = vpop.f32.mrb[0].mxu0
        %v1777 = vadd.f32 0.0, %v1776
        %v1778 = vpop.f32.mrb[0].mxu0
        %v1779 = vadd.f32 0.0, %v1778
        %v1780 = vpop.f32.mrb[0].mxu0
        %v1781 = vadd.f32 0.0, %v1780
        %v1782 = vpop.f32.mrb[0].mxu0
        %v1783 = vadd.f32 0.0, %v1782
        %1784 = vmatprep.mubr.bf16.mxu0 0
        %1785 = vmatmul.mubr.bf16.gmra.mrb[0].mxu0 %v1201
        %v1786 = vpop.f32.mrb[0].mxu0
        %v1787 = vadd.f32 0.0, %v1786
        %v1788 = vpop.f32.mrb[0].mxu0
        %v1789 = vadd.f32 0.0, %v1788
        %v1790 = vpop.f32.mrb[0].mxu0
        %v1791 = vadd.f32 0.0, %v1790
        %v1792 = vpop.f32.mrb[0].mxu0
        %v1793 = vadd.f32 0.0, %v1792
        %1794 = vmatprep.mubr.bf16.mxu0 0
        %1795 = vmatmul.mubr.bf16.gmra.mrb[0].mxu0 %v1204
        %v1796 = vpop.f32.mrb[0].mxu0
        %v1797 = vadd.f32 0.0, %v1796
        %v1798 = vpop.f32.mrb[0].mxu0
        %v1799 = vadd.f32 0.0, %v1798
        %v1800 = vpop.f32.mrb[0].mxu0
        %v1801 = vadd.f32 0.0, %v1800
        %v1802 = vpop.f32.mrb[0].mxu0
        %v1803 = vadd.f32 0.0, %v1802
        %1804 = vmatprep.mubr.bf16.mxu0 0
        %1805 = vmatmul.mubr.bf16.gmra.mrb[0].mxu0 %v1207
        %v1806 = vpop.f32.mrb[0].mxu0
        %v1807 = vadd.f32 0.0, %v1806
        %v1808 = vpop.f32.mrb[0].mxu0
        %v1809 = vadd.f32 0.0, %v1808
        %v1810 = vpop.f32.mrb[0].mxu0
        %v1811 = vadd.f32 0.0, %v1810
        %v1812 = vpop.f32.mrb[0].mxu0
        %v1813 = vadd.f32 0.0, %v1812
        %1814 = vmatprep.mubr.bf16.mxu0 0
        %1815 = vmatmul.mubr.bf16.gmra.mrb[0].mxu0 %v1210
        %v1816 = vpop.f32.mrb[0].mxu0
        %v1817 = vadd.f32 0.0, %v1816
        %v1818 = vpop.f32.mrb[0].mxu0
        %v1819 = vadd.f32 0.0, %v1818
        %v1820 = vpop.f32.mrb[0].mxu0
        %v1821 = vadd.f32 0.0, %v1820
        %v1822 = vpop.f32.mrb[0].mxu0
        %v1823 = vadd.f32 0.0, %v1822
        %1824 = vmatprep.mubr.bf16.mxu0 0
        %1825 = vmatmul.mubr.bf16.gmra.mrb[0].mxu0 %v1213
        %v1826 = vpop.f32.mrb[0].mxu0
        %v1827 = vadd.f32 0.0, %v1826
        %v1828 = vpop.f32.mrb[0].mxu0
        %v1829 = vadd.f32 0.0, %v1828
        %v1830 = vpop.f32.mrb[0].mxu0
        %v1831 = vadd.f32 0.0, %v1830
        %v1832 = vpop.f32.mrb[0].mxu0
        %v1833 = vadd.f32 0.0, %v1832
        %1834 = vmatprep.mubr.bf16.mxu0 0
        %1835 = vmatmul.mubr.bf16.gmra.mrb[0].mxu0 %v1216
        %v1836 = vpop.f32.mrb[0].mxu0
        %v1837 = vadd.f32 0.0, %v1836
        %v1838 = vpop.f32.mrb[0].mxu0
        %v1839 = vadd.f32 0.0, %v1838
        %v1840 = vpop.f32.mrb[0].mxu0
        %v1841 = vadd.f32 0.0, %v1840
        %v1842 = vpop.f32.mrb[0].mxu0
        %v1843 = vadd.f32 0.0, %v1842
        %1844 = vmatprep.mubr.bf16.mxu0 0
        %1845 = vmatmul.mubr.bf16.gmra.mrb[0].mxu0 %v1219
        %v1846 = vpop.f32.mrb[0].mxu0
        %v1847 = vadd.f32 0.0, %v1846
        %v1848 = vpop.f32.mrb[0].mxu0
        %v1849 = vadd.f32 0.0, %v1848
        %v1850 = vpop.f32.mrb[0].mxu0
        %v1851 = vadd.f32 0.0, %v1850
        %v1852 = vpop.f32.mrb[0].mxu0
        %v1853 = vadd.f32 0.0, %v1852
        %1854 = vmatprep.mubr.bf16.mxu0 0
        %1855 = vmatmul.mubr.bf16.gmra.mrb[0].mxu0 %v1222
        %v1856 = vpop.f32.mrb[0].mxu0
        %v1857 = vadd.f32 0.0, %v1856
        %v1858 = vpop.f32.mrb[0].mxu0
        %v1859 = vadd.f32 0.0, %v1858
        %v1860 = vpop.f32.mrb[0].mxu0
        %v1861 = vadd.f32 0.0, %v1860
        %v1862 = vpop.f32.mrb[0].mxu0
        %v1863 = vadd.f32 0.0, %v1862
        %1864 = vmatprep.mubr.bf16.mxu0 0
        %1865 = vmatmul.mubr.bf16.gmra.mrb[0].mxu0 %v1225
        %v1866 = vpop.f32.mrb[0].mxu0
        %v1867 = vadd.f32 0.0, %v1866
        %v1868 = vpop.f32.mrb[0].mxu0
        %v1869 = vadd.f32 0.0, %v1868
        %v1870 = vpop.f32.mrb[0].mxu0
        %v1871 = vadd.f32 0.0, %v1870
        %v1872 = vpop.f32.mrb[0].mxu0
        %v1873 = vadd.f32 0.0, %v1872
        %1874 = vmatprep.mubr.bf16.mxu0 0
        %1875 = vmatmul.mubr.bf16.gmra.mrb[0].mxu0 %v1228
        %v1876 = vpop.f32.mrb[0].mxu0
        %v1877 = vadd.f32 0.0, %v1876
        %v1878 = vpop.f32.mrb[0].mxu0
        %v1879 = vadd.f32 0.0, %v1878
        %v1880 = vpop.f32.mrb[0].mxu0
        %v1881 = vadd.f32 0.0, %v1880
        %v1882 = vpop.f32.mrb[0].mxu0
        %v1883 = vadd.f32 0.0, %v1882
        %1884 = vmatprep.mubr.bf16.mxu0 0
        %1885 = vmatmul.mubr.bf16.gmra.mrb[0].mxu0 %v1231
        %v1886 = vpop.f32.mrb[0].mxu0
        %v1887 = vadd.f32 0.0, %v1886
        %v1888 = vpop.f32.mrb[0].mxu0
        %v1889 = vadd.f32 0.0, %v1888
        %v1890 = vpop.f32.mrb[0].mxu0
        %v1891 = vadd.f32 0.0, %v1890
        %v1892 = vpop.f32.mrb[0].mxu0
        %v1893 = vadd.f32 0.0, %v1892
        %1894 = vmatprep.mubr.bf16.mxu0 0
        %1895 = vmatmul.mubr.bf16.gmra.mrb[0].mxu0 %v1234
        %v1896 = vpop.f32.mrb[0].mxu0
        %v1897 = vadd.f32 0.0, %v1896
        %v1898 = vpop.f32.mrb[0].mxu0
        %v1899 = vadd.f32 0.0, %v1898
        %v1900 = vpop.f32.mrb[0].mxu0
        %v1901 = vadd.f32 0.0, %v1900
        %v1902 = vpop.f32.mrb[0].mxu0
        %v1903 = vadd.f32 0.0, %v1902
        %1904 = vmatprep.mubr.bf16.mxu0 0
        %1905 = vmatmul.mubr.bf16.gmra.mrb[0].mxu0 %v1237
        %v1906 = vpop.f32.mrb[0].mxu0
        %v1907 = vadd.f32 0.0, %v1906
        %v1908 = vpop.f32.mrb[0].mxu0
        %v1909 = vadd.f32 0.0, %v1908
        %v1910 = vpop.f32.mrb[0].mxu0
        %v1911 = vadd.f32 0.0, %v1910
        %v1912 = vpop.f32.mrb[0].mxu0
        %v1913 = vadd.f32 0.0, %v1912
        %1914 = vmatprep.mubr.bf16.mxu0 0
        %1915 = vmatmul.mubr.bf16.gmra.mrb[0].mxu0 %v1240
        %v1916 = vpop.f32.mrb[0].mxu0
        %v1917 = vadd.f32 0.0, %v1916
        %v1918 = vpop.f32.mrb[0].mxu0
        %v1919 = vadd.f32 0.0, %v1918
        %v1920 = vpop.f32.mrb[0].mxu0
        %v1921 = vadd.f32 0.0, %v1920
        %v1922 = vpop.f32.mrb[0].mxu0
        %v1923 = vadd.f32 0.0, %v1922
        %1924 = vmatprep.mubr.bf16.mxu0 0
        %1925 = vmatmul.mubr.bf16.gmra.mrb[0].mxu0 %v1243
        %v1926 = vpop.f32.mrb[0].mxu0
        %v1927 = vadd.f32 0.0, %v1926
        %v1928 = vpop.f32.mrb[0].mxu0
        %v1929 = vadd.f32 0.0, %v1928
        %v1930 = vpop.f32.mrb[0].mxu0
        %v1931 = vadd.f32 0.0, %v1930
        %v1932 = vpop.f32.mrb[0].mxu0
        %v1933 = vadd.f32 0.0, %v1932
        %1934 = vmatprep.mubr.bf16.mxu0 0
        %1935 = vmatmul.mubr.bf16.gmra.mrb[0].mxu0 %v1246
        %v1936 = vpop.f32.mrb[0].mxu0
        %v1937 = vadd.f32 0.0, %v1936
        %v1938 = vpop.f32.mrb[0].mxu0
        %v1939 = vadd.f32 0.0, %v1938
        %v1940 = vpop.f32.mrb[0].mxu0
        %v1941 = vadd.f32 0.0, %v1940
        %v1942 = vpop.f32.mrb[0].mxu0
        %v1943 = vadd.f32 0.0, %v1942
        %1944 = vmatprep.mubr.bf16.mxu0 0
        %1945 = vmatmul.mubr.bf16.gmra.mrb[0].mxu0 %v1249
        %v1946 = vpop.f32.mrb[0].mxu0
        %v1947 = vadd.f32 0.0, %v1946
        %v1948 = vpop.f32.mrb[0].mxu0
        %v1949 = vadd.f32 0.0, %v1948
        %v1950 = vpop.f32.mrb[0].mxu0
        %v1951 = vadd.f32 0.0, %v1950
        %v1952 = vpop.f32.mrb[0].mxu0
        %v1953 = vadd.f32 0.0, %v1952
        %1954 = vmatprep.mubr.bf16.mxu0 0
        %1955 = vmatmul.mubr.bf16.gmra.mrb[0].mxu0 %v1252
        %v1956 = vpop.f32.mrb[0].mxu0
        %v1957 = vadd.f32 0.0, %v1956
        %v1958 = vpop.f32.mrb[0].mxu0
        %v1959 = vadd.f32 0.0, %v1958
        %v1960 = vpop.f32.mrb[0].mxu0
        %v1961 = vadd.f32 0.0, %v1960
        %v1962 = vpop.f32.mrb[0].mxu0
        %v1963 = vadd.f32 0.0, %v1962
        %1964 = vmatprep.mubr.bf16.mxu0 0
        %1965 = vmatmul.mubr.bf16.gmra.mrb[0].mxu0 %v1255
        %v1966 = vpop.f32.mrb[0].mxu0
        %v1967 = vadd.f32 0.0, %v1966
        %v1968 = vpop.f32.mrb[0].mxu0
        %v1969 = vadd.f32 0.0, %v1968
        %v1970 = vpop.f32.mrb[0].mxu0
        %v1971 = vadd.f32 0.0, %v1970
        %v1972 = vpop.f32.mrb[0].mxu0
        %v1973 = vadd.f32 0.0, %v1972
        %1974 = vmatprep.mubr.bf16.mxu0 0
        %1975 = vmatmul.mubr.bf16.gmra.mrb[0].mxu0 %v1258
        %v1976 = vpop.f32.mrb[0].mxu0
        %v1977 = vadd.f32 0.0, %v1976
        %v1978 = vpop.f32.mrb[0].mxu0
        %v1979 = vadd.f32 0.0, %v1978
        %v1980 = vpop.f32.mrb[0].mxu0
        %v1981 = vadd.f32 0.0, %v1980
        %v1982 = vpop.f32.mrb[0].mxu0
        %v1983 = vadd.f32 0.0, %v1982
        %1984 = vmatprep.mubr.bf16.mxu0 0
        %1985 = vmatmul.mubr.bf16.gmra.mrb[0].mxu0 %v1261
        %v1986 = vpop.f32.mrb[0].mxu0
        %v1987 = vadd.f32 0.0, %v1986
        %v1988 = vpop.f32.mrb[0].mxu0
        %v1989 = vadd.f32 0.0, %v1988
        %v1990 = vpop.f32.mrb[0].mxu0
        %v1991 = vadd.f32 0.0, %v1990
        %v1992 = vpop.f32.mrb[0].mxu0
        %v1993 = vadd.f32 0.0, %v1992
        %1994 = vmatprep.mubr.bf16.mxu0 0
        %1995 = vmatmul.mubr.bf16.gmra.mrb[0].mxu0 %v1264
        %v1996 = vpop.f32.mrb[0].mxu0
        %v1997 = vadd.f32 0.0, %v1996
        %v1998 = vpop.f32.mrb[0].mxu0
        %v1999 = vadd.f32 0.0, %v1998
        %v2000 = vpop.f32.mrb[0].mxu0
        %v2001 = vadd.f32 0.0, %v2000
        %v2002 = vpop.f32.mrb[0].mxu0
        %v2003 = vadd.f32 0.0, %v2002
        %2004 = vmatprep.mubr.bf16.mxu0 0
        %2005 = vmatmul.mubr.bf16.gmra.mrb[0].mxu0 %v1267
        %v2006 = vpop.f32.mrb[0].mxu0
        %v2007 = vadd.f32 0.0, %v2006
        %v2008 = vpop.f32.mrb[0].mxu0
        %v2009 = vadd.f32 0.0, %v2008
        %v2010 = vpop.f32.mrb[0].mxu0
        %v2011 = vadd.f32 0.0, %v2010
        %v2012 = vpop.f32.mrb[0].mxu0
        %v2013 = vadd.f32 0.0, %v2012
        %2014 = vmatprep.mubr.bf16.mxu0 0
        %2015 = vmatmul.mubr.bf16.gmra.mrb[0].mxu0 %v1270
        %v2016 = vpop.f32.mrb[0].mxu0
        %v2017 = vadd.f32 0.0, %v2016
        %v2018 = vpop.f32.mrb[0].mxu0
        %v2019 = vadd.f32 0.0, %v2018
        %v2020 = vpop.f32.mrb[0].mxu0
        %v2021 = vadd.f32 0.0, %v2020
        %v2022 = vpop.f32.mrb[0].mxu0
        %v2023 = vadd.f32 0.0, %v2022
        %2024 = vmatprep.mubr.bf16.mxu0 0
        %2025 = vmatmul.mubr.bf16.gmra.mrb[0].mxu0 %v1273
        %v2026 = vpop.f32.mrb[0].mxu0
        %v2027 = vadd.f32 0.0, %v2026
        %v2028 = vpop.f32.mrb[0].mxu0
        %v2029 = vadd.f32 0.0, %v2028
        %v2030 = vpop.f32.mrb[0].mxu0
        %v2031 = vadd.f32 0.0, %v2030
        %v2032 = vpop.f32.mrb[0].mxu0
        %v2033 = vadd.f32 0.0, %v2032
        %2034 = vmatprep.mubr.bf16.mxu0 0
        %2035 = vmatmul.mubr.bf16.gmra.mrb[0].mxu0 %v1276
        %v2036 = vpop.f32.mrb[0].mxu0
        %v2037 = vadd.f32 0.0, %v2036
        %v2038 = vpop.f32.mrb[0].mxu0
        %v2039 = vadd.f32 0.0, %v2038
        %v2040 = vpop.f32.mrb[0].mxu0
        %v2041 = vadd.f32 0.0, %v2040
        %v2042 = vpop.f32.mrb[0].mxu0
        %v2043 = vadd.f32 0.0, %v2042
        %2044 = vmatprep.mubr.bf16.mxu0 0
        %2045 = vmatmul.mubr.bf16.gmra.mrb[0].mxu0 %v1279
        %v2046 = vpop.f32.mrb[0].mxu0
        %v2047 = vadd.f32 0.0, %v2046
        %v2048 = vpop.f32.mrb[0].mxu0
        %v2049 = vadd.f32 0.0, %v2048
        %v2050 = vpop.f32.mrb[0].mxu0
        %v2051 = vadd.f32 0.0, %v2050
        %v2052 = vpop.f32.mrb[0].mxu0
        %v2053 = vadd.f32 0.0, %v2052
        %2054 = vmatprep.mubr.bf16.mxu0 0
        %2055 = vmatmul.mubr.bf16.gmra.mrb[0].mxu0 %v1282
        %v2056 = vpop.f32.mrb[0].mxu0
        %v2057 = vadd.f32 0.0, %v2056
        %v2058 = vpop.f32.mrb[0].mxu0
        %v2059 = vadd.f32 0.0, %v2058
        %v2060 = vpop.f32.mrb[0].mxu0
        %v2061 = vadd.f32 0.0, %v2060
        %v2062 = vpop.f32.mrb[0].mxu0
        %v2063 = vadd.f32 0.0, %v2062
        %2064 = vmatprep.mubr.bf16.mxu0 0
        %2065 = vmatmul.mubr.bf16.gmra.mrb[0].mxu0 %v1285
        %v2066 = vpop.f32.mrb[0].mxu0
        %v2067 = vadd.f32 0.0, %v2066
        %v2068 = vpop.f32.mrb[0].mxu0
        %v2069 = vadd.f32 0.0, %v2068
        %v2070 = vpop.f32.mrb[0].mxu0
        %v2071 = vadd.f32 0.0, %v2070
        %v2072 = vpop.f32.mrb[0].mxu0
        %v2073 = vadd.f32 0.0, %v2072
        %2074 = vmatprep.mubr.bf16.mxu0 0
        %2075 = vmatmul.mubr.bf16.gmra.mrb[0].mxu0 %v1288
        %v2076 = vpop.f32.mrb[0].mxu0
        %v2077 = vadd.f32 0.0, %v2076
        %v2078 = vpop.f32.mrb[0].mxu0
        %v2079 = vadd.f32 0.0, %v2078
        %v2080 = vpop.f32.mrb[0].mxu0
        %v2081 = vadd.f32 0.0, %v2080
        %v2082 = vpop.f32.mrb[0].mxu0
        %v2083 = vadd.f32 0.0, %v2082
        %2084 = vmatprep.mubr.bf16.mxu0 0
        %2085 = vmatmul.mubr.bf16.gmra.mrb[0].mxu0 %v1291
        %v2086 = vpop.f32.mrb[0].mxu0
        %v2087 = vadd.f32 0.0, %v2086
        %v2088 = vpop.f32.mrb[0].mxu0
        %v2089 = vadd.f32 0.0, %v2088
        %v2090 = vpop.f32.mrb[0].mxu0
        %v2091 = vadd.f32 0.0, %v2090
        %v2092 = vpop.f32.mrb[0].mxu0
        %v2093 = vadd.f32 0.0, %v2092
        %2094 = vmatprep.mubr.bf16.mxu0 0
        %2095 = vmatmul.mubr.bf16.gmra.mrb[0].mxu0 %v1294
        %v2096 = vpop.f32.mrb[0].mxu0
        %v2097 = vadd.f32 0.0, %v2096
        %v2098 = vpop.f32.mrb[0].mxu0
        %v2099 = vadd.f32 0.0, %v2098
        %v2100 = vpop.f32.mrb[0].mxu0
        %v2101 = vadd.f32 0.0, %v2100
        %v2102 = vpop.f32.mrb[0].mxu0
        %v2103 = vadd.f32 0.0, %v2102
        %2104 = vmatprep.mubr.bf16.mxu0 0
        %2105 = vmatmul.mubr.bf16.gmra.mrb[0].mxu0 %v1297
        %v2106 = vpop.f32.mrb[0].mxu0
        %v2107 = vadd.f32 0.0, %v2106
        %v2108 = vpop.f32.mrb[0].mxu0
        %v2109 = vadd.f32 0.0, %v2108
        %v2110 = vpop.f32.mrb[0].mxu0
        %v2111 = vadd.f32 0.0, %v2110
        %v2112 = vpop.f32.mrb[0].mxu0
        %v2113 = vadd.f32 0.0, %v2112
        %2114 = vmatprep.mubr.bf16.mxu0 0
        %2115 = vmatmul.mubr.bf16.gmra.mrb[0].mxu0 %v1300
        %v2116 = vpop.f32.mrb[0].mxu0
        %v2117 = vadd.f32 0.0, %v2116
        %v2118 = vpop.f32.mrb[0].mxu0
        %v2119 = vadd.f32 0.0, %v2118
        %v2120 = vpop.f32.mrb[0].mxu0
        %v2121 = vadd.f32 0.0, %v2120
        %v2122 = vpop.f32.mrb[0].mxu0
        %v2123 = vadd.f32 0.0, %v2122
        %2124 = vmatprep.mubr.bf16.mxu0 0
        %2125 = vmatmul.mubr.bf16.gmra.mrb[0].mxu0 %v1303
        %v2126 = vpop.f32.mrb[0].mxu0
        %v2127 = vadd.f32 0.0, %v2126
        %v2128 = vpop.f32.mrb[0].mxu0
        %v2129 = vadd.f32 0.0, %v2128
        %v2130 = vpop.f32.mrb[0].mxu0
        %v2131 = vadd.f32 0.0, %v2130
        %v2132 = vpop.f32.mrb[0].mxu0
        %v2133 = vadd.f32 0.0, %v2132
        %2134 = vmatprep.mubr.bf16.mxu0 0
        %2135 = vmatmul.mubr.bf16.gmra.mrb[0].mxu0 %v1306
        %v2136 = vpop.f32.mrb[0].mxu0
        %v2137 = vadd.f32 0.0, %v2136
        %v2138 = vpop.f32.mrb[0].mxu0
        %v2139 = vadd.f32 0.0, %v2138
        %v2140 = vpop.f32.mrb[0].mxu0
        %v2141 = vadd.f32 0.0, %v2140
        %v2142 = vpop.f32.mrb[0].mxu0
        %v2143 = vadd.f32 0.0, %v2142
        %2144 = vmatprep.mubr.bf16.mxu0 0
        %2145 = vmatmul.mubr.bf16.gmra.mrb[0].mxu0 %v1309
        %v2146 = vpop.f32.mrb[0].mxu0
        %v2147 = vadd.f32 0.0, %v2146
        %v2148 = vpop.f32.mrb[0].mxu0
        %v2149 = vadd.f32 0.0, %v2148
        %v2150 = vpop.f32.mrb[0].mxu0
        %v2151 = vadd.f32 0.0, %v2150
        %v2152 = vpop.f32.mrb[0].mxu0
        %v2153 = vadd.f32 0.0, %v2152
        %2154 = vmatprep.mubr.bf16.mxu0 0
        %2155 = vmatmul.mubr.bf16.gmra.mrb[0].mxu0 %v1312
        %v2156 = vpop.f32.mrb[0].mxu0
        %v2157 = vadd.f32 0.0, %v2156
        %v2158 = vpop.f32.mrb[0].mxu0
        %v2159 = vadd.f32 0.0, %v2158
        %v2160 = vpop.f32.mrb[0].mxu0
        %v2161 = vadd.f32 0.0, %v2160
        %v2162 = vpop.f32.mrb[0].mxu0
        %v2163 = vadd.f32 0.0, %v2162
        %2164 = vmatprep.mubr.bf16.mxu0 0
        %2165 = vmatmul.mubr.bf16.gmra.mrb[0].mxu0 %v1315
        %v2166 = vpop.f32.mrb[0].mxu0
        %v2167 = vadd.f32 0.0, %v2166
        %v2168 = vpop.f32.mrb[0].mxu0
        %v2169 = vadd.f32 0.0, %v2168
        %v2170 = vpop.f32.mrb[0].mxu0
        %v2171 = vadd.f32 0.0, %v2170
        %v2172 = vpop.f32.mrb[0].mxu0
        %v2173 = vadd.f32 0.0, %v2172
        %2174 = vmatprep.mubr.bf16.mxu0 0
        %2175 = vmatmul.mubr.bf16.gmra.mrb[0].mxu0 %v1318
        %v2176 = vpop.f32.mrb[0].mxu0
        %v2177 = vadd.f32 0.0, %v2176
        %v2178 = vpop.f32.mrb[0].mxu0
        %v2179 = vadd.f32 0.0, %v2178
        %v2180 = vpop.f32.mrb[0].mxu0
        %v2181 = vadd.f32 0.0, %v2180
        %v2182 = vpop.f32.mrb[0].mxu0
        %v2183 = vadd.f32 0.0, %v2182
        %2184 = vmatprep.mubr.bf16.mxu0 0
        %2185 = vmatmul.mubr.bf16.gmra.mrb[0].mxu0 %v1321
        %v2186 = vpop.f32.mrb[0].mxu0
        %v2187 = vadd.f32 0.0, %v2186
        %v2188 = vpop.f32.mrb[0].mxu0
        %v2189 = vadd.f32 0.0, %v2188
        %v2190 = vpop.f32.mrb[0].mxu0
        %v2191 = vadd.f32 0.0, %v2190
        %v2192 = vpop.f32.mrb[0].mxu0
        %v2193 = vadd.f32 0.0, %v2192
        %2194 = vmatprep.mubr.bf16.mxu0 0
        %2195 = vmatmul.mubr.bf16.gmra.mrb[0].mxu0 %v1324
        %v2196 = vpop.f32.mrb[0].mxu0
        %v2197 = vadd.f32 0.0, %v2196
        %v2198 = vpop.f32.mrb[0].mxu0
        %v2199 = vadd.f32 0.0, %v2198
        %v2200 = vpop.f32.mrb[0].mxu0
        %v2201 = vadd.f32 0.0, %v2200
        %v2202 = vpop.f32.mrb[0].mxu0
        %v2203 = vadd.f32 0.0, %v2202
        %2204 = vmatprep.mubr.bf16.mxu0 0
        %2205 = vmatmul.mubr.bf16.gmra.mrb[0].mxu0 %v1327
        %v2206 = vpop.f32.mrb[0].mxu0
        %v2207 = vadd.f32 0.0, %v2206
        %v2208 = vpop.f32.mrb[0].mxu0
        %v2209 = vadd.f32 0.0, %v2208
        %v2210 = vpop.f32.mrb[0].mxu0
        %v2211 = vadd.f32 0.0, %v2210
        %v2212 = vpop.f32.mrb[0].mxu0
        %v2213 = vadd.f32 0.0, %v2212
        %2214 = vmatprep.mubr.bf16.mxu0 0
        %2215 = vmatmul.mubr.bf16.gmra.mrb[0].mxu0 %v1330
        %v2216 = vpop.f32.mrb[0].mxu0
        %v2217 = vadd.f32 0.0, %v2216
        %v2218 = vpop.f32.mrb[0].mxu0
        %v2219 = vadd.f32 0.0, %v2218
        %v2220 = vpop.f32.mrb[0].mxu0
        %v2221 = vadd.f32 0.0, %v2220
        %v2222 = vpop.f32.mrb[0].mxu0
        %v2223 = vadd.f32 0.0, %v2222
        %2224 = vmatprep.mubr.bf16.mxu0 0
        %2225 = vmatmul.mubr.bf16.gmra.mrb[0].mxu0 %v1333
        %v2226 = vpop.f32.mrb[0].mxu0
        %v2227 = vadd.f32 0.0, %v2226
        %v2228 = vpop.f32.mrb[0].mxu0
        %v2229 = vadd.f32 0.0, %v2228
        %v2230 = vpop.f32.mrb[0].mxu0
        %v2231 = vadd.f32 0.0, %v2230
        %v2232 = vpop.f32.mrb[0].mxu0
        %v2233 = vadd.f32 0.0, %v2232
        %2234 = vmatprep.mubr.bf16.mxu0 0
        %2235 = vmatmul.mubr.bf16.gmra.mrb[0].mxu0 %v1336
        %v2236 = vpop.f32.mrb[0].mxu0
        %v2237 = vadd.f32 0.0, %v2236
        %v2238 = vpop.f32.mrb[0].mxu0
        %v2239 = vadd.f32 0.0, %v2238
        %v2240 = vpop.f32.mrb[0].mxu0
        %v2241 = vadd.f32 0.0, %v2240
        %v2242 = vpop.f32.mrb[0].mxu0
        %v2243 = vadd.f32 0.0, %v2242
        %2244 = vmatprep.mubr.bf16.mxu0 0
        %2245 = vmatmul.mubr.bf16.gmra.mrb[0].mxu0 %v1339
        %v2246 = vpop.f32.mrb[0].mxu0
        %v2247 = vadd.f32 0.0, %v2246
        %v2248 = vpop.f32.mrb[0].mxu0
        %v2249 = vadd.f32 0.0, %v2248
        %v2250 = vpop.f32.mrb[0].mxu0
        %v2251 = vadd.f32 0.0, %v2250
        %v2252 = vpop.f32.mrb[0].mxu0
        %v2253 = vadd.f32 0.0, %v2252
        %2254 = vmatprep.mubr.bf16.mxu0 0
        %2255 = vmatmul.mubr.bf16.gmra.mrb[0].mxu0 %v1342
        %v2256 = vpop.f32.mrb[0].mxu0
        %v2257 = vadd.f32 0.0, %v2256
        %v2258 = vpop.f32.mrb[0].mxu0
        %v2259 = vadd.f32 0.0, %v2258
        %v2260 = vpop.f32.mrb[0].mxu0
        %v2261 = vadd.f32 0.0, %v2260
        %v2262 = vpop.f32.mrb[0].mxu0
        %v2263 = vadd.f32 0.0, %v2262
        %2264 = vmatprep.mubr.bf16.mxu0 0
        %2265 = vmatmul.mubr.bf16.gmra.mrb[0].mxu0 %v1345
        %v2266 = vpop.f32.mrb[0].mxu0
        %v2267 = vadd.f32 0.0, %v2266
        %v2268 = vpop.f32.mrb[0].mxu0
        %v2269 = vadd.f32 0.0, %v2268
        %v2270 = vpop.f32.mrb[0].mxu0
        %v2271 = vadd.f32 0.0, %v2270
        %v2272 = vpop.f32.mrb[0].mxu0
        %v2273 = vadd.f32 0.0, %v2272
        %2274 = vmatprep.mubr.bf16.mxu0 0
        %2275 = vmatmul.mubr.bf16.gmra.mrb[0].mxu0 %v1348
        %v2276 = vpop.f32.mrb[0].mxu0
        %v2277 = vadd.f32 0.0, %v2276
        %v2278 = vpop.f32.mrb[0].mxu0
        %v2279 = vadd.f32 0.0, %v2278
        %v2280 = vpop.f32.mrb[0].mxu0
        %v2281 = vadd.f32 0.0, %v2280
        %v2282 = vpop.f32.mrb[0].mxu0
        %v2283 = vadd.f32 0.0, %v2282
        %2284 = vmatprep.mubr.bf16.mxu0 0
        %2285 = vmatmul.mubr.bf16.gmra.mrb[0].mxu0 %v1351
        %v2286 = vpop.f32.mrb[0].mxu0
        %v2287 = vadd.f32 0.0, %v2286
        %v2288 = vpop.f32.mrb[0].mxu0
        %v2289 = vadd.f32 0.0, %v2288
        %v2290 = vpop.f32.mrb[0].mxu0
        %v2291 = vadd.f32 0.0, %v2290
        %v2292 = vpop.f32.mrb[0].mxu0
        %v2293 = vadd.f32 0.0, %v2292
        %2294 = vmatprep.mubr.bf16.mxu0 0
        %2295 = vmatmul.mubr.bf16.gmra.mrb[0].mxu0 %v1354
        %v2296 = vpop.f32.mrb[0].mxu0
        %v2297 = vadd.f32 0.0, %v2296
        %v2298 = vpop.f32.mrb[0].mxu0
        %v2299 = vadd.f32 0.0, %v2298
        %v2300 = vpop.f32.mrb[0].mxu0
        %v2301 = vadd.f32 0.0, %v2300
        %v2302 = vpop.f32.mrb[0].mxu0
        %v2303 = vadd.f32 0.0, %v2302
        %2304 = vmatprep.mubr.bf16.mxu0 0
        %2305 = vmatmul.mubr.bf16.gmra.mrb[0].mxu0 %v1357
        %v2306 = vpop.f32.mrb[0].mxu0
        %v2307 = vadd.f32 0.0, %v2306
        %v2308 = vpop.f32.mrb[0].mxu0
        %v2309 = vadd.f32 0.0, %v2308
        %v2310 = vpop.f32.mrb[0].mxu0
        %v2311 = vadd.f32 0.0, %v2310
        %v2312 = vpop.f32.mrb[0].mxu0
        %v2313 = vadd.f32 0.0, %v2312
        %2314 = vmatprep.mubr.bf16.mxu0 0
        %2315 = vmatmul.mubr.bf16.gmra.mrb[0].mxu0 %v1360
        %v2316 = vpop.f32.mrb[0].mxu0
        %v2317 = vadd.f32 0.0, %v2316
        %v2318 = vpop.f32.mrb[0].mxu0
        %v2319 = vadd.f32 0.0, %v2318
        %v2320 = vpop.f32.mrb[0].mxu0
        %v2321 = vadd.f32 0.0, %v2320
        %v2322 = vpop.f32.mrb[0].mxu0
        %v2323 = vadd.f32 0.0, %v2322
        %2324 = vmatprep.mubr.bf16.mxu0 0
        %2325 = vmatmul.mubr.bf16.gmra.mrb[0].mxu0 %v1363
        %v2326 = vpop.f32.mrb[0].mxu0
        %v2327 = vadd.f32 0.0, %v2326
        %v2328 = vpop.f32.mrb[0].mxu0
        %v2329 = vadd.f32 0.0, %v2328
        %v2330 = vpop.f32.mrb[0].mxu0
        %v2331 = vadd.f32 0.0, %v2330
        %v2332 = vpop.f32.mrb[0].mxu0
        %v2333 = vadd.f32 0.0, %v2332
        %2334 = vmatprep.mubr.bf16.mxu0 0
        %2335 = vmatmul.mubr.bf16.gmra.mrb[0].mxu0 %v1366
        %v2336 = vpop.f32.mrb[0].mxu0
        %v2337 = vadd.f32 0.0, %v2336
        %v2338 = vpop.f32.mrb[0].mxu0
        %v2339 = vadd.f32 0.0, %v2338
        %v2340 = vpop.f32.mrb[0].mxu0
        %v2341 = vadd.f32 0.0, %v2340
        %v2342 = vpop.f32.mrb[0].mxu0
        %v2343 = vadd.f32 0.0, %v2342
        %2344 = vmatprep.mubr.bf16.mxu0 0
        %2345 = vmatmul.mubr.bf16.gmra.mrb[0].mxu0 %v1369
        %v2346 = vpop.f32.mrb[0].mxu0
        %v2347 = vadd.f32 0.0, %v2346
        %v2348 = vpop.f32.mrb[0].mxu0
        %v2349 = vadd.f32 0.0, %v2348
        %v2350 = vpop.f32.mrb[0].mxu0
        %v2351 = vadd.f32 0.0, %v2350
        %v2352 = vpop.f32.mrb[0].mxu0
        %v2353 = vadd.f32 0.0, %v2352
        %2354 = vmatprep.mubr.bf16.mxu0 0
        %2355 = vmatmul.mubr.bf16.gmra.mrb[0].mxu0 %v1372
        %v2356 = vpop.f32.mrb[0].mxu0
        %v2357 = vadd.f32 0.0, %v2356
        %v2358 = vpop.f32.mrb[0].mxu0
        %v2359 = vadd.f32 0.0, %v2358
        %v2360 = vpop.f32.mrb[0].mxu0
        %v2361 = vadd.f32 0.0, %v2360
        %v2362 = vpop.f32.mrb[0].mxu0
        %v2363 = vadd.f32 0.0, %v2362
        %2364 = vmatprep.mubr.bf16.mxu0 0
        %2365 = vmatmul.mubr.bf16.gmra.mrb[0].mxu0 %v1375
        %v2366 = vpop.f32.mrb[0].mxu0
        %v2367 = vadd.f32 0.0, %v2366
        %v2368 = vpop.f32.mrb[0].mxu0
        %v2369 = vadd.f32 0.0, %v2368
        %v2370 = vpop.f32.mrb[0].mxu0
        %v2371 = vadd.f32 0.0, %v2370
        %v2372 = vpop.f32.mrb[0].mxu0
        %v2373 = vadd.f32 0.0, %v2372
        %2374 = vmatprep.mubr.bf16.mxu0 0
        %2375 = vmatmul.mubr.bf16.gmra.mrb[0].mxu0 %v1378
        %v2376 = vpop.f32.mrb[0].mxu0
        %v2377 = vadd.f32 0.0, %v2376
        %v2378 = vpop.f32.mrb[0].mxu0
        %v2379 = vadd.f32 0.0, %v2378
        %v2380 = vpop.f32.mrb[0].mxu0
        %v2381 = vadd.f32 0.0, %v2380
        %v2382 = vpop.f32.mrb[0].mxu0
        %v2383 = vadd.f32 0.0, %v2382
        %2384 = vmatprep.mubr.bf16.mxu0 0
        %2385 = vmatmul.mubr.bf16.gmra.mrb[0].mxu0 %v1381
        %v2386 = vpop.f32.mrb[0].mxu0
        %v2387 = vadd.f32 0.0, %v2386
        %v2388 = vpop.f32.mrb[0].mxu0
        %v2389 = vadd.f32 0.0, %v2388
        %v2390 = vpop.f32.mrb[0].mxu0
        %v2391 = vadd.f32 0.0, %v2390
        %v2392 = vpop.f32.mrb[0].mxu0
        %v2393 = vadd.f32 0.0, %v2392
        %2394 = vmatprep.mubr.bf16.mxu0 0
        %2395 = vmatmul.mubr.bf16.gmra.mrb[0].mxu0 %v1384
        %v2396 = vpop.f32.mrb[0].mxu0
        %v2397 = vadd.f32 0.0, %v2396
        %v2398 = vpop.f32.mrb[0].mxu0
        %v2399 = vadd.f32 0.0, %v2398
        %v2400 = vpop.f32.mrb[0].mxu0
        %v2401 = vadd.f32 0.0, %v2400
        %v2402 = vpop.f32.mrb[0].mxu0
        %v2403 = vadd.f32 0.0, %v2402
        %2404 = vmatprep.mubr.bf16.mxu0 0
        %2405 = vmatmul.mubr.bf16.gmra.mrb[0].mxu0 %v1387
        %v2406 = vpop.f32.mrb[0].mxu0
        %v2407 = vadd.f32 0.0, %v2406
        %v2408 = vpop.f32.mrb[0].mxu0
        %v2409 = vadd.f32 0.0, %v2408
        %v2410 = vpop.f32.mrb[0].mxu0
        %v2411 = vadd.f32 0.0, %v2410
        %v2412 = vpop.f32.mrb[0].mxu0
        %v2413 = vadd.f32 0.0, %v2412
        %2414 = vmatprep.mubr.bf16.mxu0 0
        %2415 = vmatmul.mubr.bf16.gmra.mrb[0].mxu0 %v1390
        %v2416 = vpop.f32.mrb[0].mxu0
        %v2417 = vadd.f32 0.0, %v2416
        %v2418 = vpop.f32.mrb[0].mxu0
        %v2419 = vadd.f32 0.0, %v2418
        %v2420 = vpop.f32.mrb[0].mxu0
        %v2421 = vadd.f32 0.0, %v2420
        %v2422 = vpop.f32.mrb[0].mxu0
        %v2423 = vadd.f32 0.0, %v2422
        %2424 = vmatprep.mubr.bf16.mxu0 0
        %2425 = vmatmul.mubr.bf16.gmra.mrb[0].mxu0 %v1393
        %v2426 = vpop.f32.mrb[0].mxu0
        %v2427 = vadd.f32 0.0, %v2426
        %v2428 = vpop.f32.mrb[0].mxu0
        %v2429 = vadd.f32 0.0, %v2428
        %v2430 = vpop.f32.mrb[0].mxu0
        %v2431 = vadd.f32 0.0, %v2430
        %v2432 = vpop.f32.mrb[0].mxu0
        %v2433 = vadd.f32 0.0, %v2432
        %2434 = vmatprep.mubr.bf16.mxu0 0
        %2435 = vmatmul.mubr.bf16.gmra.mrb[0].mxu0 %v1396
        %v2436 = vpop.f32.mrb[0].mxu0
        %v2437 = vadd.f32 0.0, %v2436
        %v2438 = vpop.f32.mrb[0].mxu0
        %v2439 = vadd.f32 0.0, %v2438
        %v2440 = vpop.f32.mrb[0].mxu0
        %v2441 = vadd.f32 0.0, %v2440
        %v2442 = vpop.f32.mrb[0].mxu0
        %v2443 = vadd.f32 0.0, %v2442
        %2444 = vmatprep.mubr.bf16.mxu0 0
        %2445 = vmatmul.mubr.bf16.gmra.mrb[0].mxu0 %v1399
        %v2446 = vpop.f32.mrb[0].mxu0
        %v2447 = vadd.f32 0.0, %v2446
        %v2448 = vpop.f32.mrb[0].mxu0
        %v2449 = vadd.f32 0.0, %v2448
        %v2450 = vpop.f32.mrb[0].mxu0
        %v2451 = vadd.f32 0.0, %v2450
        %v2452 = vpop.f32.mrb[0].mxu0
        %v2453 = vadd.f32 0.0, %v2452
        %2454 = vmatprep.mubr.bf16.mxu0 0
        %2455 = vmatmul.mubr.bf16.gmra.mrb[0].mxu0 %v1402
        %v2456 = vpop.f32.mrb[0].mxu0
        %v2457 = vadd.f32 0.0, %v2456
        %v2458 = vpop.f32.mrb[0].mxu0
        %v2459 = vadd.f32 0.0, %v2458
        %v2460 = vpop.f32.mrb[0].mxu0
        %v2461 = vadd.f32 0.0, %v2460
        %v2462 = vpop.f32.mrb[0].mxu0
        %v2463 = vadd.f32 0.0, %v2462
        %2464 = vmatprep.mubr.bf16.mxu0 0
        %2465 = vmatmul.mubr.bf16.gmra.mrb[0].mxu0 %v1405
        %v2466 = vpop.f32.mrb[0].mxu0
        %v2467 = vadd.f32 0.0, %v2466
        %v2468 = vpop.f32.mrb[0].mxu0
        %v2469 = vadd.f32 0.0, %v2468
        %v2470 = vpop.f32.mrb[0].mxu0
        %v2471 = vadd.f32 0.0, %v2470
        %v2472 = vpop.f32.mrb[0].mxu0
        %v2473 = vadd.f32 0.0, %v2472
        %2474 = vmatprep.mubr.bf16.mxu0 0
        %2475 = vmatmul.mubr.bf16.gmra.mrb[0].mxu0 %v1408
        %v2476 = vpop.f32.mrb[0].mxu0
        %v2477 = vadd.f32 0.0, %v2476
        %v2478 = vpop.f32.mrb[0].mxu0
        %v2479 = vadd.f32 0.0, %v2478
        %v2480 = vpop.f32.mrb[0].mxu0
        %v2481 = vadd.f32 0.0, %v2480
        %v2482 = vpop.f32.mrb[0].mxu0
        %v2483 = vadd.f32 0.0, %v2482
        %2484 = vmatprep.mubr.bf16.mxu0 0
        %2485 = vmatmul.mubr.bf16.gmra.mrb[0].mxu0 %v1411
        %v2486 = vpop.f32.mrb[0].mxu0
        %v2487 = vadd.f32 0.0, %v2486
        %v2488 = vpop.f32.mrb[0].mxu0
        %v2489 = vadd.f32 0.0, %v2488
        %v2490 = vpop.f32.mrb[0].mxu0
        %v2491 = vadd.f32 0.0, %v2490
        %v2492 = vpop.f32.mrb[0].mxu0
        %v2493 = vadd.f32 0.0, %v2492
        %2494 = vmatprep.mubr.bf16.mxu0 0
        %2495 = vmatmul.mubr.bf16.gmra.mrb[0].mxu0 %v1414
        %v2496 = vpop.f32.mrb[0].mxu0
        %v2497 = vadd.f32 0.0, %v2496
        %v2498 = vpop.f32.mrb[0].mxu0
        %v2499 = vadd.f32 0.0, %v2498
        %v2500 = vpop.f32.mrb[0].mxu0
        %v2501 = vadd.f32 0.0, %v2500
        %v2502 = vpop.f32.mrb[0].mxu0
        %v2503 = vadd.f32 0.0, %v2502
        %2504 = vmatprep.mubr.bf16.mxu0 0
        %2505 = vmatmul.mubr.bf16.gmra.mrb[0].mxu0 %v1417
        %v2506 = vpop.f32.mrb[0].mxu0
        %v2507 = vadd.f32 0.0, %v2506
        %v2508 = vpop.f32.mrb[0].mxu0
        %v2509 = vadd.f32 0.0, %v2508
        %v2510 = vpop.f32.mrb[0].mxu0
        %v2511 = vadd.f32 0.0, %v2510
        %v2512 = vpop.f32.mrb[0].mxu0
        %v2513 = vadd.f32 0.0, %v2512
        %2514 = vmatprep.mubr.bf16.mxu0 0
        %2515 = vmatmul.mubr.bf16.gmra.mrb[0].mxu0 %v1420
        %v2516 = vpop.f32.mrb[0].mxu0
        %v2517 = vadd.f32 0.0, %v2516
        %v2518 = vpop.f32.mrb[0].mxu0
        %v2519 = vadd.f32 0.0, %v2518
        %v2520 = vpop.f32.mrb[0].mxu0
        %v2521 = vadd.f32 0.0, %v2520
        %v2522 = vpop.f32.mrb[0].mxu0
        %v2523 = vadd.f32 0.0, %v2522
        %2524 = vmatprep.mubr.bf16.mxu0 0
        %2525 = vmatmul.mubr.bf16.gmra.mrb[0].mxu0 %v1423
        %v2526 = vpop.f32.mrb[0].mxu0
        %v2527 = vadd.f32 0.0, %v2526
        %v2528 = vpop.f32.mrb[0].mxu0
        %v2529 = vadd.f32 0.0, %v2528
        %v2530 = vpop.f32.mrb[0].mxu0
        %v2531 = vadd.f32 0.0, %v2530
        %v2532 = vpop.f32.mrb[0].mxu0
        %v2533 = vadd.f32 0.0, %v2532
        %2534 = vmatprep.mubr.bf16.mxu0 0
        %2535 = vmatmul.mubr.bf16.gmra.mrb[0].mxu0 %v1426
        %v2536 = vpop.f32.mrb[0].mxu0
        %v2537 = vadd.f32 0.0, %v2536
        %v2538 = vpop.f32.mrb[0].mxu0
        %v2539 = vadd.f32 0.0, %v2538
        %v2540 = vpop.f32.mrb[0].mxu0
        %v2541 = vadd.f32 0.0, %v2540
        %v2542 = vpop.f32.mrb[0].mxu0
        %v2543 = vadd.f32 0.0, %v2542
        %2544 = vmatprep.mubr.bf16.mxu0 0
        %2545 = vmatmul.mubr.bf16.gmra.mrb[0].mxu0 %v1429
        %v2546 = vpop.f32.mrb[0].mxu0
        %v2547 = vadd.f32 0.0, %v2546
        %v2548 = vpop.f32.mrb[0].mxu0
        %v2549 = vadd.f32 0.0, %v2548
        %v2550 = vpop.f32.mrb[0].mxu0
        %v2551 = vadd.f32 0.0, %v2550
        %v2552 = vpop.f32.mrb[0].mxu0
        %v2553 = vadd.f32 0.0, %v2552
        %2554 = vmatprep.mubr.bf16.mxu0 0
        %2555 = vmatmul.mubr.bf16.gmra.mrb[0].mxu0 %v1432
        %v2556 = vpop.f32.mrb[0].mxu0
        %v2557 = vadd.f32 0.0, %v2556
        %v2558 = vpop.f32.mrb[0].mxu0
        %v2559 = vadd.f32 0.0, %v2558
        %v2560 = vpop.f32.mrb[0].mxu0
        %v2561 = vadd.f32 0.0, %v2560
        %v2562 = vpop.f32.mrb[0].mxu0
        %v2563 = vadd.f32 0.0, %v2562
        %2564 = vmatprep.mubr.bf16.mxu0 0
        %2565 = vmatmul.mubr.bf16.gmra.mrb[0].mxu0 %v1435
        %v2566 = vpop.f32.mrb[0].mxu0
        %v2567 = vadd.f32 0.0, %v2566
        %v2568 = vpop.f32.mrb[0].mxu0
        %v2569 = vadd.f32 0.0, %v2568
        %v2570 = vpop.f32.mrb[0].mxu0
        %v2571 = vadd.f32 0.0, %v2570
        %v2572 = vpop.f32.mrb[0].mxu0
        %v2573 = vadd.f32 0.0, %v2572
        %2574 = vmatprep.mubr.bf16.mxu0 0
        %2575 = vmatmul.mubr.bf16.gmra.mrb[0].mxu0 %v1438
        %v2576 = vpop.f32.mrb[0].mxu0
        %v2577 = vadd.f32 0.0, %v2576
        %v2578 = vpop.f32.mrb[0].mxu0
        %v2579 = vadd.f32 0.0, %v2578
        %v2580 = vpop.f32.mrb[0].mxu0
        %v2581 = vadd.f32 0.0, %v2580
        %v2582 = vpop.f32.mrb[0].mxu0
        %v2583 = vadd.f32 0.0, %v2582
        %2584 = vmatprep.mubr.bf16.mxu0 0
        %2585 = vmatmul.mubr.bf16.gmra.mrb[0].mxu0 %v1441
        %v2586 = vpop.f32.mrb[0].mxu0
        %v2587 = vadd.f32 0.0, %v2586
        %v2588 = vpop.f32.mrb[0].mxu0
        %v2589 = vadd.f32 0.0, %v2588
        %v2590 = vpop.f32.mrb[0].mxu0
        %v2591 = vadd.f32 0.0, %v2590
        %v2592 = vpop.f32.mrb[0].mxu0
        %v2593 = vadd.f32 0.0, %v2592
        %2594 = vmatprep.mubr.bf16.mxu0 0
        %2595 = vmatmul.mubr.bf16.gmra.mrb[0].mxu0 %v1444
        %v2596 = vpop.f32.mrb[0].mxu0
        %v2597 = vadd.f32 0.0, %v2596
        %v2598 = vpop.f32.mrb[0].mxu0
        %v2599 = vadd.f32 0.0, %v2598
        %v2600 = vpop.f32.mrb[0].mxu0
        %v2601 = vadd.f32 0.0, %v2600
        %v2602 = vpop.f32.mrb[0].mxu0
        %v2603 = vadd.f32 0.0, %v2602
        %2604 = vmatprep.mubr.bf16.mxu0 0
        %2605 = vmatmul.mubr.bf16.gmra.mrb[0].mxu0 %v1447
        %v2606 = vpop.f32.mrb[0].mxu0
        %v2607 = vadd.f32 0.0, %v2606
        %v2608 = vpop.f32.mrb[0].mxu0
        %v2609 = vadd.f32 0.0, %v2608
        %v2610 = vpop.f32.mrb[0].mxu0
        %v2611 = vadd.f32 0.0, %v2610
        %v2612 = vpop.f32.mrb[0].mxu0
        %v2613 = vadd.f32 0.0, %v2612
        %2614 = vmatprep.mubr.bf16.mxu0 0
        %2615 = vmatmul.mubr.bf16.gmra.mrb[0].mxu0 %v1450
        %v2616 = vpop.f32.mrb[0].mxu0
        %v2617 = vadd.f32 0.0, %v2616
        %v2618 = vpop.f32.mrb[0].mxu0
        %v2619 = vadd.f32 0.0, %v2618
        %v2620 = vpop.f32.mrb[0].mxu0
        %v2621 = vadd.f32 0.0, %v2620
        %v2622 = vpop.f32.mrb[0].mxu0
        %v2623 = vadd.f32 0.0, %v2622
        %2624 = vmatprep.mubr.bf16.mxu0 0
        %2625 = vmatmul.mubr.bf16.gmra.mrb[0].mxu0 %v1453
        %v2626 = vpop.f32.mrb[0].mxu0
        %v2627 = vadd.f32 0.0, %v2626
        %v2628 = vpop.f32.mrb[0].mxu0
        %v2629 = vadd.f32 0.0, %v2628
        %v2630 = vpop.f32.mrb[0].mxu0
        %v2631 = vadd.f32 0.0, %v2630
        %v2632 = vpop.f32.mrb[0].mxu0
        %v2633 = vadd.f32 0.0, %v2632
        %2634 = vmatprep.mubr.bf16.mxu0 0
        %2635 = vmatmul.mubr.bf16.gmra.mrb[0].mxu0 %v1456
        %v2636 = vpop.f32.mrb[0].mxu0
        %v2637 = vadd.f32 0.0, %v2636
        %v2638 = vpop.f32.mrb[0].mxu0
        %v2639 = vadd.f32 0.0, %v2638
        %v2640 = vpop.f32.mrb[0].mxu0
        %v2641 = vadd.f32 0.0, %v2640
        %v2642 = vpop.f32.mrb[0].mxu0
        %v2643 = vadd.f32 0.0, %v2642
        %2644 = vmatprep.mubr.bf16.mxu0 0
        %2645 = vmatmul.mubr.bf16.gmra.mrb[0].mxu0 %v1459
        %v2646 = vpop.f32.mrb[0].mxu0
        %v2647 = vadd.f32 0.0, %v2646
        %v2648 = vpop.f32.mrb[0].mxu0
        %v2649 = vadd.f32 0.0, %v2648
        %v2650 = vpop.f32.mrb[0].mxu0
        %v2651 = vadd.f32 0.0, %v2650
        %v2652 = vpop.f32.mrb[0].mxu0
        %v2653 = vadd.f32 0.0, %v2652
        %2654 = vmatprep.mubr.bf16.mxu0 0
        %2655 = vmatmul.mubr.bf16.gmra.mrb[0].mxu0 %v1462
        %v2656 = vpop.f32.mrb[0].mxu0
        %v2657 = vadd.f32 0.0, %v2656
        %v2658 = vpop.f32.mrb[0].mxu0
        %v2659 = vadd.f32 0.0, %v2658
        %v2660 = vpop.f32.mrb[0].mxu0
        %v2661 = vadd.f32 0.0, %v2660
        %v2662 = vpop.f32.mrb[0].mxu0
        %v2663 = vadd.f32 0.0, %v2662
        %2664 = vmatprep.mubr.bf16.mxu0 0
        %2665 = vmatmul.mubr.bf16.gmra.mrb[0].mxu0 %v1465
        %v2666 = vpop.f32.mrb[0].mxu0
        %v2667 = vadd.f32 0.0, %v2666
        %v2668 = vpop.f32.mrb[0].mxu0
        %v2669 = vadd.f32 0.0, %v2668
        %v2670 = vpop.f32.mrb[0].mxu0
        %v2671 = vadd.f32 0.0, %v2670
        %v2672 = vpop.f32.mrb[0].mxu0
        %v2673 = vadd.f32 0.0, %v2672
        %2674 = vmatprep.mubr.bf16.mxu0 0
        %2675 = vmatmul.mubr.bf16.gmra.mrb[0].mxu0 %v1468
        %v2676 = vpop.f32.mrb[0].mxu0
        %v2677 = vadd.f32 0.0, %v2676
        %v2678 = vpop.f32.mrb[0].mxu0
        %v2679 = vadd.f32 0.0, %v2678
        %v2680 = vpop.f32.mrb[0].mxu0
        %v2681 = vadd.f32 0.0, %v2680
        %v2682 = vpop.f32.mrb[0].mxu0
        %v2683 = vadd.f32 0.0, %v2682
        %2684 = vmatprep.mubr.bf16.mxu0 0
        %2685 = vmatmul.mubr.bf16.gmra.mrb[0].mxu0 %v1471
        %v2686 = vpop.f32.mrb[0].mxu0
        %v2687 = vadd.f32 0.0, %v2686
        %v2688 = vpop.f32.mrb[0].mxu0
        %v2689 = vadd.f32 0.0, %v2688
        %v2690 = vpop.f32.mrb[0].mxu0
        %v2691 = vadd.f32 0.0, %v2690
        %v2692 = vpop.f32.mrb[0].mxu0
        %v2693 = vadd.f32 0.0, %v2692
        %2694 = vmatprep.mubr.bf16.mxu0 0
        %2695 = vmatmul.mubr.bf16.gmra.mrb[0].mxu0 %v1474
        %v2696 = vpop.f32.mrb[0].mxu0
        %v2697 = vadd.f32 0.0, %v2696
        %v2698 = vpop.f32.mrb[0].mxu0
        %v2699 = vadd.f32 0.0, %v2698
        %v2700 = vpop.f32.mrb[0].mxu0
        %v2701 = vadd.f32 0.0, %v2700
        %v2702 = vpop.f32.mrb[0].mxu0
        %v2703 = vadd.f32 0.0, %v2702
        %2704 = vmatprep.mubr.bf16.mxu0 0
        %2705 = vmatmul.mubr.bf16.gmra.mrb[0].mxu0 %v1477
        %v2706 = vpop.f32.mrb[0].mxu0
        %v2707 = vadd.f32 0.0, %v2706
        %v2708 = vpop.f32.mrb[0].mxu0
        %v2709 = vadd.f32 0.0, %v2708
        %v2710 = vpop.f32.mrb[0].mxu0
        %v2711 = vadd.f32 0.0, %v2710
        %v2712 = vpop.f32.mrb[0].mxu0
        %v2713 = vadd.f32 0.0, %v2712
        %2714 = vmatprep.mubr.bf16.mxu0 0
        %2715 = vmatmul.mubr.bf16.gmra.mrb[0].mxu0 %v1480
        %v2716 = vpop.f32.mrb[0].mxu0
        %v2717 = vadd.f32 0.0, %v2716
        %v2718 = vpop.f32.mrb[0].mxu0
        %v2719 = vadd.f32 0.0, %v2718
        %v2720 = vpop.f32.mrb[0].mxu0
        %v2721 = vadd.f32 0.0, %v2720
        %v2722 = vpop.f32.mrb[0].mxu0
        %v2723 = vadd.f32 0.0, %v2722
        %2724 = vmatprep.mubr.bf16.mxu0 0
        %2725 = vmatmul.mubr.bf16.gmra.mrb[0].mxu0 %v1483
        %v2726 = vpop.f32.mrb[0].mxu0
        %v2727 = vadd.f32 0.0, %v2726
        %v2728 = vpop.f32.mrb[0].mxu0
        %v2729 = vadd.f32 0.0, %v2728
        %v2730 = vpop.f32.mrb[0].mxu0
        %v2731 = vadd.f32 0.0, %v2730
        %v2732 = vpop.f32.mrb[0].mxu0
        %v2733 = vadd.f32 0.0, %v2732
        %2734 = vmatprep.mubr.bf16.mxu0 0
        %2735 = vmatmul.mubr.bf16.gmra.mrb[0].mxu0 %v1486
        %v2736 = vpop.f32.mrb[0].mxu0
        %v2737 = vadd.f32 0.0, %v2736
        %v2738 = vpop.f32.mrb[0].mxu0
        %v2739 = vadd.f32 0.0, %v2738
        %v2740 = vpop.f32.mrb[0].mxu0
        %v2741 = vadd.f32 0.0, %v2740
        %v2742 = vpop.f32.mrb[0].mxu0
        %v2743 = vadd.f32 0.0, %v2742
        %2744 = vmatprep.mubr.bf16.mxu0 0
        %2745 = vmatmul.mubr.bf16.gmra.mrb[0].mxu0 %v1489
        %v2746 = vpop.f32.mrb[0].mxu0
        %v2747 = vadd.f32 0.0, %v2746
        %v2748 = vpop.f32.mrb[0].mxu0
        %v2749 = vadd.f32 0.0, %v2748
        %v2750 = vpop.f32.mrb[0].mxu0
        %v2751 = vadd.f32 0.0, %v2750
        %v2752 = vpop.f32.mrb[0].mxu0
        %v2753 = vadd.f32 0.0, %v2752
        %2754 = vmatprep.mubr.bf16.mxu0 0
        %2755 = vmatmul.mubr.bf16.gmra.mrb[0].mxu0 %v1492
        %v2756 = vpop.f32.mrb[0].mxu0
        %v2757 = vadd.f32 0.0, %v2756
        %v2758 = vpop.f32.mrb[0].mxu0
        %v2759 = vadd.f32 0.0, %v2758
        %v2760 = vpop.f32.mrb[0].mxu0
        %v2761 = vadd.f32 0.0, %v2760
        %v2762 = vpop.f32.mrb[0].mxu0
        %v2763 = vadd.f32 0.0, %v2762
        %2764 = vmatprep.mubr.bf16.mxu0 0
        %2765 = vmatmul.mubr.bf16.gmra.mrb[0].mxu0 %v1495
        %v2766 = vpop.f32.mrb[0].mxu0
        %v2767 = vadd.f32 0.0, %v2766
        %v2768 = vpop.f32.mrb[0].mxu0
        %v2769 = vadd.f32 0.0, %v2768
        %v2770 = vpop.f32.mrb[0].mxu0
        %v2771 = vadd.f32 0.0, %v2770
        %v2772 = vpop.f32.mrb[0].mxu0
        %v2773 = vadd.f32 0.0, %v2772
        %2774 = vmatprep.mubr.bf16.mxu0 0
        %2775 = vmatmul.mubr.bf16.gmra.mrb[0].mxu0 %v1498
        %v2776 = vpop.f32.mrb[0].mxu0
        %v2777 = vadd.f32 0.0, %v2776
        %v2778 = vpop.f32.mrb[0].mxu0
        %v2779 = vadd.f32 0.0, %v2778
        %v2780 = vpop.f32.mrb[0].mxu0
        %v2781 = vadd.f32 0.0, %v2780
        %v2782 = vpop.f32.mrb[0].mxu0
        %v2783 = vadd.f32 0.0, %v2782
        %2784 = vmatprep.mubr.bf16.mxu0 0
        %2785 = vmatmul.mubr.bf16.gmra.mrb[0].mxu0 %v1501
        %v2786 = vpop.f32.mrb[0].mxu0
        %v2787 = vadd.f32 0.0, %v2786
        %v2788 = vpop.f32.mrb[0].mxu0
        %v2789 = vadd.f32 0.0, %v2788
        %v2790 = vpop.f32.mrb[0].mxu0
        %v2791 = vadd.f32 0.0, %v2790
        %v2792 = vpop.f32.mrb[0].mxu0
        %v2793 = vadd.f32 0.0, %v2792
        %2794 = vmatprep.mubr.bf16.mxu0 0
        %2795 = vmatmul.mubr.bf16.gmra.mrb[0].mxu0 %v1504
        %v2796 = vpop.f32.mrb[0].mxu0
        %v2797 = vadd.f32 0.0, %v2796
        %v2798 = vpop.f32.mrb[0].mxu0
        %v2799 = vadd.f32 0.0, %v2798
        %v2800 = vpop.f32.mrb[0].mxu0
        %v2801 = vadd.f32 0.0, %v2800
        %v2802 = vpop.f32.mrb[0].mxu0
        %v2803 = vadd.f32 0.0, %v2802
        %2804 = vmatprep.mubr.bf16.mxu0 0
        %2805 = vmatmul.mubr.bf16.gmra.mrb[0].mxu0 %v1507
        %v2806 = vpop.f32.mrb[0].mxu0
        %v2807 = vadd.f32 0.0, %v2806
        %v2808 = vpop.f32.mrb[0].mxu0
        %v2809 = vadd.f32 0.0, %v2808
        %v2810 = vpop.f32.mrb[0].mxu0
        %v2811 = vadd.f32 0.0, %v2810
        %v2812 = vpop.f32.mrb[0].mxu0
        %v2813 = vadd.f32 0.0, %v2812
        %2814 = vmatprep.mubr.bf16.mxu0 0
        %2815 = vmatmul.mubr.bf16.gmra.mrb[0].mxu0 %v1510
        %v2816 = vpop.f32.mrb[0].mxu0
        %v2817 = vadd.f32 0.0, %v2816
        %v2818 = vpop.f32.mrb[0].mxu0
        %v2819 = vadd.f32 0.0, %v2818
        %v2820 = vpop.f32.mrb[0].mxu0
        %v2821 = vadd.f32 0.0, %v2820
        %v2822 = vpop.f32.mrb[0].mxu0
        %v2823 = vadd.f32 0.0, %v2822
        %2824 = vmatprep.mubr.bf16.mxu0 0
        %2825 = vmatmul.mubr.bf16.gmra.mrb[0].mxu0 %v1513
        %v2826 = vpop.f32.mrb[0].mxu0
        %v2827 = vadd.f32 0.0, %v2826
        %v2828 = vpop.f32.mrb[0].mxu0
        %v2829 = vadd.f32 0.0, %v2828
        %v2830 = vpop.f32.mrb[0].mxu0
        %v2831 = vadd.f32 0.0, %v2830
        %v2832 = vpop.f32.mrb[0].mxu0
        %v2833 = vadd.f32 0.0, %v2832
        %2834 = vdwg.mxu0
        %v2835 = vld [vmem:[%s2] sm:$0x1]
        %v2836 = vlaneseq
        %v2837 = vshrl.u32 %v2836, 7
        %v2838 = vsub.s32 0, %v2837
        %v2839 = vrot.slane %v2835, %v2838
        %v2840 = vadd.f32 %v1557, %v2839
        %v2841 = vadd.f32 %v1561, %v2839
        %v2842 = vadd.f32 %v1567, %v2839
        %v2843 = vadd.f32 %v1571, %v2839
        %v2844 = vadd.f32 %v1577, %v2839
        %v2845 = vadd.f32 %v1581, %v2839
        %v2846 = vadd.f32 %v1587, %v2839
        %v2847 = vadd.f32 %v1591, %v2839
        %v2848 = vadd.f32 %v1597, %v2839
        %v2849 = vadd.f32 %v1601, %v2839
        %v2850 = vadd.f32 %v1607, %v2839
        %v2851 = vadd.f32 %v1611, %v2839
        %v2852 = vadd.f32 %v1617, %v2839
        %v2853 = vadd.f32 %v1621, %v2839
        %v2854 = vadd.f32 %v1627, %v2839
        %v2855 = vadd.f32 %v1631, %v2839
        %v2856 = vadd.f32 %v1637, %v2839
        %v2857 = vadd.f32 %v1641, %v2839
        %v2858 = vadd.f32 %v1647, %v2839
        %v2859 = vadd.f32 %v1651, %v2839
        %v2860 = vadd.f32 %v1657, %v2839
        %v2861 = vadd.f32 %v1661, %v2839
        %v2862 = vadd.f32 %v1667, %v2839
        %v2863 = vadd.f32 %v1671, %v2839
        %v2864 = vadd.f32 %v1677, %v2839
        %v2865 = vadd.f32 %v1681, %v2839
        %v2866 = vadd.f32 %v1687, %v2839
        %v2867 = vadd.f32 %v1691, %v2839
        %v2868 = vadd.f32 %v1697, %v2839
        %v2869 = vadd.f32 %v1701, %v2839
        %v2870 = vadd.f32 %v1707, %v2839
        %v2871 = vadd.f32 %v1711, %v2839
        %v2872 = vadd.f32 %v1717, %v2839
        %v2873 = vadd.f32 %v1721, %v2839
        %v2874 = vadd.f32 %v1727, %v2839
        %v2875 = vadd.f32 %v1731, %v2839
        %v2876 = vadd.f32 %v1737, %v2839
        %v2877 = vadd.f32 %v1741, %v2839
        %v2878 = vadd.f32 %v1747, %v2839
        %v2879 = vadd.f32 %v1751, %v2839
        %v2880 = vadd.f32 %v1757, %v2839
        %v2881 = vadd.f32 %v1761, %v2839
        %v2882 = vadd.f32 %v1767, %v2839
        %v2883 = vadd.f32 %v1771, %v2839
        %v2884 = vadd.f32 %v1777, %v2839
        %v2885 = vadd.f32 %v1781, %v2839
        %v2886 = vadd.f32 %v1787, %v2839
        %v2887 = vadd.f32 %v1791, %v2839
        %v2888 = vadd.f32 %v1797, %v2839
        %v2889 = vadd.f32 %v1801, %v2839
        %v2890 = vadd.f32 %v1807, %v2839
        %v2891 = vadd.f32 %v1811, %v2839
        %v2892 = vadd.f32 %v1817, %v2839
        %v2893 = vadd.f32 %v1821, %v2839
        %v2894 = vadd.f32 %v1827, %v2839
        %v2895 = vadd.f32 %v1831, %v2839
        %v2896 = vadd.f32 %v1837, %v2839
        %v2897 = vadd.f32 %v1841, %v2839
        %v2898 = vadd.f32 %v1847, %v2839
        %v2899 = vadd.f32 %v1851, %v2839
        %v2900 = vadd.f32 %v1857, %v2839
        %v2901 = vadd.f32 %v1861, %v2839
        %v2902 = vadd.f32 %v1867, %v2839
        %v2903 = vadd.f32 %v1871, %v2839
        %v2904 = vadd.f32 %v1877, %v2839
        %v2905 = vadd.f32 %v1881, %v2839
        %v2906 = vadd.f32 %v1887, %v2839
        %v2907 = vadd.f32 %v1891, %v2839
        %v2908 = vadd.f32 %v1897, %v2839
        %v2909 = vadd.f32 %v1901, %v2839
        %v2910 = vadd.f32 %v1907, %v2839
        %v2911 = vadd.f32 %v1911, %v2839
        %v2912 = vadd.f32 %v1917, %v2839
        %v2913 = vadd.f32 %v1921, %v2839
        %v2914 = vadd.f32 %v1927, %v2839
        %v2915 = vadd.f32 %v1931, %v2839
        %v2916 = vadd.f32 %v1937, %v2839
        %v2917 = vadd.f32 %v1941, %v2839
        %v2918 = vadd.f32 %v1947, %v2839
        %v2919 = vadd.f32 %v1951, %v2839
        %v2920 = vadd.f32 %v1957, %v2839
        %v2921 = vadd.f32 %v1961, %v2839
        %v2922 = vadd.f32 %v1967, %v2839
        %v2923 = vadd.f32 %v1971, %v2839
        %v2924 = vadd.f32 %v1977, %v2839
        %v2925 = vadd.f32 %v1981, %v2839
        %v2926 = vadd.f32 %v1987, %v2839
        %v2927 = vadd.f32 %v1991, %v2839
        %v2928 = vadd.f32 %v1997, %v2839
        %v2929 = vadd.f32 %v2001, %v2839
        %v2930 = vadd.f32 %v2007, %v2839
        %v2931 = vadd.f32 %v2011, %v2839
        %v2932 = vadd.f32 %v2017, %v2839
        %v2933 = vadd.f32 %v2021, %v2839
        %v2934 = vadd.f32 %v2027, %v2839
        %v2935 = vadd.f32 %v2031, %v2839
        %v2936 = vadd.f32 %v2037, %v2839
        %v2937 = vadd.f32 %v2041, %v2839
        %v2938 = vadd.f32 %v2047, %v2839
        %v2939 = vadd.f32 %v2051, %v2839
        %v2940 = vadd.f32 %v2057, %v2839
        %v2941 = vadd.f32 %v2061, %v2839
        %v2942 = vadd.f32 %v2067, %v2839
        %v2943 = vadd.f32 %v2071, %v2839
        %v2944 = vadd.f32 %v2077, %v2839
        %v2945 = vadd.f32 %v2081, %v2839
        %v2946 = vadd.f32 %v2087, %v2839
        %v2947 = vadd.f32 %v2091, %v2839
        %v2948 = vadd.f32 %v2097, %v2839
        %v2949 = vadd.f32 %v2101, %v2839
        %v2950 = vadd.f32 %v2107, %v2839
        %v2951 = vadd.f32 %v2111, %v2839
        %v2952 = vadd.f32 %v2117, %v2839
        %v2953 = vadd.f32 %v2121, %v2839
        %v2954 = vadd.f32 %v2127, %v2839
        %v2955 = vadd.f32 %v2131, %v2839
        %v2956 = vadd.f32 %v2137, %v2839
        %v2957 = vadd.f32 %v2141, %v2839
        %v2958 = vadd.f32 %v2147, %v2839
        %v2959 = vadd.f32 %v2151, %v2839
        %v2960 = vadd.f32 %v2157, %v2839
        %v2961 = vadd.f32 %v2161, %v2839
        %v2962 = vadd.f32 %v2167, %v2839
        %v2963 = vadd.f32 %v2171, %v2839
        %v2964 = vadd.f32 %v2177, %v2839
        %v2965 = vadd.f32 %v2181, %v2839
        %v2966 = vadd.f32 %v2187, %v2839
        %v2967 = vadd.f32 %v2191, %v2839
        %v2968 = vadd.f32 %v2197, %v2839
        %v2969 = vadd.f32 %v2201, %v2839
        %v2970 = vadd.f32 %v2207, %v2839
        %v2971 = vadd.f32 %v2211, %v2839
        %v2972 = vadd.f32 %v2217, %v2839
        %v2973 = vadd.f32 %v2221, %v2839
        %v2974 = vadd.f32 %v2227, %v2839
        %v2975 = vadd.f32 %v2231, %v2839
        %v2976 = vadd.f32 %v2237, %v2839
        %v2977 = vadd.f32 %v2241, %v2839
        %v2978 = vadd.f32 %v2247, %v2839
        %v2979 = vadd.f32 %v2251, %v2839
        %v2980 = vadd.f32 %v2257, %v2839
        %v2981 = vadd.f32 %v2261, %v2839
        %v2982 = vadd.f32 %v2267, %v2839
        %v2983 = vadd.f32 %v2271, %v2839
        %v2984 = vadd.f32 %v2277, %v2839
        %v2985 = vadd.f32 %v2281, %v2839
        %v2986 = vadd.f32 %v2287, %v2839
        %v2987 = vadd.f32 %v2291, %v2839
        %v2988 = vadd.f32 %v2297, %v2839
        %v2989 = vadd.f32 %v2301, %v2839
        %v2990 = vadd.f32 %v2307, %v2839
        %v2991 = vadd.f32 %v2311, %v2839
        %v2992 = vadd.f32 %v2317, %v2839
        %v2993 = vadd.f32 %v2321, %v2839
        %v2994 = vadd.f32 %v2327, %v2839
        %v2995 = vadd.f32 %v2331, %v2839
        %v2996 = vadd.f32 %v2337, %v2839
        %v2997 = vadd.f32 %v2341, %v2839
        %v2998 = vadd.f32 %v2347, %v2839
        %v2999 = vadd.f32 %v2351, %v2839
        %v3000 = vadd.f32 %v2357, %v2839
        %v3001 = vadd.f32 %v2361, %v2839
        %v3002 = vadd.f32 %v2367, %v2839
        %v3003 = vadd.f32 %v2371, %v2839
        %v3004 = vadd.f32 %v2377, %v2839
        %v3005 = vadd.f32 %v2381, %v2839
        %v3006 = vadd.f32 %v2387, %v2839
        %v3007 = vadd.f32 %v2391, %v2839
        %v3008 = vadd.f32 %v2397, %v2839
        %v3009 = vadd.f32 %v2401, %v2839
        %v3010 = vadd.f32 %v2407, %v2839
        %v3011 = vadd.f32 %v2411, %v2839
        %v3012 = vadd.f32 %v2417, %v2839
        %v3013 = vadd.f32 %v2421, %v2839
        %v3014 = vadd.f32 %v2427, %v2839
        %v3015 = vadd.f32 %v2431, %v2839
        %v3016 = vadd.f32 %v2437, %v2839
        %v3017 = vadd.f32 %v2441, %v2839
        %v3018 = vadd.f32 %v2447, %v2839
        %v3019 = vadd.f32 %v2451, %v2839
        %v3020 = vadd.f32 %v2457, %v2839
        %v3021 = vadd.f32 %v2461, %v2839
        %v3022 = vadd.f32 %v2467, %v2839
        %v3023 = vadd.f32 %v2471, %v2839
        %v3024 = vadd.f32 %v2477, %v2839
        %v3025 = vadd.f32 %v2481, %v2839
        %v3026 = vadd.f32 %v2487, %v2839
        %v3027 = vadd.f32 %v2491, %v2839
        %v3028 = vadd.f32 %v2497, %v2839
        %v3029 = vadd.f32 %v2501, %v2839
        %v3030 = vadd.f32 %v2507, %v2839
        %v3031 = vadd.f32 %v2511, %v2839
        %v3032 = vadd.f32 %v2517, %v2839
        %v3033 = vadd.f32 %v2521, %v2839
        %v3034 = vadd.f32 %v2527, %v2839
        %v3035 = vadd.f32 %v2531, %v2839
        %v3036 = vadd.f32 %v2537, %v2839
        %v3037 = vadd.f32 %v2541, %v2839
        %v3038 = vadd.f32 %v2547, %v2839
        %v3039 = vadd.f32 %v2551, %v2839
        %v3040 = vadd.f32 %v2557, %v2839
        %v3041 = vadd.f32 %v2561, %v2839
        %v3042 = vadd.f32 %v2567, %v2839
        %v3043 = vadd.f32 %v2571, %v2839
        %v3044 = vadd.f32 %v2577, %v2839
        %v3045 = vadd.f32 %v2581, %v2839
        %v3046 = vadd.f32 %v2587, %v2839
        %v3047 = vadd.f32 %v2591, %v2839
        %v3048 = vadd.f32 %v2597, %v2839
        %v3049 = vadd.f32 %v2601, %v2839
        %v3050 = vadd.f32 %v2607, %v2839
        %v3051 = vadd.f32 %v2611, %v2839
        %v3052 = vadd.f32 %v2617, %v2839
        %v3053 = vadd.f32 %v2621, %v2839
        %v3054 = vadd.f32 %v2627, %v2839
        %v3055 = vadd.f32 %v2631, %v2839
        %v3056 = vadd.f32 %v2637, %v2839
        %v3057 = vadd.f32 %v2641, %v2839
        %v3058 = vadd.f32 %v2647, %v2839
        %v3059 = vadd.f32 %v2651, %v2839
        %v3060 = vadd.f32 %v2657, %v2839
        %v3061 = vadd.f32 %v2661, %v2839
        %v3062 = vadd.f32 %v2667, %v2839
        %v3063 = vadd.f32 %v2671, %v2839
        %v3064 = vadd.f32 %v2677, %v2839
        %v3065 = vadd.f32 %v2681, %v2839
        %v3066 = vadd.f32 %v2687, %v2839
        %v3067 = vadd.f32 %v2691, %v2839
        %v3068 = vadd.f32 %v2697, %v2839
        %v3069 = vadd.f32 %v2701, %v2839
        %v3070 = vadd.f32 %v2707, %v2839
        %v3071 = vadd.f32 %v2711, %v2839
        %v3072 = vadd.f32 %v2717, %v2839
        %v3073 = vadd.f32 %v2721, %v2839
        %v3074 = vadd.f32 %v2727, %v2839
        %v3075 = vadd.f32 %v2731, %v2839
        %v3076 = vadd.f32 %v2737, %v2839
        %v3077 = vadd.f32 %v2741, %v2839
        %v3078 = vadd.f32 %v2747, %v2839
        %v3079 = vadd.f32 %v2751, %v2839
        %v3080 = vadd.f32 %v2757, %v2839
        %v3081 = vadd.f32 %v2761, %v2839
        %v3082 = vadd.f32 %v2767, %v2839
        %v3083 = vadd.f32 %v2771, %v2839
        %v3084 = vadd.f32 %v2777, %v2839
        %v3085 = vadd.f32 %v2781, %v2839
        %v3086 = vadd.f32 %v2787, %v2839
        %v3087 = vadd.f32 %v2791, %v2839
        %v3088 = vadd.f32 %v2797, %v2839
        %v3089 = vadd.f32 %v2801, %v2839
        %v3090 = vadd.f32 %v2807, %v2839
        %v3091 = vadd.f32 %v2811, %v2839
        %v3092 = vadd.f32 %v2817, %v2839
        %v3093 = vadd.f32 %v2821, %v2839
        %v3094 = vadd.f32 %v2827, %v2839
        %v3095 = vadd.f32 %v2831, %v2839
        %v3096 = vld [vmem:[%s2 + $0x1] sm:$0x1]
        %v3097 = vlaneseq
        %v3098 = vshrl.u32 %v3097, 7
        %v3099 = vsub.s32 0, %v3098
        %v3100 = vrot.slane %v3096, %v3099
        %v3101 = vadd.f32 %v1559, %v3100
        %v3102 = vadd.f32 %v1563, %v3100
        %v3103 = vadd.f32 %v1569, %v3100
        %v3104 = vadd.f32 %v1573, %v3100
        %v3105 = vadd.f32 %v1579, %v3100
        %v3106 = vadd.f32 %v1583, %v3100
        %v3107 = vadd.f32 %v1589, %v3100
        %v3108 = vadd.f32 %v1593, %v3100
        %v3109 = vadd.f32 %v1599, %v3100
        %v3110 = vadd.f32 %v1603, %v3100
        %v3111 = vadd.f32 %v1609, %v3100
        %v3112 = vadd.f32 %v1613, %v3100
        %v3113 = vadd.f32 %v1619, %v3100
        %v3114 = vadd.f32 %v1623, %v3100
        %v3115 = vadd.f32 %v1629, %v3100
        %v3116 = vadd.f32 %v1633, %v3100
        %v3117 = vadd.f32 %v1639, %v3100
        %v3118 = vadd.f32 %v1643, %v3100
        %v3119 = vadd.f32 %v1649, %v3100
        %v3120 = vadd.f32 %v1653, %v3100
        %v3121 = vadd.f32 %v1659, %v3100
        %v3122 = vadd.f32 %v1663, %v3100
        %v3123 = vadd.f32 %v1669, %v3100
        %v3124 = vadd.f32 %v1673, %v3100
        %v3125 = vadd.f32 %v1679, %v3100
        %v3126 = vadd.f32 %v1683, %v3100
        %v3127 = vadd.f32 %v1689, %v3100
        %v3128 = vadd.f32 %v1693, %v3100
        %v3129 = vadd.f32 %v1699, %v3100
        %v3130 = vadd.f32 %v1703, %v3100
        %v3131 = vadd.f32 %v1709, %v3100
        %v3132 = vadd.f32 %v1713, %v3100
        %v3133 = vadd.f32 %v1719, %v3100
        %v3134 = vadd.f32 %v1723, %v3100
        %v3135 = vadd.f32 %v1729, %v3100
        %v3136 = vadd.f32 %v1733, %v3100
        %v3137 = vadd.f32 %v1739, %v3100
        %v3138 = vadd.f32 %v1743, %v3100
        %v3139 = vadd.f32 %v1749, %v3100
        %v3140 = vadd.f32 %v1753, %v3100
        %v3141 = vadd.f32 %v1759, %v3100
        %v3142 = vadd.f32 %v1763, %v3100
        %v3143 = vadd.f32 %v1769, %v3100
        %v3144 = vadd.f32 %v1773, %v3100
        %v3145 = vadd.f32 %v1779, %v3100
        %v3146 = vadd.f32 %v1783, %v3100
        %v3147 = vadd.f32 %v1789, %v3100
        %v3148 = vadd.f32 %v1793, %v3100
        %v3149 = vadd.f32 %v1799, %v3100
        %v3150 = vadd.f32 %v1803, %v3100
        %v3151 = vadd.f32 %v1809, %v3100
        %v3152 = vadd.f32 %v1813, %v3100
        %v3153 = vadd.f32 %v1819, %v3100
        %v3154 = vadd.f32 %v1823, %v3100
        %v3155 = vadd.f32 %v1829, %v3100
        %v3156 = vadd.f32 %v1833, %v3100
        %v3157 = vadd.f32 %v1839, %v3100
        %v3158 = vadd.f32 %v1843, %v3100
        %v3159 = vadd.f32 %v1849, %v3100
        %v3160 = vadd.f32 %v1853, %v3100
        %v3161 = vadd.f32 %v1859, %v3100
        %v3162 = vadd.f32 %v1863, %v3100
        %v3163 = vadd.f32 %v1869, %v3100
        %v3164 = vadd.f32 %v1873, %v3100
        %v3165 = vadd.f32 %v1879, %v3100
        %v3166 = vadd.f32 %v1883, %v3100
        %v3167 = vadd.f32 %v1889, %v3100
        %v3168 = vadd.f32 %v1893, %v3100
        %v3169 = vadd.f32 %v1899, %v3100
        %v3170 = vadd.f32 %v1903, %v3100
        %v3171 = vadd.f32 %v1909, %v3100
        %v3172 = vadd.f32 %v1913, %v3100
        %v3173 = vadd.f32 %v1919, %v3100
        %v3174 = vadd.f32 %v1923, %v3100
        %v3175 = vadd.f32 %v1929, %v3100
        %v3176 = vadd.f32 %v1933, %v3100
        %v3177 = vadd.f32 %v1939, %v3100
        %v3178 = vadd.f32 %v1943, %v3100
        %v3179 = vadd.f32 %v1949, %v3100
        %v3180 = vadd.f32 %v1953, %v3100
        %v3181 = vadd.f32 %v1959, %v3100
        %v3182 = vadd.f32 %v1963, %v3100
        %v3183 = vadd.f32 %v1969, %v3100
        %v3184 = vadd.f32 %v1973, %v3100
        %v3185 = vadd.f32 %v1979, %v3100
        %v3186 = vadd.f32 %v1983, %v3100
        %v3187 = vadd.f32 %v1989, %v3100
        %v3188 = vadd.f32 %v1993, %v3100
        %v3189 = vadd.f32 %v1999, %v3100
        %v3190 = vadd.f32 %v2003, %v3100
        %v3191 = vadd.f32 %v2009, %v3100
        %v3192 = vadd.f32 %v2013, %v3100
        %v3193 = vadd.f32 %v2019, %v3100
        %v3194 = vadd.f32 %v2023, %v3100
        %v3195 = vadd.f32 %v2029, %v3100
        %v3196 = vadd.f32 %v2033, %v3100
        %v3197 = vadd.f32 %v2039, %v3100
        %v3198 = vadd.f32 %v2043, %v3100
        %v3199 = vadd.f32 %v2049, %v3100
        %v3200 = vadd.f32 %v2053, %v3100
        %v3201 = vadd.f32 %v2059, %v3100
        %v3202 = vadd.f32 %v2063, %v3100
        %v3203 = vadd.f32 %v2069, %v3100
        %v3204 = vadd.f32 %v2073, %v3100
        %v3205 = vadd.f32 %v2079, %v3100
        %v3206 = vadd.f32 %v2083, %v3100
        %v3207 = vadd.f32 %v2089, %v3100
        %v3208 = vadd.f32 %v2093, %v3100
        %v3209 = vadd.f32 %v2099, %v3100
        %v3210 = vadd.f32 %v2103, %v3100
        %v3211 = vadd.f32 %v2109, %v3100
        %v3212 = vadd.f32 %v2113, %v3100
        %v3213 = vadd.f32 %v2119, %v3100
        %v3214 = vadd.f32 %v2123, %v3100
        %v3215 = vadd.f32 %v2129, %v3100
        %v3216 = vadd.f32 %v2133, %v3100
        %v3217 = vadd.f32 %v2139, %v3100
        %v3218 = vadd.f32 %v2143, %v3100
        %v3219 = vadd.f32 %v2149, %v3100
        %v3220 = vadd.f32 %v2153, %v3100
        %v3221 = vadd.f32 %v2159, %v3100
        %v3222 = vadd.f32 %v2163, %v3100
        %v3223 = vadd.f32 %v2169, %v3100
        %v3224 = vadd.f32 %v2173, %v3100
        %v3225 = vadd.f32 %v2179, %v3100
        %v3226 = vadd.f32 %v2183, %v3100
        %v3227 = vadd.f32 %v2189, %v3100
        %v3228 = vadd.f32 %v2193, %v3100
        %v3229 = vadd.f32 %v2199, %v3100
        %v3230 = vadd.f32 %v2203, %v3100
        %v3231 = vadd.f32 %v2209, %v3100
        %v3232 = vadd.f32 %v2213, %v3100
        %v3233 = vadd.f32 %v2219, %v3100
        %v3234 = vadd.f32 %v2223, %v3100
        %v3235 = vadd.f32 %v2229, %v3100
        %v3236 = vadd.f32 %v2233, %v3100
        %v3237 = vadd.f32 %v2239, %v3100
        %v3238 = vadd.f32 %v2243, %v3100
        %v3239 = vadd.f32 %v2249, %v3100
        %v3240 = vadd.f32 %v2253, %v3100
        %v3241 = vadd.f32 %v2259, %v3100
        %v3242 = vadd.f32 %v2263, %v3100
        %v3243 = vadd.f32 %v2269, %v3100
        %v3244 = vadd.f32 %v2273, %v3100
        %v3245 = vadd.f32 %v2279, %v3100
        %v3246 = vadd.f32 %v2283, %v3100
        %v3247 = vadd.f32 %v2289, %v3100
        %v3248 = vadd.f32 %v2293, %v3100
        %v3249 = vadd.f32 %v2299, %v3100
        %v3250 = vadd.f32 %v2303, %v3100
        %v3251 = vadd.f32 %v2309, %v3100
        %v3252 = vadd.f32 %v2313, %v3100
        %v3253 = vadd.f32 %v2319, %v3100
        %v3254 = vadd.f32 %v2323, %v3100
        %v3255 = vadd.f32 %v2329, %v3100
        %v3256 = vadd.f32 %v2333, %v3100
        %v3257 = vadd.f32 %v2339, %v3100
        %v3258 = vadd.f32 %v2343, %v3100
        %v3259 = vadd.f32 %v2349, %v3100
        %v3260 = vadd.f32 %v2353, %v3100
        %v3261 = vadd.f32 %v2359, %v3100
        %v3262 = vadd.f32 %v2363, %v3100
        %v3263 = vadd.f32 %v2369, %v3100
        %v3264 = vadd.f32 %v2373, %v3100
        %v3265 = vadd.f32 %v2379, %v3100
        %v3266 = vadd.f32 %v2383, %v3100
        %v3267 = vadd.f32 %v2389, %v3100
        %v3268 = vadd.f32 %v2393, %v3100
        %v3269 = vadd.f32 %v2399, %v3100
        %v3270 = vadd.f32 %v2403, %v3100
        %v3271 = vadd.f32 %v2409, %v3100
        %v3272 = vadd.f32 %v2413, %v3100
        %v3273 = vadd.f32 %v2419, %v3100
        %v3274 = vadd.f32 %v2423, %v3100
        %v3275 = vadd.f32 %v2429, %v3100
        %v3276 = vadd.f32 %v2433, %v3100
        %v3277 = vadd.f32 %v2439, %v3100
        %v3278 = vadd.f32 %v2443, %v3100
        %v3279 = vadd.f32 %v2449, %v3100
        %v3280 = vadd.f32 %v2453, %v3100
        %v3281 = vadd.f32 %v2459, %v3100
        %v3282 = vadd.f32 %v2463, %v3100
        %v3283 = vadd.f32 %v2469, %v3100
        %v3284 = vadd.f32 %v2473, %v3100
        %v3285 = vadd.f32 %v2479, %v3100
        %v3286 = vadd.f32 %v2483, %v3100
        %v3287 = vadd.f32 %v2489, %v3100
        %v3288 = vadd.f32 %v2493, %v3100
        %v3289 = vadd.f32 %v2499, %v3100
        %v3290 = vadd.f32 %v2503, %v3100
        %v3291 = vadd.f32 %v2509, %v3100
        %v3292 = vadd.f32 %v2513, %v3100
        %v3293 = vadd.f32 %v2519, %v3100
        %v3294 = vadd.f32 %v2523, %v3100
        %v3295 = vadd.f32 %v2529, %v3100
        %v3296 = vadd.f32 %v2533, %v3100
        %v3297 = vadd.f32 %v2539, %v3100
        %v3298 = vadd.f32 %v2543, %v3100
        %v3299 = vadd.f32 %v2549, %v3100
        %v3300 = vadd.f32 %v2553, %v3100
        %v3301 = vadd.f32 %v2559, %v3100
        %v3302 = vadd.f32 %v2563, %v3100
        %v3303 = vadd.f32 %v2569, %v3100
        %v3304 = vadd.f32 %v2573, %v3100
        %v3305 = vadd.f32 %v2579, %v3100
        %v3306 = vadd.f32 %v2583, %v3100
        %v3307 = vadd.f32 %v2589, %v3100
        %v3308 = vadd.f32 %v2593, %v3100
        %v3309 = vadd.f32 %v2599, %v3100
        %v3310 = vadd.f32 %v2603, %v3100
        %v3311 = vadd.f32 %v2609, %v3100
        %v3312 = vadd.f32 %v2613, %v3100
        %v3313 = vadd.f32 %v2619, %v3100
        %v3314 = vadd.f32 %v2623, %v3100
        %v3315 = vadd.f32 %v2629, %v3100
        %v3316 = vadd.f32 %v2633, %v3100
        %v3317 = vadd.f32 %v2639, %v3100
        %v3318 = vadd.f32 %v2643, %v3100
        %v3319 = vadd.f32 %v2649, %v3100
        %v3320 = vadd.f32 %v2653, %v3100
        %v3321 = vadd.f32 %v2659, %v3100
        %v3322 = vadd.f32 %v2663, %v3100
        %v3323 = vadd.f32 %v2669, %v3100
        %v3324 = vadd.f32 %v2673, %v3100
        %v3325 = vadd.f32 %v2679, %v3100
        %v3326 = vadd.f32 %v2683, %v3100
        %v3327 = vadd.f32 %v2689, %v3100
        %v3328 = vadd.f32 %v2693, %v3100
        %v3329 = vadd.f32 %v2699, %v3100
        %v3330 = vadd.f32 %v2703, %v3100
        %v3331 = vadd.f32 %v2709, %v3100
        %v3332 = vadd.f32 %v2713, %v3100
        %v3333 = vadd.f32 %v2719, %v3100
        %v3334 = vadd.f32 %v2723, %v3100
        %v3335 = vadd.f32 %v2729, %v3100
        %v3336 = vadd.f32 %v2733, %v3100
        %v3337 = vadd.f32 %v2739, %v3100
        %v3338 = vadd.f32 %v2743, %v3100
        %v3339 = vadd.f32 %v2749, %v3100
        %v3340 = vadd.f32 %v2753, %v3100
        %v3341 = vadd.f32 %v2759, %v3100
        %v3342 = vadd.f32 %v2763, %v3100
        %v3343 = vadd.f32 %v2769, %v3100
        %v3344 = vadd.f32 %v2773, %v3100
        %v3345 = vadd.f32 %v2779, %v3100
        %v3346 = vadd.f32 %v2783, %v3100
        %v3347 = vadd.f32 %v2789, %v3100
        %v3348 = vadd.f32 %v2793, %v3100
        %v3349 = vadd.f32 %v2799, %v3100
        %v3350 = vadd.f32 %v2803, %v3100
        %v3351 = vadd.f32 %v2809, %v3100
        %v3352 = vadd.f32 %v2813, %v3100
        %v3353 = vadd.f32 %v2819, %v3100
        %v3354 = vadd.f32 %v2823, %v3100
        %v3355 = vadd.f32 %v2829, %v3100
        %v3356 = vadd.f32 %v2833, %v3100
        %v3357 = vxor.u32 %v3101, 2147483648
        %v3358 = vxor.u32 %v3102, 2147483648
        %v3359 = vxor.u32 %v3103, 2147483648
        %v3360 = vxor.u32 %v3104, 2147483648
        %v3361 = vxor.u32 %v3105, 2147483648
        %v3362 = vxor.u32 %v3106, 2147483648
        %v3363 = vxor.u32 %v3107, 2147483648
        %v3364 = vxor.u32 %v3108, 2147483648
        %v3365 = vxor.u32 %v3109, 2147483648
        %v3366 = vxor.u32 %v3110, 2147483648
        %v3367 = vxor.u32 %v3111, 2147483648
        %v3368 = vxor.u32 %v3112, 2147483648
        %v3369 = vxor.u32 %v3113, 2147483648
        %v3370 = vxor.u32 %v3114, 2147483648
        %v3371 = vxor.u32 %v3115, 2147483648
        %v3372 = vxor.u32 %v3116, 2147483648
        %v3373 = vxor.u32 %v3117, 2147483648
        %v3374 = vxor.u32 %v3118, 2147483648
        %v3375 = vxor.u32 %v3119, 2147483648
        %v3376 = vxor.u32 %v3120, 2147483648
        %v3377 = vxor.u32 %v3121, 2147483648
        %v3378 = vxor.u32 %v3122, 2147483648
        %v3379 = vxor.u32 %v3123, 2147483648
        %v3380 = vxor.u32 %v3124, 2147483648
        %v3381 = vxor.u32 %v3125, 2147483648
        %v3382 = vxor.u32 %v3126, 2147483648
        %v3383 = vxor.u32 %v3127, 2147483648
        %v3384 = vxor.u32 %v3128, 2147483648
        %v3385 = vxor.u32 %v3129, 2147483648
        %v3386 = vxor.u32 %v3130, 2147483648
        %v3387 = vxor.u32 %v3131, 2147483648
        %v3388 = vxor.u32 %v3132, 2147483648
        %v3389 = vxor.u32 %v3133, 2147483648
        %v3390 = vxor.u32 %v3134, 2147483648
        %v3391 = vxor.u32 %v3135, 2147483648
        %v3392 = vxor.u32 %v3136, 2147483648
        %v3393 = vxor.u32 %v3137, 2147483648
        %v3394 = vxor.u32 %v3138, 2147483648
        %v3395 = vxor.u32 %v3139, 2147483648
        %v3396 = vxor.u32 %v3140, 2147483648
        %v3397 = vxor.u32 %v3141, 2147483648
        %v3398 = vxor.u32 %v3142, 2147483648
        %v3399 = vxor.u32 %v3143, 2147483648
        %v3400 = vxor.u32 %v3144, 2147483648
        %v3401 = vxor.u32 %v3145, 2147483648
        %v3402 = vxor.u32 %v3146, 2147483648
        %v3403 = vxor.u32 %v3147, 2147483648
        %v3404 = vxor.u32 %v3148, 2147483648
        %v3405 = vxor.u32 %v3149, 2147483648
        %v3406 = vxor.u32 %v3150, 2147483648
        %v3407 = vxor.u32 %v3151, 2147483648
        %v3408 = vxor.u32 %v3152, 2147483648
        %v3409 = vxor.u32 %v3153, 2147483648
        %v3410 = vxor.u32 %v3154, 2147483648
        %v3411 = vxor.u32 %v3155, 2147483648
        %v3412 = vxor.u32 %v3156, 2147483648
        %v3413 = vxor.u32 %v3157, 2147483648
        %v3414 = vxor.u32 %v3158, 2147483648
        %v3415 = vxor.u32 %v3159, 2147483648
        %v3416 = vxor.u32 %v3160, 2147483648
        %v3417 = vxor.u32 %v3161, 2147483648
        %v3418 = vxor.u32 %v3162, 2147483648
        %v3419 = vxor.u32 %v3163, 2147483648
        %v3420 = vxor.u32 %v3164, 2147483648
        %v3421 = vxor.u32 %v3165, 2147483648
        %v3422 = vxor.u32 %v3166, 2147483648
        %v3423 = vxor.u32 %v3167, 2147483648
        %v3424 = vxor.u32 %v3168, 2147483648
        %v3425 = vxor.u32 %v3169, 2147483648
        %v3426 = vxor.u32 %v3170, 2147483648
        %v3427 = vxor.u32 %v3171, 2147483648
        %v3428 = vxor.u32 %v3172, 2147483648
        %v3429 = vxor.u32 %v3173, 2147483648
        %v3430 = vxor.u32 %v3174, 2147483648
        %v3431 = vxor.u32 %v3175, 2147483648
        %v3432 = vxor.u32 %v3176, 2147483648
        %v3433 = vxor.u32 %v3177, 2147483648
        %v3434 = vxor.u32 %v3178, 2147483648
        %v3435 = vxor.u32 %v3179, 2147483648
        %v3436 = vxor.u32 %v3180, 2147483648
        %v3437 = vxor.u32 %v3181, 2147483648
        %v3438 = vxor.u32 %v3182, 2147483648
        %v3439 = vxor.u32 %v3183, 2147483648
        %v3440 = vxor.u32 %v3184, 2147483648
        %v3441 = vxor.u32 %v3185, 2147483648
        %v3442 = vxor.u32 %v3186, 2147483648
        %v3443 = vxor.u32 %v3187, 2147483648
        %v3444 = vxor.u32 %v3188, 2147483648
        %v3445 = vxor.u32 %v3189, 2147483648
        %v3446 = vxor.u32 %v3190, 2147483648
        %v3447 = vxor.u32 %v3191, 2147483648
        %v3448 = vxor.u32 %v3192, 2147483648
        %v3449 = vxor.u32 %v3193, 2147483648
        %v3450 = vxor.u32 %v3194, 2147483648
        %v3451 = vxor.u32 %v3195, 2147483648
        %v3452 = vxor.u32 %v3196, 2147483648
        %v3453 = vxor.u32 %v3197, 2147483648
        %v3454 = vxor.u32 %v3198, 2147483648
        %v3455 = vxor.u32 %v3199, 2147483648
        %v3456 = vxor.u32 %v3200, 2147483648
        %v3457 = vxor.u32 %v3201, 2147483648
        %v3458 = vxor.u32 %v3202, 2147483648
        %v3459 = vxor.u32 %v3203, 2147483648
        %v3460 = vxor.u32 %v3204, 2147483648
        %v3461 = vxor.u32 %v3205, 2147483648
        %v3462 = vxor.u32 %v3206, 2147483648
        %v3463 = vxor.u32 %v3207, 2147483648
        %v3464 = vxor.u32 %v3208, 2147483648
        %v3465 = vxor.u32 %v3209, 2147483648
        %v3466 = vxor.u32 %v3210, 2147483648
        %v3467 = vxor.u32 %v3211, 2147483648
        %v3468 = vxor.u32 %v3212, 2147483648
        %v3469 = vxor.u32 %v3213, 2147483648
        %v3470 = vxor.u32 %v3214, 2147483648
        %v3471 = vxor.u32 %v3215, 2147483648
        %v3472 = vxor.u32 %v3216, 2147483648
        %v3473 = vxor.u32 %v3217, 2147483648
        %v3474 = vxor.u32 %v3218, 2147483648
        %v3475 = vxor.u32 %v3219, 2147483648
        %v3476 = vxor.u32 %v3220, 2147483648
        %v3477 = vxor.u32 %v3221, 2147483648
        %v3478 = vxor.u32 %v3222, 2147483648
        %v3479 = vxor.u32 %v3223, 2147483648
        %v3480 = vxor.u32 %v3224, 2147483648
        %v3481 = vxor.u32 %v3225, 2147483648
        %v3482 = vxor.u32 %v3226, 2147483648
        %v3483 = vxor.u32 %v3227, 2147483648
        %v3484 = vxor.u32 %v3228, 2147483648
        %v3485 = vxor.u32 %v3229, 2147483648
        %v3486 = vxor.u32 %v3230, 2147483648
        %v3487 = vxor.u32 %v3231, 2147483648
        %v3488 = vxor.u32 %v3232, 2147483648
        %v3489 = vxor.u32 %v3233, 2147483648
        %v3490 = vxor.u32 %v3234, 2147483648
        %v3491 = vxor.u32 %v3235, 2147483648
        %v3492 = vxor.u32 %v3236, 2147483648
        %v3493 = vxor.u32 %v3237, 2147483648
        %v3494 = vxor.u32 %v3238, 2147483648
        %v3495 = vxor.u32 %v3239, 2147483648
        %v3496 = vxor.u32 %v3240, 2147483648
        %v3497 = vxor.u32 %v3241, 2147483648
        %v3498 = vxor.u32 %v3242, 2147483648
        %v3499 = vxor.u32 %v3243, 2147483648
        %v3500 = vxor.u32 %v3244, 2147483648
        %v3501 = vxor.u32 %v3245, 2147483648
        %v3502 = vxor.u32 %v3246, 2147483648
        %v3503 = vxor.u32 %v3247, 2147483648
        %v3504 = vxor.u32 %v3248, 2147483648
        %v3505 = vxor.u32 %v3249, 2147483648
        %v3506 = vxor.u32 %v3250, 2147483648
        %v3507 = vxor.u32 %v3251, 2147483648
        %v3508 = vxor.u32 %v3252, 2147483648
        %v3509 = vxor.u32 %v3253, 2147483648
        %v3510 = vxor.u32 %v3254, 2147483648
        %v3511 = vxor.u32 %v3255, 2147483648
        %v3512 = vxor.u32 %v3256, 2147483648
        %v3513 = vxor.u32 %v3257, 2147483648
        %v3514 = vxor.u32 %v3258, 2147483648
        %v3515 = vxor.u32 %v3259, 2147483648
        %v3516 = vxor.u32 %v3260, 2147483648
        %v3517 = vxor.u32 %v3261, 2147483648
        %v3518 = vxor.u32 %v3262, 2147483648
        %v3519 = vxor.u32 %v3263, 2147483648
        %v3520 = vxor.u32 %v3264, 2147483648
        %v3521 = vxor.u32 %v3265, 2147483648
        %v3522 = vxor.u32 %v3266, 2147483648
        %v3523 = vxor.u32 %v3267, 2147483648
        %v3524 = vxor.u32 %v3268, 2147483648
        %v3525 = vxor.u32 %v3269, 2147483648
        %v3526 = vxor.u32 %v3270, 2147483648
        %v3527 = vxor.u32 %v3271, 2147483648
        %v3528 = vxor.u32 %v3272, 2147483648
        %v3529 = vxor.u32 %v3273, 2147483648
        %v3530 = vxor.u32 %v3274, 2147483648
        %v3531 = vxor.u32 %v3275, 2147483648
        %v3532 = vxor.u32 %v3276, 2147483648
        %v3533 = vxor.u32 %v3277, 2147483648
        %v3534 = vxor.u32 %v3278, 2147483648
        %v3535 = vxor.u32 %v3279, 2147483648
        %v3536 = vxor.u32 %v3280, 2147483648
        %v3537 = vxor.u32 %v3281, 2147483648
        %v3538 = vxor.u32 %v3282, 2147483648
        %v3539 = vxor.u32 %v3283, 2147483648
        %v3540 = vxor.u32 %v3284, 2147483648
        %v3541 = vxor.u32 %v3285, 2147483648
        %v3542 = vxor.u32 %v3286, 2147483648
        %v3543 = vxor.u32 %v3287, 2147483648
        %v3544 = vxor.u32 %v3288, 2147483648
        %v3545 = vxor.u32 %v3289, 2147483648
        %v3546 = vxor.u32 %v3290, 2147483648
        %v3547 = vxor.u32 %v3291, 2147483648
        %v3548 = vxor.u32 %v3292, 2147483648
        %v3549 = vxor.u32 %v3293, 2147483648
        %v3550 = vxor.u32 %v3294, 2147483648
        %v3551 = vxor.u32 %v3295, 2147483648
        %v3552 = vxor.u32 %v3296, 2147483648
        %v3553 = vxor.u32 %v3297, 2147483648
        %v3554 = vxor.u32 %v3298, 2147483648
        %v3555 = vxor.u32 %v3299, 2147483648
        %v3556 = vxor.u32 %v3300, 2147483648
        %v3557 = vxor.u32 %v3301, 2147483648
        %v3558 = vxor.u32 %v3302, 2147483648
        %v3559 = vxor.u32 %v3303, 2147483648
        %v3560 = vxor.u32 %v3304, 2147483648
        %v3561 = vxor.u32 %v3305, 2147483648
        %v3562 = vxor.u32 %v3306, 2147483648
        %v3563 = vxor.u32 %v3307, 2147483648
        %v3564 = vxor.u32 %v3308, 2147483648
        %v3565 = vxor.u32 %v3309, 2147483648
        %v3566 = vxor.u32 %v3310, 2147483648
        %v3567 = vxor.u32 %v3311, 2147483648
        %v3568 = vxor.u32 %v3312, 2147483648
        %v3569 = vxor.u32 %v3313, 2147483648
        %v3570 = vxor.u32 %v3314, 2147483648
        %v3571 = vxor.u32 %v3315, 2147483648
        %v3572 = vxor.u32 %v3316, 2147483648
        %v3573 = vxor.u32 %v3317, 2147483648
        %v3574 = vxor.u32 %v3318, 2147483648
        %v3575 = vxor.u32 %v3319, 2147483648
        %v3576 = vxor.u32 %v3320, 2147483648
        %v3577 = vxor.u32 %v3321, 2147483648
        %v3578 = vxor.u32 %v3322, 2147483648
        %v3579 = vxor.u32 %v3323, 2147483648
        %v3580 = vxor.u32 %v3324, 2147483648
        %v3581 = vxor.u32 %v3325, 2147483648
        %v3582 = vxor.u32 %v3326, 2147483648
        %v3583 = vxor.u32 %v3327, 2147483648
        %v3584 = vxor.u32 %v3328, 2147483648
        %v3585 = vxor.u32 %v3329, 2147483648
        %v3586 = vxor.u32 %v3330, 2147483648
        %v3587 = vxor.u32 %v3331, 2147483648
        %v3588 = vxor.u32 %v3332, 2147483648
        %v3589 = vxor.u32 %v3333, 2147483648
        %v3590 = vxor.u32 %v3334, 2147483648
        %v3591 = vxor.u32 %v3335, 2147483648
        %v3592 = vxor.u32 %v3336, 2147483648
        %v3593 = vxor.u32 %v3337, 2147483648
        %v3594 = vxor.u32 %v3338, 2147483648
        %v3595 = vxor.u32 %v3339, 2147483648
        %v3596 = vxor.u32 %v3340, 2147483648
        %v3597 = vxor.u32 %v3341, 2147483648
        %v3598 = vxor.u32 %v3342, 2147483648
        %v3599 = vxor.u32 %v3343, 2147483648
        %v3600 = vxor.u32 %v3344, 2147483648
        %v3601 = vxor.u32 %v3345, 2147483648
        %v3602 = vxor.u32 %v3346, 2147483648
        %v3603 = vxor.u32 %v3347, 2147483648
        %v3604 = vxor.u32 %v3348, 2147483648
        %v3605 = vxor.u32 %v3349, 2147483648
        %v3606 = vxor.u32 %v3350, 2147483648
        %v3607 = vxor.u32 %v3351, 2147483648
        %v3608 = vxor.u32 %v3352, 2147483648
        %v3609 = vxor.u32 %v3353, 2147483648
        %v3610 = vxor.u32 %v3354, 2147483648
        %v3611 = vxor.u32 %v3355, 2147483648
        %v3612 = vxor.u32 %v3356, 2147483648
        %v3613 = vmul.f32 %v3357, 1.442695
        %v3614 = vpow.pop %v3613
        %v3615 = vmul.f32 %v3358, 1.442695
        %v3616 = vpow.pop %v3615
        %v3617 = vmul.f32 %v3359, 1.442695
        %v3618 = vpow.pop %v3617
        %v3619 = vmul.f32 %v3360, 1.442695
        %v3620 = vpow.pop %v3619
        %v3621 = vmul.f32 %v3361, 1.442695
        %v3622 = vpow.pop %v3621
        %v3623 = vmul.f32 %v3362, 1.442695
        %v3624 = vpow.pop %v3623
        %v3625 = vmul.f32 %v3363, 1.442695
        %v3626 = vpow.pop %v3625
        %v3627 = vmul.f32 %v3364, 1.442695
        %v3628 = vpow.pop %v3627
        %v3629 = vmul.f32 %v3365, 1.442695
        %v3630 = vpow.pop %v3629
        %v3631 = vmul.f32 %v3366, 1.442695
        %v3632 = vpow.pop %v3631
        %v3633 = vmul.f32 %v3367, 1.442695
        %v3634 = vpow.pop %v3633
        %v3635 = vmul.f32 %v3368, 1.442695
        %v3636 = vpow.pop %v3635
        %v3637 = vmul.f32 %v3369, 1.442695
        %v3638 = vpow.pop %v3637
        %v3639 = vmul.f32 %v3370, 1.442695
        %v3640 = vpow.pop %v3639
        %v3641 = vmul.f32 %v3371, 1.442695
        %v3642 = vpow.pop %v3641
        %v3643 = vmul.f32 %v3372, 1.442695
        %v3644 = vpow.pop %v3643
        %v3645 = vmul.f32 %v3373, 1.442695
        %v3646 = vpow.pop %v3645
        %v3647 = vmul.f32 %v3374, 1.442695
        %v3648 = vpow.pop %v3647
        %v3649 = vmul.f32 %v3375, 1.442695
        %v3650 = vpow.pop %v3649
        %v3651 = vmul.f32 %v3376, 1.442695
        %v3652 = vpow.pop %v3651
        %v3653 = vmul.f32 %v3377, 1.442695
        %v3654 = vpow.pop %v3653
        %v3655 = vmul.f32 %v3378, 1.442695
        %v3656 = vpow.pop %v3655
        %v3657 = vmul.f32 %v3379, 1.442695
        %v3658 = vpow.pop %v3657
        %v3659 = vmul.f32 %v3380, 1.442695
        %v3660 = vpow.pop %v3659
        %v3661 = vmul.f32 %v3381, 1.442695
        %v3662 = vpow.pop %v3661
        %v3663 = vmul.f32 %v3382, 1.442695
        %v3664 = vpow.pop %v3663
        %v3665 = vmul.f32 %v3383, 1.442695
        %v3666 = vpow.pop %v3665
        %v3667 = vmul.f32 %v3384, 1.442695
        %v3668 = vpow.pop %v3667
        %v3669 = vmul.f32 %v3385, 1.442695
        %v3670 = vpow.pop %v3669
        %v3671 = vmul.f32 %v3386, 1.442695
        %v3672 = vpow.pop %v3671
        %v3673 = vmul.f32 %v3387, 1.442695
        %v3674 = vpow.pop %v3673
        %v3675 = vmul.f32 %v3388, 1.442695
        %v3676 = vpow.pop %v3675
        %v3677 = vmul.f32 %v3389, 1.442695
        %v3678 = vpow.pop %v3677
        %v3679 = vmul.f32 %v3390, 1.442695
        %v3680 = vpow.pop %v3679
        %v3681 = vmul.f32 %v3391, 1.442695
        %v3682 = vpow.pop %v3681
        %v3683 = vmul.f32 %v3392, 1.442695
        %v3684 = vpow.pop %v3683
        %v3685 = vmul.f32 %v3393, 1.442695
        %v3686 = vpow.pop %v3685
        %v3687 = vmul.f32 %v3394, 1.442695
        %v3688 = vpow.pop %v3687
        %v3689 = vmul.f32 %v3395, 1.442695
        %v3690 = vpow.pop %v3689
        %v3691 = vmul.f32 %v3396, 1.442695
        %v3692 = vpow.pop %v3691
        %v3693 = vmul.f32 %v3397, 1.442695
        %v3694 = vpow.pop %v3693
        %v3695 = vmul.f32 %v3398, 1.442695
        %v3696 = vpow.pop %v3695
        %v3697 = vmul.f32 %v3399, 1.442695
        %v3698 = vpow.pop %v3697
        %v3699 = vmul.f32 %v3400, 1.442695
        %v3700 = vpow.pop %v3699
        %v3701 = vmul.f32 %v3401, 1.442695
        %v3702 = vpow.pop %v3701
        %v3703 = vmul.f32 %v3402, 1.442695
        %v3704 = vpow.pop %v3703
        %v3705 = vmul.f32 %v3403, 1.442695
        %v3706 = vpow.pop %v3705
        %v3707 = vmul.f32 %v3404, 1.442695
        %v3708 = vpow.pop %v3707
        %v3709 = vmul.f32 %v3405, 1.442695
        %v3710 = vpow.pop %v3709
        %v3711 = vmul.f32 %v3406, 1.442695
        %v3712 = vpow.pop %v3711
        %v3713 = vmul.f32 %v3407, 1.442695
        %v3714 = vpow.pop %v3713
        %v3715 = vmul.f32 %v3408, 1.442695
        %v3716 = vpow.pop %v3715
        %v3717 = vmul.f32 %v3409, 1.442695
        %v3718 = vpow.pop %v3717
        %v3719 = vmul.f32 %v3410, 1.442695
        %v3720 = vpow.pop %v3719
        %v3721 = vmul.f32 %v3411, 1.442695
        %v3722 = vpow.pop %v3721
        %v3723 = vmul.f32 %v3412, 1.442695
        %v3724 = vpow.pop %v3723
        %v3725 = vmul.f32 %v3413, 1.442695
        %v3726 = vpow.pop %v3725
        %v3727 = vmul.f32 %v3414, 1.442695
        %v3728 = vpow.pop %v3727
        %v3729 = vmul.f32 %v3415, 1.442695
        %v3730 = vpow.pop %v3729
        %v3731 = vmul.f32 %v3416, 1.442695
        %v3732 = vpow.pop %v3731
        %v3733 = vmul.f32 %v3417, 1.442695
        %v3734 = vpow.pop %v3733
        %v3735 = vmul.f32 %v3418, 1.442695
        %v3736 = vpow.pop %v3735
        %v3737 = vmul.f32 %v3419, 1.442695
        %v3738 = vpow.pop %v3737
        %v3739 = vmul.f32 %v3420, 1.442695
        %v3740 = vpow.pop %v3739
        %v3741 = vmul.f32 %v3421, 1.442695
        %v3742 = vpow.pop %v3741
        %v3743 = vmul.f32 %v3422, 1.442695
        %v3744 = vpow.pop %v3743
        %v3745 = vmul.f32 %v3423, 1.442695
        %v3746 = vpow.pop %v3745
        %v3747 = vmul.f32 %v3424, 1.442695
        %v3748 = vpow.pop %v3747
        %v3749 = vmul.f32 %v3425, 1.442695
        %v3750 = vpow.pop %v3749
        %v3751 = vmul.f32 %v3426, 1.442695
        %v3752 = vpow.pop %v3751
        %v3753 = vmul.f32 %v3427, 1.442695
        %v3754 = vpow.pop %v3753
        %v3755 = vmul.f32 %v3428, 1.442695
        %v3756 = vpow.pop %v3755
        %v3757 = vmul.f32 %v3429, 1.442695
        %v3758 = vpow.pop %v3757
        %v3759 = vmul.f32 %v3430, 1.442695
        %v3760 = vpow.pop %v3759
        %v3761 = vmul.f32 %v3431, 1.442695
        %v3762 = vpow.pop %v3761
        %v3763 = vmul.f32 %v3432, 1.442695
        %v3764 = vpow.pop %v3763
        %v3765 = vmul.f32 %v3433, 1.442695
        %v3766 = vpow.pop %v3765
        %v3767 = vmul.f32 %v3434, 1.442695
        %v3768 = vpow.pop %v3767
        %v3769 = vmul.f32 %v3435, 1.442695
        %v3770 = vpow.pop %v3769
        %v3771 = vmul.f32 %v3436, 1.442695
        %v3772 = vpow.pop %v3771
        %v3773 = vmul.f32 %v3437, 1.442695
        %v3774 = vpow.pop %v3773
        %v3775 = vmul.f32 %v3438, 1.442695
        %v3776 = vpow.pop %v3775
        %v3777 = vmul.f32 %v3439, 1.442695
        %v3778 = vpow.pop %v3777
        %v3779 = vmul.f32 %v3440, 1.442695
        %v3780 = vpow.pop %v3779
        %v3781 = vmul.f32 %v3441, 1.442695
        %v3782 = vpow.pop %v3781
        %v3783 = vmul.f32 %v3442, 1.442695
        %v3784 = vpow.pop %v3783
        %v3785 = vmul.f32 %v3443, 1.442695
        %v3786 = vpow.pop %v3785
        %v3787 = vmul.f32 %v3444, 1.442695
        %v3788 = vpow.pop %v3787
        %v3789 = vmul.f32 %v3445, 1.442695
        %v3790 = vpow.pop %v3789
        %v3791 = vmul.f32 %v3446, 1.442695
        %v3792 = vpow.pop %v3791
        %v3793 = vmul.f32 %v3447, 1.442695
        %v3794 = vpow.pop %v3793
        %v3795 = vmul.f32 %v3448, 1.442695
        %v3796 = vpow.pop %v3795
        %v3797 = vmul.f32 %v3449, 1.442695
        %v3798 = vpow.pop %v3797
        %v3799 = vmul.f32 %v3450, 1.442695
        %v3800 = vpow.pop %v3799
        %v3801 = vmul.f32 %v3451, 1.442695
        %v3802 = vpow.pop %v3801
        %v3803 = vmul.f32 %v3452, 1.442695
        %v3804 = vpow.pop %v3803
        %v3805 = vmul.f32 %v3453, 1.442695
        %v3806 = vpow.pop %v3805
        %v3807 = vmul.f32 %v3454, 1.442695
        %v3808 = vpow.pop %v3807
        %v3809 = vmul.f32 %v3455, 1.442695
        %v3810 = vpow.pop %v3809
        %v3811 = vmul.f32 %v3456, 1.442695
        %v3812 = vpow.pop %v3811
        %v3813 = vmul.f32 %v3457, 1.442695
        %v3814 = vpow.pop %v3813
        %v3815 = vmul.f32 %v3458, 1.442695
        %v3816 = vpow.pop %v3815
        %v3817 = vmul.f32 %v3459, 1.442695
        %v3818 = vpow.pop %v3817
        %v3819 = vmul.f32 %v3460, 1.442695
        %v3820 = vpow.pop %v3819
        %v3821 = vmul.f32 %v3461, 1.442695
        %v3822 = vpow.pop %v3821
        %v3823 = vmul.f32 %v3462, 1.442695
        %v3824 = vpow.pop %v3823
        %v3825 = vmul.f32 %v3463, 1.442695
        %v3826 = vpow.pop %v3825
        %v3827 = vmul.f32 %v3464, 1.442695
        %v3828 = vpow.pop %v3827
        %v3829 = vmul.f32 %v3465, 1.442695
        %v3830 = vpow.pop %v3829
        %v3831 = vmul.f32 %v3466, 1.442695
        %v3832 = vpow.pop %v3831
        %v3833 = vmul.f32 %v3467, 1.442695
        %v3834 = vpow.pop %v3833
        %v3835 = vmul.f32 %v3468, 1.442695
        %v3836 = vpow.pop %v3835
        %v3837 = vmul.f32 %v3469, 1.442695
        %v3838 = vpow.pop %v3837
        %v3839 = vmul.f32 %v3470, 1.442695
        %v3840 = vpow.pop %v3839
        %v3841 = vmul.f32 %v3471, 1.442695
        %v3842 = vpow.pop %v3841
        %v3843 = vmul.f32 %v3472, 1.442695
        %v3844 = vpow.pop %v3843
        %v3845 = vmul.f32 %v3473, 1.442695
        %v3846 = vpow.pop %v3845
        %v3847 = vmul.f32 %v3474, 1.442695
        %v3848 = vpow.pop %v3847
        %v3849 = vmul.f32 %v3475, 1.442695
        %v3850 = vpow.pop %v3849
        %v3851 = vmul.f32 %v3476, 1.442695
        %v3852 = vpow.pop %v3851
        %v3853 = vmul.f32 %v3477, 1.442695
        %v3854 = vpow.pop %v3853
        %v3855 = vmul.f32 %v3478, 1.442695
        %v3856 = vpow.pop %v3855
        %v3857 = vmul.f32 %v3479, 1.442695
        %v3858 = vpow.pop %v3857
        %v3859 = vmul.f32 %v3480, 1.442695
        %v3860 = vpow.pop %v3859
        %v3861 = vmul.f32 %v3481, 1.442695
        %v3862 = vpow.pop %v3861
        %v3863 = vmul.f32 %v3482, 1.442695
        %v3864 = vpow.pop %v3863
        %v3865 = vmul.f32 %v3483, 1.442695
        %v3866 = vpow.pop %v3865
        %v3867 = vmul.f32 %v3484, 1.442695
        %v3868 = vpow.pop %v3867
        %v3869 = vmul.f32 %v3485, 1.442695
        %v3870 = vpow.pop %v3869
        %v3871 = vmul.f32 %v3486, 1.442695
        %v3872 = vpow.pop %v3871
        %v3873 = vmul.f32 %v3487, 1.442695
        %v3874 = vpow.pop %v3873
        %v3875 = vmul.f32 %v3488, 1.442695
        %v3876 = vpow.pop %v3875
        %v3877 = vmul.f32 %v3489, 1.442695
        %v3878 = vpow.pop %v3877
        %v3879 = vmul.f32 %v3490, 1.442695
        %v3880 = vpow.pop %v3879
        %v3881 = vmul.f32 %v3491, 1.442695
        %v3882 = vpow.pop %v3881
        %v3883 = vmul.f32 %v3492, 1.442695
        %v3884 = vpow.pop %v3883
        %v3885 = vmul.f32 %v3493, 1.442695
        %v3886 = vpow.pop %v3885
        %v3887 = vmul.f32 %v3494, 1.442695
        %v3888 = vpow.pop %v3887
        %v3889 = vmul.f32 %v3495, 1.442695
        %v3890 = vpow.pop %v3889
        %v3891 = vmul.f32 %v3496, 1.442695
        %v3892 = vpow.pop %v3891
        %v3893 = vmul.f32 %v3497, 1.442695
        %v3894 = vpow.pop %v3893
        %v3895 = vmul.f32 %v3498, 1.442695
        %v3896 = vpow.pop %v3895
        %v3897 = vmul.f32 %v3499, 1.442695
        %v3898 = vpow.pop %v3897
        %v3899 = vmul.f32 %v3500, 1.442695
        %v3900 = vpow.pop %v3899
        %v3901 = vmul.f32 %v3501, 1.442695
        %v3902 = vpow.pop %v3901
        %v3903 = vmul.f32 %v3502, 1.442695
        %v3904 = vpow.pop %v3903
        %v3905 = vmul.f32 %v3503, 1.442695
        %v3906 = vpow.pop %v3905
        %v3907 = vmul.f32 %v3504, 1.442695
        %v3908 = vpow.pop %v3907
        %v3909 = vmul.f32 %v3505, 1.442695
        %v3910 = vpow.pop %v3909
        %v3911 = vmul.f32 %v3506, 1.442695
        %v3912 = vpow.pop %v3911
        %v3913 = vmul.f32 %v3507, 1.442695
        %v3914 = vpow.pop %v3913
        %v3915 = vmul.f32 %v3508, 1.442695
        %v3916 = vpow.pop %v3915
        %v3917 = vmul.f32 %v3509, 1.442695
        %v3918 = vpow.pop %v3917
        %v3919 = vmul.f32 %v3510, 1.442695
        %v3920 = vpow.pop %v3919
        %v3921 = vmul.f32 %v3511, 1.442695
        %v3922 = vpow.pop %v3921
        %v3923 = vmul.f32 %v3512, 1.442695
        %v3924 = vpow.pop %v3923
        %v3925 = vmul.f32 %v3513, 1.442695
        %v3926 = vpow.pop %v3925
        %v3927 = vmul.f32 %v3514, 1.442695
        %v3928 = vpow.pop %v3927
        %v3929 = vmul.f32 %v3515, 1.442695
        %v3930 = vpow.pop %v3929
        %v3931 = vmul.f32 %v3516, 1.442695
        %v3932 = vpow.pop %v3931
        %v3933 = vmul.f32 %v3517, 1.442695
        %v3934 = vpow.pop %v3933
        %v3935 = vmul.f32 %v3518, 1.442695
        %v3936 = vpow.pop %v3935
        %v3937 = vmul.f32 %v3519, 1.442695
        %v3938 = vpow.pop %v3937
        %v3939 = vmul.f32 %v3520, 1.442695
        %v3940 = vpow.pop %v3939
        %v3941 = vmul.f32 %v3521, 1.442695
        %v3942 = vpow.pop %v3941
        %v3943 = vmul.f32 %v3522, 1.442695
        %v3944 = vpow.pop %v3943
        %v3945 = vmul.f32 %v3523, 1.442695
        %v3946 = vpow.pop %v3945
        %v3947 = vmul.f32 %v3524, 1.442695
        %v3948 = vpow.pop %v3947
        %v3949 = vmul.f32 %v3525, 1.442695
        %v3950 = vpow.pop %v3949
        %v3951 = vmul.f32 %v3526, 1.442695
        %v3952 = vpow.pop %v3951
        %v3953 = vmul.f32 %v3527, 1.442695
        %v3954 = vpow.pop %v3953
        %v3955 = vmul.f32 %v3528, 1.442695
        %v3956 = vpow.pop %v3955
        %v3957 = vmul.f32 %v3529, 1.442695
        %v3958 = vpow.pop %v3957
        %v3959 = vmul.f32 %v3530, 1.442695
        %v3960 = vpow.pop %v3959
        %v3961 = vmul.f32 %v3531, 1.442695
        %v3962 = vpow.pop %v3961
        %v3963 = vmul.f32 %v3532, 1.442695
        %v3964 = vpow.pop %v3963
        %v3965 = vmul.f32 %v3533, 1.442695
        %v3966 = vpow.pop %v3965
        %v3967 = vmul.f32 %v3534, 1.442695
        %v3968 = vpow.pop %v3967
        %v3969 = vmul.f32 %v3535, 1.442695
        %v3970 = vpow.pop %v3969
        %v3971 = vmul.f32 %v3536, 1.442695
        %v3972 = vpow.pop %v3971
        %v3973 = vmul.f32 %v3537, 1.442695
        %v3974 = vpow.pop %v3973
        %v3975 = vmul.f32 %v3538, 1.442695
        %v3976 = vpow.pop %v3975
        %v3977 = vmul.f32 %v3539, 1.442695
        %v3978 = vpow.pop %v3977
        %v3979 = vmul.f32 %v3540, 1.442695
        %v3980 = vpow.pop %v3979
        %v3981 = vmul.f32 %v3541, 1.442695
        %v3982 = vpow.pop %v3981
        %v3983 = vmul.f32 %v3542, 1.442695
        %v3984 = vpow.pop %v3983
        %v3985 = vmul.f32 %v3543, 1.442695
        %v3986 = vpow.pop %v3985
        %v3987 = vmul.f32 %v3544, 1.442695
        %v3988 = vpow.pop %v3987
        %v3989 = vmul.f32 %v3545, 1.442695
        %v3990 = vpow.pop %v3989
        %v3991 = vmul.f32 %v3546, 1.442695
        %v3992 = vpow.pop %v3991
        %v3993 = vmul.f32 %v3547, 1.442695
        %v3994 = vpow.pop %v3993
        %v3995 = vmul.f32 %v3548, 1.442695
        %v3996 = vpow.pop %v3995
        %v3997 = vmul.f32 %v3549, 1.442695
        %v3998 = vpow.pop %v3997
        %v3999 = vmul.f32 %v3550, 1.442695
        %v4000 = vpow.pop %v3999
        %v4001 = vmul.f32 %v3551, 1.442695
        %v4002 = vpow.pop %v4001
        %v4003 = vmul.f32 %v3552, 1.442695
        %v4004 = vpow.pop %v4003
        %v4005 = vmul.f32 %v3553, 1.442695
        %v4006 = vpow.pop %v4005
        %v4007 = vmul.f32 %v3554, 1.442695
        %v4008 = vpow.pop %v4007
        %v4009 = vmul.f32 %v3555, 1.442695
        %v4010 = vpow.pop %v4009
        %v4011 = vmul.f32 %v3556, 1.442695
        %v4012 = vpow.pop %v4011
        %v4013 = vmul.f32 %v3557, 1.442695
        %v4014 = vpow.pop %v4013
        %v4015 = vmul.f32 %v3558, 1.442695
        %v4016 = vpow.pop %v4015
        %v4017 = vmul.f32 %v3559, 1.442695
        %v4018 = vpow.pop %v4017
        %v4019 = vmul.f32 %v3560, 1.442695
        %v4020 = vpow.pop %v4019
        %v4021 = vmul.f32 %v3561, 1.442695
        %v4022 = vpow.pop %v4021
        %v4023 = vmul.f32 %v3562, 1.442695
        %v4024 = vpow.pop %v4023
        %v4025 = vmul.f32 %v3563, 1.442695
        %v4026 = vpow.pop %v4025
        %v4027 = vmul.f32 %v3564, 1.442695
        %v4028 = vpow.pop %v4027
        %v4029 = vmul.f32 %v3565, 1.442695
        %v4030 = vpow.pop %v4029
        %v4031 = vmul.f32 %v3566, 1.442695
        %v4032 = vpow.pop %v4031
        %v4033 = vmul.f32 %v3567, 1.442695
        %v4034 = vpow.pop %v4033
        %v4035 = vmul.f32 %v3568, 1.442695
        %v4036 = vpow.pop %v4035
        %v4037 = vmul.f32 %v3569, 1.442695
        %v4038 = vpow.pop %v4037
        %v4039 = vmul.f32 %v3570, 1.442695
        %v4040 = vpow.pop %v4039
        %v4041 = vmul.f32 %v3571, 1.442695
        %v4042 = vpow.pop %v4041
        %v4043 = vmul.f32 %v3572, 1.442695
        %v4044 = vpow.pop %v4043
        %v4045 = vmul.f32 %v3573, 1.442695
        %v4046 = vpow.pop %v4045
        %v4047 = vmul.f32 %v3574, 1.442695
        %v4048 = vpow.pop %v4047
        %v4049 = vmul.f32 %v3575, 1.442695
        %v4050 = vpow.pop %v4049
        %v4051 = vmul.f32 %v3576, 1.442695
        %v4052 = vpow.pop %v4051
        %v4053 = vmul.f32 %v3577, 1.442695
        %v4054 = vpow.pop %v4053
        %v4055 = vmul.f32 %v3578, 1.442695
        %v4056 = vpow.pop %v4055
        %v4057 = vmul.f32 %v3579, 1.442695
        %v4058 = vpow.pop %v4057
        %v4059 = vmul.f32 %v3580, 1.442695
        %v4060 = vpow.pop %v4059
        %v4061 = vmul.f32 %v3581, 1.442695
        %v4062 = vpow.pop %v4061
        %v4063 = vmul.f32 %v3582, 1.442695
        %v4064 = vpow.pop %v4063
        %v4065 = vmul.f32 %v3583, 1.442695
        %v4066 = vpow.pop %v4065
        %v4067 = vmul.f32 %v3584, 1.442695
        %v4068 = vpow.pop %v4067
        %v4069 = vmul.f32 %v3585, 1.442695
        %v4070 = vpow.pop %v4069
        %v4071 = vmul.f32 %v3586, 1.442695
        %v4072 = vpow.pop %v4071
        %v4073 = vmul.f32 %v3587, 1.442695
        %v4074 = vpow.pop %v4073
        %v4075 = vmul.f32 %v3588, 1.442695
        %v4076 = vpow.pop %v4075
        %v4077 = vmul.f32 %v3589, 1.442695
        %v4078 = vpow.pop %v4077
        %v4079 = vmul.f32 %v3590, 1.442695
        %v4080 = vpow.pop %v4079
        %v4081 = vmul.f32 %v3591, 1.442695
        %v4082 = vpow.pop %v4081
        %v4083 = vmul.f32 %v3592, 1.442695
        %v4084 = vpow.pop %v4083
        %v4085 = vmul.f32 %v3593, 1.442695
        %v4086 = vpow.pop %v4085
        %v4087 = vmul.f32 %v3594, 1.442695
        %v4088 = vpow.pop %v4087
        %v4089 = vmul.f32 %v3595, 1.442695
        %v4090 = vpow.pop %v4089
        %v4091 = vmul.f32 %v3596, 1.442695
        %v4092 = vpow.pop %v4091
        %v4093 = vmul.f32 %v3597, 1.442695
        %v4094 = vpow.pop %v4093
        %v4095 = vmul.f32 %v3598, 1.442695
        %v4096 = vpow.pop %v4095
        %v4097 = vmul.f32 %v3599, 1.442695
        %v4098 = vpow.pop %v4097
        %v4099 = vmul.f32 %v3600, 1.442695
        %v4100 = vpow.pop %v4099
        %v4101 = vmul.f32 %v3601, 1.442695
        %v4102 = vpow.pop %v4101
        %v4103 = vmul.f32 %v3602, 1.442695
        %v4104 = vpow.pop %v4103
        %v4105 = vmul.f32 %v3603, 1.442695
        %v4106 = vpow.pop %v4105
        %v4107 = vmul.f32 %v3604, 1.442695
        %v4108 = vpow.pop %v4107
        %v4109 = vmul.f32 %v3605, 1.442695
        %v4110 = vpow.pop %v4109
        %v4111 = vmul.f32 %v3606, 1.442695
        %v4112 = vpow.pop %v4111
        %v4113 = vmul.f32 %v3607, 1.442695
        %v4114 = vpow.pop %v4113
        %v4115 = vmul.f32 %v3608, 1.442695
        %v4116 = vpow.pop %v4115
        %v4117 = vmul.f32 %v3609, 1.442695
        %v4118 = vpow.pop %v4117
        %v4119 = vmul.f32 %v3610, 1.442695
        %v4120 = vpow.pop %v4119
        %v4121 = vmul.f32 %v3611, 1.442695
        %v4122 = vpow.pop %v4121
        %v4123 = vmul.f32 %v3612, 1.442695
        %v4124 = vpow.pop %v4123
        %v4125 = vadd.f32 %v3614, 1.0
        %v4126 = vadd.f32 %v3616, 1.0
        %v4127 = vadd.f32 %v3618, 1.0
        %v4128 = vadd.f32 %v3620, 1.0
        %v4129 = vadd.f32 %v3622, 1.0
        %v4130 = vadd.f32 %v3624, 1.0
        %v4131 = vadd.f32 %v3626, 1.0
        %v4132 = vadd.f32 %v3628, 1.0
        %v4133 = vadd.f32 %v3630, 1.0
        %v4134 = vadd.f32 %v3632, 1.0
        %v4135 = vadd.f32 %v3634, 1.0
        %v4136 = vadd.f32 %v3636, 1.0
        %v4137 = vadd.f32 %v3638, 1.0
        %v4138 = vadd.f32 %v3640, 1.0
        %v4139 = vadd.f32 %v3642, 1.0
        %v4140 = vadd.f32 %v3644, 1.0
        %v4141 = vadd.f32 %v3646, 1.0
        %v4142 = vadd.f32 %v3648, 1.0
        %v4143 = vadd.f32 %v3650, 1.0
        %v4144 = vadd.f32 %v3652, 1.0
        %v4145 = vadd.f32 %v3654, 1.0
        %v4146 = vadd.f32 %v3656, 1.0
        %v4147 = vadd.f32 %v3658, 1.0
        %v4148 = vadd.f32 %v3660, 1.0
        %v4149 = vadd.f32 %v3662, 1.0
        %v4150 = vadd.f32 %v3664, 1.0
        %v4151 = vadd.f32 %v3666, 1.0
        %v4152 = vadd.f32 %v3668, 1.0
        %v4153 = vadd.f32 %v3670, 1.0
        %v4154 = vadd.f32 %v3672, 1.0
        %v4155 = vadd.f32 %v3674, 1.0
        %v4156 = vadd.f32 %v3676, 1.0
        %v4157 = vadd.f32 %v3678, 1.0
        %v4158 = vadd.f32 %v3680, 1.0
        %v4159 = vadd.f32 %v3682, 1.0
        %v4160 = vadd.f32 %v3684, 1.0
        %v4161 = vadd.f32 %v3686, 1.0
        %v4162 = vadd.f32 %v3688, 1.0
        %v4163 = vadd.f32 %v3690, 1.0
        %v4164 = vadd.f32 %v3692, 1.0
        %v4165 = vadd.f32 %v3694, 1.0
        %v4166 = vadd.f32 %v3696, 1.0
        %v4167 = vadd.f32 %v3698, 1.0
        %v4168 = vadd.f32 %v3700, 1.0
        %v4169 = vadd.f32 %v3702, 1.0
        %v4170 = vadd.f32 %v3704, 1.0
        %v4171 = vadd.f32 %v3706, 1.0
        %v4172 = vadd.f32 %v3708, 1.0
        %v4173 = vadd.f32 %v3710, 1.0
        %v4174 = vadd.f32 %v3712, 1.0
        %v4175 = vadd.f32 %v3714, 1.0
        %v4176 = vadd.f32 %v3716, 1.0
        %v4177 = vadd.f32 %v3718, 1.0
        %v4178 = vadd.f32 %v3720, 1.0
        %v4179 = vadd.f32 %v3722, 1.0
        %v4180 = vadd.f32 %v3724, 1.0
        %v4181 = vadd.f32 %v3726, 1.0
        %v4182 = vadd.f32 %v3728, 1.0
        %v4183 = vadd.f32 %v3730, 1.0
        %v4184 = vadd.f32 %v3732, 1.0
        %v4185 = vadd.f32 %v3734, 1.0
        %v4186 = vadd.f32 %v3736, 1.0
        %v4187 = vadd.f32 %v3738, 1.0
        %v4188 = vadd.f32 %v3740, 1.0
        %v4189 = vadd.f32 %v3742, 1.0
        %v4190 = vadd.f32 %v3744, 1.0
        %v4191 = vadd.f32 %v3746, 1.0
        %v4192 = vadd.f32 %v3748, 1.0
        %v4193 = vadd.f32 %v3750, 1.0
        %v4194 = vadd.f32 %v3752, 1.0
        %v4195 = vadd.f32 %v3754, 1.0
        %v4196 = vadd.f32 %v3756, 1.0
        %v4197 = vadd.f32 %v3758, 1.0
        %v4198 = vadd.f32 %v3760, 1.0
        %v4199 = vadd.f32 %v3762, 1.0
        %v4200 = vadd.f32 %v3764, 1.0
        %v4201 = vadd.f32 %v3766, 1.0
        %v4202 = vadd.f32 %v3768, 1.0
        %v4203 = vadd.f32 %v3770, 1.0
        %v4204 = vadd.f32 %v3772, 1.0
        %v4205 = vadd.f32 %v3774, 1.0
        %v4206 = vadd.f32 %v3776, 1.0
        %v4207 = vadd.f32 %v3778, 1.0
        %v4208 = vadd.f32 %v3780, 1.0
        %v4209 = vadd.f32 %v3782, 1.0
        %v4210 = vadd.f32 %v3784, 1.0
        %v4211 = vadd.f32 %v3786, 1.0
        %v4212 = vadd.f32 %v3788, 1.0
        %v4213 = vadd.f32 %v3790, 1.0
        %v4214 = vadd.f32 %v3792, 1.0
        %v4215 = vadd.f32 %v3794, 1.0
        %v4216 = vadd.f32 %v3796, 1.0
        %v4217 = vadd.f32 %v3798, 1.0
        %v4218 = vadd.f32 %v3800, 1.0
        %v4219 = vadd.f32 %v3802, 1.0
        %v4220 = vadd.f32 %v3804, 1.0
        %v4221 = vadd.f32 %v3806, 1.0
        %v4222 = vadd.f32 %v3808, 1.0
        %v4223 = vadd.f32 %v3810, 1.0
        %v4224 = vadd.f32 %v3812, 1.0
        %v4225 = vadd.f32 %v3814, 1.0
        %v4226 = vadd.f32 %v3816, 1.0
        %v4227 = vadd.f32 %v3818, 1.0
        %v4228 = vadd.f32 %v3820, 1.0
        %v4229 = vadd.f32 %v3822, 1.0
        %v4230 = vadd.f32 %v3824, 1.0
        %v4231 = vadd.f32 %v3826, 1.0
        %v4232 = vadd.f32 %v3828, 1.0
        %v4233 = vadd.f32 %v3830, 1.0
        %v4234 = vadd.f32 %v3832, 1.0
        %v4235 = vadd.f32 %v3834, 1.0
        %v4236 = vadd.f32 %v3836, 1.0
        %v4237 = vadd.f32 %v3838, 1.0
        %v4238 = vadd.f32 %v3840, 1.0
        %v4239 = vadd.f32 %v3842, 1.0
        %v4240 = vadd.f32 %v3844, 1.0
        %v4241 = vadd.f32 %v3846, 1.0
        %v4242 = vadd.f32 %v3848, 1.0
        %v4243 = vadd.f32 %v3850, 1.0
        %v4244 = vadd.f32 %v3852, 1.0
        %v4245 = vadd.f32 %v3854, 1.0
        %v4246 = vadd.f32 %v3856, 1.0
        %v4247 = vadd.f32 %v3858, 1.0
        %v4248 = vadd.f32 %v3860, 1.0
        %v4249 = vadd.f32 %v3862, 1.0
        %v4250 = vadd.f32 %v3864, 1.0
        %v4251 = vadd.f32 %v3866, 1.0
        %v4252 = vadd.f32 %v3868, 1.0
        %v4253 = vadd.f32 %v3870, 1.0
        %v4254 = vadd.f32 %v3872, 1.0
        %v4255 = vadd.f32 %v3874, 1.0
        %v4256 = vadd.f32 %v3876, 1.0
        %v4257 = vadd.f32 %v3878, 1.0
        %v4258 = vadd.f32 %v3880, 1.0
        %v4259 = vadd.f32 %v3882, 1.0
        %v4260 = vadd.f32 %v3884, 1.0
        %v4261 = vadd.f32 %v3886, 1.0
        %v4262 = vadd.f32 %v3888, 1.0
        %v4263 = vadd.f32 %v3890, 1.0
        %v4264 = vadd.f32 %v3892, 1.0
        %v4265 = vadd.f32 %v3894, 1.0
        %v4266 = vadd.f32 %v3896, 1.0
        %v4267 = vadd.f32 %v3898, 1.0
        %v4268 = vadd.f32 %v3900, 1.0
        %v4269 = vadd.f32 %v3902, 1.0
        %v4270 = vadd.f32 %v3904, 1.0
        %v4271 = vadd.f32 %v3906, 1.0
        %v4272 = vadd.f32 %v3908, 1.0
        %v4273 = vadd.f32 %v3910, 1.0
        %v4274 = vadd.f32 %v3912, 1.0
        %v4275 = vadd.f32 %v3914, 1.0
        %v4276 = vadd.f32 %v3916, 1.0
        %v4277 = vadd.f32 %v3918, 1.0
        %v4278 = vadd.f32 %v3920, 1.0
        %v4279 = vadd.f32 %v3922, 1.0
        %v4280 = vadd.f32 %v3924, 1.0
        %v4281 = vadd.f32 %v3926, 1.0
        %v4282 = vadd.f32 %v3928, 1.0
        %v4283 = vadd.f32 %v3930, 1.0
        %v4284 = vadd.f32 %v3932, 1.0
        %v4285 = vadd.f32 %v3934, 1.0
        %v4286 = vadd.f32 %v3936, 1.0
        %v4287 = vadd.f32 %v3938, 1.0
        %v4288 = vadd.f32 %v3940, 1.0
        %v4289 = vadd.f32 %v3942, 1.0
        %v4290 = vadd.f32 %v3944, 1.0
        %v4291 = vadd.f32 %v3946, 1.0
        %v4292 = vadd.f32 %v3948, 1.0
        %v4293 = vadd.f32 %v3950, 1.0
        %v4294 = vadd.f32 %v3952, 1.0
        %v4295 = vadd.f32 %v3954, 1.0
        %v4296 = vadd.f32 %v3956, 1.0
        %v4297 = vadd.f32 %v3958, 1.0
        %v4298 = vadd.f32 %v3960, 1.0
        %v4299 = vadd.f32 %v3962, 1.0
        %v4300 = vadd.f32 %v3964, 1.0
        %v4301 = vadd.f32 %v3966, 1.0
        %v4302 = vadd.f32 %v3968, 1.0
        %v4303 = vadd.f32 %v3970, 1.0
        %v4304 = vadd.f32 %v3972, 1.0
        %v4305 = vadd.f32 %v3974, 1.0
        %v4306 = vadd.f32 %v3976, 1.0
        %v4307 = vadd.f32 %v3978, 1.0
        %v4308 = vadd.f32 %v3980, 1.0
        %v4309 = vadd.f32 %v3982, 1.0
        %v4310 = vadd.f32 %v3984, 1.0
        %v4311 = vadd.f32 %v3986, 1.0
        %v4312 = vadd.f32 %v3988, 1.0
        %v4313 = vadd.f32 %v3990, 1.0
        %v4314 = vadd.f32 %v3992, 1.0
        %v4315 = vadd.f32 %v3994, 1.0
        %v4316 = vadd.f32 %v3996, 1.0
        %v4317 = vadd.f32 %v3998, 1.0
        %v4318 = vadd.f32 %v4000, 1.0
        %v4319 = vadd.f32 %v4002, 1.0
        %v4320 = vadd.f32 %v4004, 1.0
        %v4321 = vadd.f32 %v4006, 1.0
        %v4322 = vadd.f32 %v4008, 1.0
        %v4323 = vadd.f32 %v4010, 1.0
        %v4324 = vadd.f32 %v4012, 1.0
        %v4325 = vadd.f32 %v4014, 1.0
        %v4326 = vadd.f32 %v4016, 1.0
        %v4327 = vadd.f32 %v4018, 1.0
        %v4328 = vadd.f32 %v4020, 1.0
        %v4329 = vadd.f32 %v4022, 1.0
        %v4330 = vadd.f32 %v4024, 1.0
        %v4331 = vadd.f32 %v4026, 1.0
        %v4332 = vadd.f32 %v4028, 1.0
        %v4333 = vadd.f32 %v4030, 1.0
        %v4334 = vadd.f32 %v4032, 1.0
        %v4335 = vadd.f32 %v4034, 1.0
        %v4336 = vadd.f32 %v4036, 1.0
        %v4337 = vadd.f32 %v4038, 1.0
        %v4338 = vadd.f32 %v4040, 1.0
        %v4339 = vadd.f32 %v4042, 1.0
        %v4340 = vadd.f32 %v4044, 1.0
        %v4341 = vadd.f32 %v4046, 1.0
        %v4342 = vadd.f32 %v4048, 1.0
        %v4343 = vadd.f32 %v4050, 1.0
        %v4344 = vadd.f32 %v4052, 1.0
        %v4345 = vadd.f32 %v4054, 1.0
        %v4346 = vadd.f32 %v4056, 1.0
        %v4347 = vadd.f32 %v4058, 1.0
        %v4348 = vadd.f32 %v4060, 1.0
        %v4349 = vadd.f32 %v4062, 1.0
        %v4350 = vadd.f32 %v4064, 1.0
        %v4351 = vadd.f32 %v4066, 1.0
        %v4352 = vadd.f32 %v4068, 1.0
        %v4353 = vadd.f32 %v4070, 1.0
        %v4354 = vadd.f32 %v4072, 1.0
        %v4355 = vadd.f32 %v4074, 1.0
        %v4356 = vadd.f32 %v4076, 1.0
        %v4357 = vadd.f32 %v4078, 1.0
        %v4358 = vadd.f32 %v4080, 1.0
        %v4359 = vadd.f32 %v4082, 1.0
        %v4360 = vadd.f32 %v4084, 1.0
        %v4361 = vadd.f32 %v4086, 1.0
        %v4362 = vadd.f32 %v4088, 1.0
        %v4363 = vadd.f32 %v4090, 1.0
        %v4364 = vadd.f32 %v4092, 1.0
        %v4365 = vadd.f32 %v4094, 1.0
        %v4366 = vadd.f32 %v4096, 1.0
        %v4367 = vadd.f32 %v4098, 1.0
        %v4368 = vadd.f32 %v4100, 1.0
        %v4369 = vadd.f32 %v4102, 1.0
        %v4370 = vadd.f32 %v4104, 1.0
        %v4371 = vadd.f32 %v4106, 1.0
        %v4372 = vadd.f32 %v4108, 1.0
        %v4373 = vadd.f32 %v4110, 1.0
        %v4374 = vadd.f32 %v4112, 1.0
        %v4375 = vadd.f32 %v4114, 1.0
        %v4376 = vadd.f32 %v4116, 1.0
        %v4377 = vadd.f32 %v4118, 1.0
        %v4378 = vadd.f32 %v4120, 1.0
        %v4379 = vadd.f32 %v4122, 1.0
        %v4380 = vadd.f32 %v4124, 1.0
        %v4381 = vrcp.pop %v4125
        %v4382 = vmul.f32 1.0, %v4381
        %v4383 = vrcp.pop %v4126
        %v4384 = vmul.f32 1.0, %v4383
        %v4385 = vrcp.pop %v4127
        %v4386 = vmul.f32 1.0, %v4385
        %v4387 = vrcp.pop %v4128
        %v4388 = vmul.f32 1.0, %v4387
        %v4389 = vrcp.pop %v4129
        %v4390 = vmul.f32 1.0, %v4389
        %v4391 = vrcp.pop %v4130
        %v4392 = vmul.f32 1.0, %v4391
        %v4393 = vrcp.pop %v4131
        %v4394 = vmul.f32 1.0, %v4393
        %v4395 = vrcp.pop %v4132
        %v4396 = vmul.f32 1.0, %v4395
        %v4397 = vrcp.pop %v4133
        %v4398 = vmul.f32 1.0, %v4397
        %v4399 = vrcp.pop %v4134
        %v4400 = vmul.f32 1.0, %v4399
        %v4401 = vrcp.pop %v4135
        %v4402 = vmul.f32 1.0, %v4401
        %v4403 = vrcp.pop %v4136
        %v4404 = vmul.f32 1.0, %v4403
        %v4405 = vrcp.pop %v4137
        %v4406 = vmul.f32 1.0, %v4405
        %v4407 = vrcp.pop %v4138
        %v4408 = vmul.f32 1.0, %v4407
        %v4409 = vrcp.pop %v4139
        %v4410 = vmul.f32 1.0, %v4409
        %v4411 = vrcp.pop %v4140
        %v4412 = vmul.f32 1.0, %v4411
        %v4413 = vrcp.pop %v4141
        %v4414 = vmul.f32 1.0, %v4413
        %v4415 = vrcp.pop %v4142
        %v4416 = vmul.f32 1.0, %v4415
        %v4417 = vrcp.pop %v4143
        %v4418 = vmul.f32 1.0, %v4417
        %v4419 = vrcp.pop %v4144
        %v4420 = vmul.f32 1.0, %v4419
        %v4421 = vrcp.pop %v4145
        %v4422 = vmul.f32 1.0, %v4421
        %v4423 = vrcp.pop %v4146
        %v4424 = vmul.f32 1.0, %v4423
        %v4425 = vrcp.pop %v4147
        %v4426 = vmul.f32 1.0, %v4425
        %v4427 = vrcp.pop %v4148
        %v4428 = vmul.f32 1.0, %v4427
        %v4429 = vrcp.pop %v4149
        %v4430 = vmul.f32 1.0, %v4429
        %v4431 = vrcp.pop %v4150
        %v4432 = vmul.f32 1.0, %v4431
        %v4433 = vrcp.pop %v4151
        %v4434 = vmul.f32 1.0, %v4433
        %v4435 = vrcp.pop %v4152
        %v4436 = vmul.f32 1.0, %v4435
        %v4437 = vrcp.pop %v4153
        %v4438 = vmul.f32 1.0, %v4437
        %v4439 = vrcp.pop %v4154
        %v4440 = vmul.f32 1.0, %v4439
        %v4441 = vrcp.pop %v4155
        %v4442 = vmul.f32 1.0, %v4441
        %v4443 = vrcp.pop %v4156
        %v4444 = vmul.f32 1.0, %v4443
        %v4445 = vrcp.pop %v4157
        %v4446 = vmul.f32 1.0, %v4445
        %v4447 = vrcp.pop %v4158
        %v4448 = vmul.f32 1.0, %v4447
        %v4449 = vrcp.pop %v4159
        %v4450 = vmul.f32 1.0, %v4449
        %v4451 = vrcp.pop %v4160
        %v4452 = vmul.f32 1.0, %v4451
        %v4453 = vrcp.pop %v4161
        %v4454 = vmul.f32 1.0, %v4453
        %v4455 = vrcp.pop %v4162
        %v4456 = vmul.f32 1.0, %v4455
        %v4457 = vrcp.pop %v4163
        %v4458 = vmul.f32 1.0, %v4457
        %v4459 = vrcp.pop %v4164
        %v4460 = vmul.f32 1.0, %v4459
        %v4461 = vrcp.pop %v4165
        %v4462 = vmul.f32 1.0, %v4461
        %v4463 = vrcp.pop %v4166
        %v4464 = vmul.f32 1.0, %v4463
        %v4465 = vrcp.pop %v4167
        %v4466 = vmul.f32 1.0, %v4465
        %v4467 = vrcp.pop %v4168
        %v4468 = vmul.f32 1.0, %v4467
        %v4469 = vrcp.pop %v4169
        %v4470 = vmul.f32 1.0, %v4469
        %v4471 = vrcp.pop %v4170
        %v4472 = vmul.f32 1.0, %v4471
        %v4473 = vrcp.pop %v4171
        %v4474 = vmul.f32 1.0, %v4473
        %v4475 = vrcp.pop %v4172
        %v4476 = vmul.f32 1.0, %v4475
        %v4477 = vrcp.pop %v4173
        %v4478 = vmul.f32 1.0, %v4477
        %v4479 = vrcp.pop %v4174
        %v4480 = vmul.f32 1.0, %v4479
        %v4481 = vrcp.pop %v4175
        %v4482 = vmul.f32 1.0, %v4481
        %v4483 = vrcp.pop %v4176
        %v4484 = vmul.f32 1.0, %v4483
        %v4485 = vrcp.pop %v4177
        %v4486 = vmul.f32 1.0, %v4485
        %v4487 = vrcp.pop %v4178
        %v4488 = vmul.f32 1.0, %v4487
        %v4489 = vrcp.pop %v4179
        %v4490 = vmul.f32 1.0, %v4489
        %v4491 = vrcp.pop %v4180
        %v4492 = vmul.f32 1.0, %v4491
        %v4493 = vrcp.pop %v4181
        %v4494 = vmul.f32 1.0, %v4493
        %v4495 = vrcp.pop %v4182
        %v4496 = vmul.f32 1.0, %v4495
        %v4497 = vrcp.pop %v4183
        %v4498 = vmul.f32 1.0, %v4497
        %v4499 = vrcp.pop %v4184
        %v4500 = vmul.f32 1.0, %v4499
        %v4501 = vrcp.pop %v4185
        %v4502 = vmul.f32 1.0, %v4501
        %v4503 = vrcp.pop %v4186
        %v4504 = vmul.f32 1.0, %v4503
        %v4505 = vrcp.pop %v4187
        %v4506 = vmul.f32 1.0, %v4505
        %v4507 = vrcp.pop %v4188
        %v4508 = vmul.f32 1.0, %v4507
        %v4509 = vrcp.pop %v4189
        %v4510 = vmul.f32 1.0, %v4509
        %v4511 = vrcp.pop %v4190
        %v4512 = vmul.f32 1.0, %v4511
        %v4513 = vrcp.pop %v4191
        %v4514 = vmul.f32 1.0, %v4513
        %v4515 = vrcp.pop %v4192
        %v4516 = vmul.f32 1.0, %v4515
        %v4517 = vrcp.pop %v4193
        %v4518 = vmul.f32 1.0, %v4517
        %v4519 = vrcp.pop %v4194
        %v4520 = vmul.f32 1.0, %v4519
        %v4521 = vrcp.pop %v4195
        %v4522 = vmul.f32 1.0, %v4521
        %v4523 = vrcp.pop %v4196
        %v4524 = vmul.f32 1.0, %v4523
        %v4525 = vrcp.pop %v4197
        %v4526 = vmul.f32 1.0, %v4525
        %v4527 = vrcp.pop %v4198
        %v4528 = vmul.f32 1.0, %v4527
        %v4529 = vrcp.pop %v4199
        %v4530 = vmul.f32 1.0, %v4529
        %v4531 = vrcp.pop %v4200
        %v4532 = vmul.f32 1.0, %v4531
        %v4533 = vrcp.pop %v4201
        %v4534 = vmul.f32 1.0, %v4533
        %v4535 = vrcp.pop %v4202
        %v4536 = vmul.f32 1.0, %v4535
        %v4537 = vrcp.pop %v4203
        %v4538 = vmul.f32 1.0, %v4537
        %v4539 = vrcp.pop %v4204
        %v4540 = vmul.f32 1.0, %v4539
        %v4541 = vrcp.pop %v4205
        %v4542 = vmul.f32 1.0, %v4541
        %v4543 = vrcp.pop %v4206
        %v4544 = vmul.f32 1.0, %v4543
        %v4545 = vrcp.pop %v4207
        %v4546 = vmul.f32 1.0, %v4545
        %v4547 = vrcp.pop %v4208
        %v4548 = vmul.f32 1.0, %v4547
        %v4549 = vrcp.pop %v4209
        %v4550 = vmul.f32 1.0, %v4549
        %v4551 = vrcp.pop %v4210
        %v4552 = vmul.f32 1.0, %v4551
        %v4553 = vrcp.pop %v4211
        %v4554 = vmul.f32 1.0, %v4553
        %v4555 = vrcp.pop %v4212
        %v4556 = vmul.f32 1.0, %v4555
        %v4557 = vrcp.pop %v4213
        %v4558 = vmul.f32 1.0, %v4557
        %v4559 = vrcp.pop %v4214
        %v4560 = vmul.f32 1.0, %v4559
        %v4561 = vrcp.pop %v4215
        %v4562 = vmul.f32 1.0, %v4561
        %v4563 = vrcp.pop %v4216
        %v4564 = vmul.f32 1.0, %v4563
        %v4565 = vrcp.pop %v4217
        %v4566 = vmul.f32 1.0, %v4565
        %v4567 = vrcp.pop %v4218
        %v4568 = vmul.f32 1.0, %v4567
        %v4569 = vrcp.pop %v4219
        %v4570 = vmul.f32 1.0, %v4569
        %v4571 = vrcp.pop %v4220
        %v4572 = vmul.f32 1.0, %v4571
        %v4573 = vrcp.pop %v4221
        %v4574 = vmul.f32 1.0, %v4573
        %v4575 = vrcp.pop %v4222
        %v4576 = vmul.f32 1.0, %v4575
        %v4577 = vrcp.pop %v4223
        %v4578 = vmul.f32 1.0, %v4577
        %v4579 = vrcp.pop %v4224
        %v4580 = vmul.f32 1.0, %v4579
        %v4581 = vrcp.pop %v4225
        %v4582 = vmul.f32 1.0, %v4581
        %v4583 = vrcp.pop %v4226
        %v4584 = vmul.f32 1.0, %v4583
        %v4585 = vrcp.pop %v4227
        %v4586 = vmul.f32 1.0, %v4585
        %v4587 = vrcp.pop %v4228
        %v4588 = vmul.f32 1.0, %v4587
        %v4589 = vrcp.pop %v4229
        %v4590 = vmul.f32 1.0, %v4589
        %v4591 = vrcp.pop %v4230
        %v4592 = vmul.f32 1.0, %v4591
        %v4593 = vrcp.pop %v4231
        %v4594 = vmul.f32 1.0, %v4593
        %v4595 = vrcp.pop %v4232
        %v4596 = vmul.f32 1.0, %v4595
        %v4597 = vrcp.pop %v4233
        %v4598 = vmul.f32 1.0, %v4597
        %v4599 = vrcp.pop %v4234
        %v4600 = vmul.f32 1.0, %v4599
        %v4601 = vrcp.pop %v4235
        %v4602 = vmul.f32 1.0, %v4601
        %v4603 = vrcp.pop %v4236
        %v4604 = vmul.f32 1.0, %v4603
        %v4605 = vrcp.pop %v4237
        %v4606 = vmul.f32 1.0, %v4605
        %v4607 = vrcp.pop %v4238
        %v4608 = vmul.f32 1.0, %v4607
        %v4609 = vrcp.pop %v4239
        %v4610 = vmul.f32 1.0, %v4609
        %v4611 = vrcp.pop %v4240
        %v4612 = vmul.f32 1.0, %v4611
        %v4613 = vrcp.pop %v4241
        %v4614 = vmul.f32 1.0, %v4613
        %v4615 = vrcp.pop %v4242
        %v4616 = vmul.f32 1.0, %v4615
        %v4617 = vrcp.pop %v4243
        %v4618 = vmul.f32 1.0, %v4617
        %v4619 = vrcp.pop %v4244
        %v4620 = vmul.f32 1.0, %v4619
        %v4621 = vrcp.pop %v4245
        %v4622 = vmul.f32 1.0, %v4621
        %v4623 = vrcp.pop %v4246
        %v4624 = vmul.f32 1.0, %v4623
        %v4625 = vrcp.pop %v4247
        %v4626 = vmul.f32 1.0, %v4625
        %v4627 = vrcp.pop %v4248
        %v4628 = vmul.f32 1.0, %v4627
        %v4629 = vrcp.pop %v4249
        %v4630 = vmul.f32 1.0, %v4629
        %v4631 = vrcp.pop %v4250
        %v4632 = vmul.f32 1.0, %v4631
        %v4633 = vrcp.pop %v4251
        %v4634 = vmul.f32 1.0, %v4633
        %v4635 = vrcp.pop %v4252
        %v4636 = vmul.f32 1.0, %v4635
        %v4637 = vrcp.pop %v4253
        %v4638 = vmul.f32 1.0, %v4637
        %v4639 = vrcp.pop %v4254
        %v4640 = vmul.f32 1.0, %v4639
        %v4641 = vrcp.pop %v4255
        %v4642 = vmul.f32 1.0, %v4641
        %v4643 = vrcp.pop %v4256
        %v4644 = vmul.f32 1.0, %v4643
        %v4645 = vrcp.pop %v4257
        %v4646 = vmul.f32 1.0, %v4645
        %v4647 = vrcp.pop %v4258
        %v4648 = vmul.f32 1.0, %v4647
        %v4649 = vrcp.pop %v4259
        %v4650 = vmul.f32 1.0, %v4649
        %v4651 = vrcp.pop %v4260
        %v4652 = vmul.f32 1.0, %v4651
        %v4653 = vrcp.pop %v4261
        %v4654 = vmul.f32 1.0, %v4653
        %v4655 = vrcp.pop %v4262
        %v4656 = vmul.f32 1.0, %v4655
        %v4657 = vrcp.pop %v4263
        %v4658 = vmul.f32 1.0, %v4657
        %v4659 = vrcp.pop %v4264
        %v4660 = vmul.f32 1.0, %v4659
        %v4661 = vrcp.pop %v4265
        %v4662 = vmul.f32 1.0, %v4661
        %v4663 = vrcp.pop %v4266
        %v4664 = vmul.f32 1.0, %v4663
        %v4665 = vrcp.pop %v4267
        %v4666 = vmul.f32 1.0, %v4665
        %v4667 = vrcp.pop %v4268
        %v4668 = vmul.f32 1.0, %v4667
        %v4669 = vrcp.pop %v4269
        %v4670 = vmul.f32 1.0, %v4669
        %v4671 = vrcp.pop %v4270
        %v4672 = vmul.f32 1.0, %v4671
        %v4673 = vrcp.pop %v4271
        %v4674 = vmul.f32 1.0, %v4673
        %v4675 = vrcp.pop %v4272
        %v4676 = vmul.f32 1.0, %v4675
        %v4677 = vrcp.pop %v4273
        %v4678 = vmul.f32 1.0, %v4677
        %v4679 = vrcp.pop %v4274
        %v4680 = vmul.f32 1.0, %v4679
        %v4681 = vrcp.pop %v4275
        %v4682 = vmul.f32 1.0, %v4681
        %v4683 = vrcp.pop %v4276
        %v4684 = vmul.f32 1.0, %v4683
        %v4685 = vrcp.pop %v4277
        %v4686 = vmul.f32 1.0, %v4685
        %v4687 = vrcp.pop %v4278
        %v4688 = vmul.f32 1.0, %v4687
        %v4689 = vrcp.pop %v4279
        %v4690 = vmul.f32 1.0, %v4689
        %v4691 = vrcp.pop %v4280
        %v4692 = vmul.f32 1.0, %v4691
        %v4693 = vrcp.pop %v4281
        %v4694 = vmul.f32 1.0, %v4693
        %v4695 = vrcp.pop %v4282
        %v4696 = vmul.f32 1.0, %v4695
        %v4697 = vrcp.pop %v4283
        %v4698 = vmul.f32 1.0, %v4697
        %v4699 = vrcp.pop %v4284
        %v4700 = vmul.f32 1.0, %v4699
        %v4701 = vrcp.pop %v4285
        %v4702 = vmul.f32 1.0, %v4701
        %v4703 = vrcp.pop %v4286
        %v4704 = vmul.f32 1.0, %v4703
        %v4705 = vrcp.pop %v4287
        %v4706 = vmul.f32 1.0, %v4705
        %v4707 = vrcp.pop %v4288
        %v4708 = vmul.f32 1.0, %v4707
        %v4709 = vrcp.pop %v4289
        %v4710 = vmul.f32 1.0, %v4709
        %v4711 = vrcp.pop %v4290
        %v4712 = vmul.f32 1.0, %v4711
        %v4713 = vrcp.pop %v4291
        %v4714 = vmul.f32 1.0, %v4713
        %v4715 = vrcp.pop %v4292
        %v4716 = vmul.f32 1.0, %v4715
        %v4717 = vrcp.pop %v4293
        %v4718 = vmul.f32 1.0, %v4717
        %v4719 = vrcp.pop %v4294
        %v4720 = vmul.f32 1.0, %v4719
        %v4721 = vrcp.pop %v4295
        %v4722 = vmul.f32 1.0, %v4721
        %v4723 = vrcp.pop %v4296
        %v4724 = vmul.f32 1.0, %v4723
        %v4725 = vrcp.pop %v4297
        %v4726 = vmul.f32 1.0, %v4725
        %v4727 = vrcp.pop %v4298
        %v4728 = vmul.f32 1.0, %v4727
        %v4729 = vrcp.pop %v4299
        %v4730 = vmul.f32 1.0, %v4729
        %v4731 = vrcp.pop %v4300
        %v4732 = vmul.f32 1.0, %v4731
        %v4733 = vrcp.pop %v4301
        %v4734 = vmul.f32 1.0, %v4733
        %v4735 = vrcp.pop %v4302
        %v4736 = vmul.f32 1.0, %v4735
        %v4737 = vrcp.pop %v4303
        %v4738 = vmul.f32 1.0, %v4737
        %v4739 = vrcp.pop %v4304
        %v4740 = vmul.f32 1.0, %v4739
        %v4741 = vrcp.pop %v4305
        %v4742 = vmul.f32 1.0, %v4741
        %v4743 = vrcp.pop %v4306
        %v4744 = vmul.f32 1.0, %v4743
        %v4745 = vrcp.pop %v4307
        %v4746 = vmul.f32 1.0, %v4745
        %v4747 = vrcp.pop %v4308
        %v4748 = vmul.f32 1.0, %v4747
        %v4749 = vrcp.pop %v4309
        %v4750 = vmul.f32 1.0, %v4749
        %v4751 = vrcp.pop %v4310
        %v4752 = vmul.f32 1.0, %v4751
        %v4753 = vrcp.pop %v4311
        %v4754 = vmul.f32 1.0, %v4753
        %v4755 = vrcp.pop %v4312
        %v4756 = vmul.f32 1.0, %v4755
        %v4757 = vrcp.pop %v4313
        %v4758 = vmul.f32 1.0, %v4757
        %v4759 = vrcp.pop %v4314
        %v4760 = vmul.f32 1.0, %v4759
        %v4761 = vrcp.pop %v4315
        %v4762 = vmul.f32 1.0, %v4761
        %v4763 = vrcp.pop %v4316
        %v4764 = vmul.f32 1.0, %v4763
        %v4765 = vrcp.pop %v4317
        %v4766 = vmul.f32 1.0, %v4765
        %v4767 = vrcp.pop %v4318
        %v4768 = vmul.f32 1.0, %v4767
        %v4769 = vrcp.pop %v4319
        %v4770 = vmul.f32 1.0, %v4769
        %v4771 = vrcp.pop %v4320
        %v4772 = vmul.f32 1.0, %v4771
        %v4773 = vrcp.pop %v4321
        %v4774 = vmul.f32 1.0, %v4773
        %v4775 = vrcp.pop %v4322
        %v4776 = vmul.f32 1.0, %v4775
        %v4777 = vrcp.pop %v4323
        %v4778 = vmul.f32 1.0, %v4777
        %v4779 = vrcp.pop %v4324
        %v4780 = vmul.f32 1.0, %v4779
        %v4781 = vrcp.pop %v4325
        %v4782 = vmul.f32 1.0, %v4781
        %v4783 = vrcp.pop %v4326
        %v4784 = vmul.f32 1.0, %v4783
        %v4785 = vrcp.pop %v4327
        %v4786 = vmul.f32 1.0, %v4785
        %v4787 = vrcp.pop %v4328
        %v4788 = vmul.f32 1.0, %v4787
        %v4789 = vrcp.pop %v4329
        %v4790 = vmul.f32 1.0, %v4789
        %v4791 = vrcp.pop %v4330
        %v4792 = vmul.f32 1.0, %v4791
        %v4793 = vrcp.pop %v4331
        %v4794 = vmul.f32 1.0, %v4793
        %v4795 = vrcp.pop %v4332
        %v4796 = vmul.f32 1.0, %v4795
        %v4797 = vrcp.pop %v4333
        %v4798 = vmul.f32 1.0, %v4797
        %v4799 = vrcp.pop %v4334
        %v4800 = vmul.f32 1.0, %v4799
        %v4801 = vrcp.pop %v4335
        %v4802 = vmul.f32 1.0, %v4801
        %v4803 = vrcp.pop %v4336
        %v4804 = vmul.f32 1.0, %v4803
        %v4805 = vrcp.pop %v4337
        %v4806 = vmul.f32 1.0, %v4805
        %v4807 = vrcp.pop %v4338
        %v4808 = vmul.f32 1.0, %v4807
        %v4809 = vrcp.pop %v4339
        %v4810 = vmul.f32 1.0, %v4809
        %v4811 = vrcp.pop %v4340
        %v4812 = vmul.f32 1.0, %v4811
        %v4813 = vrcp.pop %v4341
        %v4814 = vmul.f32 1.0, %v4813
        %v4815 = vrcp.pop %v4342
        %v4816 = vmul.f32 1.0, %v4815
        %v4817 = vrcp.pop %v4343
        %v4818 = vmul.f32 1.0, %v4817
        %v4819 = vrcp.pop %v4344
        %v4820 = vmul.f32 1.0, %v4819
        %v4821 = vrcp.pop %v4345
        %v4822 = vmul.f32 1.0, %v4821
        %v4823 = vrcp.pop %v4346
        %v4824 = vmul.f32 1.0, %v4823
        %v4825 = vrcp.pop %v4347
        %v4826 = vmul.f32 1.0, %v4825
        %v4827 = vrcp.pop %v4348
        %v4828 = vmul.f32 1.0, %v4827
        %v4829 = vrcp.pop %v4349
        %v4830 = vmul.f32 1.0, %v4829
        %v4831 = vrcp.pop %v4350
        %v4832 = vmul.f32 1.0, %v4831
        %v4833 = vrcp.pop %v4351
        %v4834 = vmul.f32 1.0, %v4833
        %v4835 = vrcp.pop %v4352
        %v4836 = vmul.f32 1.0, %v4835
        %v4837 = vrcp.pop %v4353
        %v4838 = vmul.f32 1.0, %v4837
        %v4839 = vrcp.pop %v4354
        %v4840 = vmul.f32 1.0, %v4839
        %v4841 = vrcp.pop %v4355
        %v4842 = vmul.f32 1.0, %v4841
        %v4843 = vrcp.pop %v4356
        %v4844 = vmul.f32 1.0, %v4843
        %v4845 = vrcp.pop %v4357
        %v4846 = vmul.f32 1.0, %v4845
        %v4847 = vrcp.pop %v4358
        %v4848 = vmul.f32 1.0, %v4847
        %v4849 = vrcp.pop %v4359
        %v4850 = vmul.f32 1.0, %v4849
        %v4851 = vrcp.pop %v4360
        %v4852 = vmul.f32 1.0, %v4851
        %v4853 = vrcp.pop %v4361
        %v4854 = vmul.f32 1.0, %v4853
        %v4855 = vrcp.pop %v4362
        %v4856 = vmul.f32 1.0, %v4855
        %v4857 = vrcp.pop %v4363
        %v4858 = vmul.f32 1.0, %v4857
        %v4859 = vrcp.pop %v4364
        %v4860 = vmul.f32 1.0, %v4859
        %v4861 = vrcp.pop %v4365
        %v4862 = vmul.f32 1.0, %v4861
        %v4863 = vrcp.pop %v4366
        %v4864 = vmul.f32 1.0, %v4863
        %v4865 = vrcp.pop %v4367
        %v4866 = vmul.f32 1.0, %v4865
        %v4867 = vrcp.pop %v4368
        %v4868 = vmul.f32 1.0, %v4867
        %v4869 = vrcp.pop %v4369
        %v4870 = vmul.f32 1.0, %v4869
        %v4871 = vrcp.pop %v4370
        %v4872 = vmul.f32 1.0, %v4871
        %v4873 = vrcp.pop %v4371
        %v4874 = vmul.f32 1.0, %v4873
        %v4875 = vrcp.pop %v4372
        %v4876 = vmul.f32 1.0, %v4875
        %v4877 = vrcp.pop %v4373
        %v4878 = vmul.f32 1.0, %v4877
        %v4879 = vrcp.pop %v4374
        %v4880 = vmul.f32 1.0, %v4879
        %v4881 = vrcp.pop %v4375
        %v4882 = vmul.f32 1.0, %v4881
        %v4883 = vrcp.pop %v4376
        %v4884 = vmul.f32 1.0, %v4883
        %v4885 = vrcp.pop %v4377
        %v4886 = vmul.f32 1.0, %v4885
        %v4887 = vrcp.pop %v4378
        %v4888 = vmul.f32 1.0, %v4887
        %v4889 = vrcp.pop %v4379
        %v4890 = vmul.f32 1.0, %v4889
        %v4891 = vrcp.pop %v4380
        %v4892 = vmul.f32 1.0, %v4891
        %v4893 = vmul.f32 %v2840, %v4382
        %v4894 = vmul.f32 %v2841, %v4384
        %v4895 = vmul.f32 %v2842, %v4386
        %v4896 = vmul.f32 %v2843, %v4388
        %v4897 = vmul.f32 %v2844, %v4390
        %v4898 = vmul.f32 %v2845, %v4392
        %v4899 = vmul.f32 %v2846, %v4394
        %v4900 = vmul.f32 %v2847, %v4396
        %v4901 = vmul.f32 %v2848, %v4398
        %v4902 = vmul.f32 %v2849, %v4400
        %v4903 = vmul.f32 %v2850, %v4402
        %v4904 = vmul.f32 %v2851, %v4404
        %v4905 = vmul.f32 %v2852, %v4406
        %v4906 = vmul.f32 %v2853, %v4408
        %v4907 = vmul.f32 %v2854, %v4410
        %v4908 = vmul.f32 %v2855, %v4412
        %v4909 = vmul.f32 %v2856, %v4414
        %v4910 = vmul.f32 %v2857, %v4416
        %v4911 = vmul.f32 %v2858, %v4418
        %v4912 = vmul.f32 %v2859, %v4420
        %v4913 = vmul.f32 %v2860, %v4422
        %v4914 = vmul.f32 %v2861, %v4424
        %v4915 = vmul.f32 %v2862, %v4426
        %v4916 = vmul.f32 %v2863, %v4428
        %v4917 = vmul.f32 %v2864, %v4430
        %v4918 = vmul.f32 %v2865, %v4432
        %v4919 = vmul.f32 %v2866, %v4434
        %v4920 = vmul.f32 %v2867, %v4436
        %v4921 = vmul.f32 %v2868, %v4438
        %v4922 = vmul.f32 %v2869, %v4440
        %v4923 = vmul.f32 %v2870, %v4442
        %v4924 = vmul.f32 %v2871, %v4444
        %v4925 = vmul.f32 %v2872, %v4446
        %v4926 = vmul.f32 %v2873, %v4448
        %v4927 = vmul.f32 %v2874, %v4450
        %v4928 = vmul.f32 %v2875, %v4452
        %v4929 = vmul.f32 %v2876, %v4454
        %v4930 = vmul.f32 %v2877, %v4456
        %v4931 = vmul.f32 %v2878, %v4458
        %v4932 = vmul.f32 %v2879, %v4460
        %v4933 = vmul.f32 %v2880, %v4462
        %v4934 = vmul.f32 %v2881, %v4464
        %v4935 = vmul.f32 %v2882, %v4466
        %v4936 = vmul.f32 %v2883, %v4468
        %v4937 = vmul.f32 %v2884, %v4470
        %v4938 = vmul.f32 %v2885, %v4472
        %v4939 = vmul.f32 %v2886, %v4474
        %v4940 = vmul.f32 %v2887, %v4476
        %v4941 = vmul.f32 %v2888, %v4478
        %v4942 = vmul.f32 %v2889, %v4480
        %v4943 = vmul.f32 %v2890, %v4482
        %v4944 = vmul.f32 %v2891, %v4484
        %v4945 = vmul.f32 %v2892, %v4486
        %v4946 = vmul.f32 %v2893, %v4488
        %v4947 = vmul.f32 %v2894, %v4490
        %v4948 = vmul.f32 %v2895, %v4492
        %v4949 = vmul.f32 %v2896, %v4494
        %v4950 = vmul.f32 %v2897, %v4496
        %v4951 = vmul.f32 %v2898, %v4498
        %v4952 = vmul.f32 %v2899, %v4500
        %v4953 = vmul.f32 %v2900, %v4502
        %v4954 = vmul.f32 %v2901, %v4504
        %v4955 = vmul.f32 %v2902, %v4506
        %v4956 = vmul.f32 %v2903, %v4508
        %v4957 = vmul.f32 %v2904, %v4510
        %v4958 = vmul.f32 %v2905, %v4512
        %v4959 = vmul.f32 %v2906, %v4514
        %v4960 = vmul.f32 %v2907, %v4516
        %v4961 = vmul.f32 %v2908, %v4518
        %v4962 = vmul.f32 %v2909, %v4520
        %v4963 = vmul.f32 %v2910, %v4522
        %v4964 = vmul.f32 %v2911, %v4524
        %v4965 = vmul.f32 %v2912, %v4526
        %v4966 = vmul.f32 %v2913, %v4528
        %v4967 = vmul.f32 %v2914, %v4530
        %v4968 = vmul.f32 %v2915, %v4532
        %v4969 = vmul.f32 %v2916, %v4534
        %v4970 = vmul.f32 %v2917, %v4536
        %v4971 = vmul.f32 %v2918, %v4538
        %v4972 = vmul.f32 %v2919, %v4540
        %v4973 = vmul.f32 %v2920, %v4542
        %v4974 = vmul.f32 %v2921, %v4544
        %v4975 = vmul.f32 %v2922, %v4546
        %v4976 = vmul.f32 %v2923, %v4548
        %v4977 = vmul.f32 %v2924, %v4550
        %v4978 = vmul.f32 %v2925, %v4552
        %v4979 = vmul.f32 %v2926, %v4554
        %v4980 = vmul.f32 %v2927, %v4556
        %v4981 = vmul.f32 %v2928, %v4558
        %v4982 = vmul.f32 %v2929, %v4560
        %v4983 = vmul.f32 %v2930, %v4562
        %v4984 = vmul.f32 %v2931, %v4564
        %v4985 = vmul.f32 %v2932, %v4566
        %v4986 = vmul.f32 %v2933, %v4568
        %v4987 = vmul.f32 %v2934, %v4570
        %v4988 = vmul.f32 %v2935, %v4572
        %v4989 = vmul.f32 %v2936, %v4574
        %v4990 = vmul.f32 %v2937, %v4576
        %v4991 = vmul.f32 %v2938, %v4578
        %v4992 = vmul.f32 %v2939, %v4580
        %v4993 = vmul.f32 %v2940, %v4582
        %v4994 = vmul.f32 %v2941, %v4584
        %v4995 = vmul.f32 %v2942, %v4586
        %v4996 = vmul.f32 %v2943, %v4588
        %v4997 = vmul.f32 %v2944, %v4590
        %v4998 = vmul.f32 %v2945, %v4592
        %v4999 = vmul.f32 %v2946, %v4594
        %v5000 = vmul.f32 %v2947, %v4596
        %v5001 = vmul.f32 %v2948, %v4598
        %v5002 = vmul.f32 %v2949, %v4600
        %v5003 = vmul.f32 %v2950, %v4602
        %v5004 = vmul.f32 %v2951, %v4604
        %v5005 = vmul.f32 %v2952, %v4606
        %v5006 = vmul.f32 %v2953, %v4608
        %v5007 = vmul.f32 %v2954, %v4610
        %v5008 = vmul.f32 %v2955, %v4612
        %v5009 = vmul.f32 %v2956, %v4614
        %v5010 = vmul.f32 %v2957, %v4616
        %v5011 = vmul.f32 %v2958, %v4618
        %v5012 = vmul.f32 %v2959, %v4620
        %v5013 = vmul.f32 %v2960, %v4622
        %v5014 = vmul.f32 %v2961, %v4624
        %v5015 = vmul.f32 %v2962, %v4626
        %v5016 = vmul.f32 %v2963, %v4628
        %v5017 = vmul.f32 %v2964, %v4630
        %v5018 = vmul.f32 %v2965, %v4632
        %v5019 = vmul.f32 %v2966, %v4634
        %v5020 = vmul.f32 %v2967, %v4636
        %v5021 = vmul.f32 %v2968, %v4638
        %v5022 = vmul.f32 %v2969, %v4640
        %v5023 = vmul.f32 %v2970, %v4642
        %v5024 = vmul.f32 %v2971, %v4644
        %v5025 = vmul.f32 %v2972, %v4646
        %v5026 = vmul.f32 %v2973, %v4648
        %v5027 = vmul.f32 %v2974, %v4650
        %v5028 = vmul.f32 %v2975, %v4652
        %v5029 = vmul.f32 %v2976, %v4654
        %v5030 = vmul.f32 %v2977, %v4656
        %v5031 = vmul.f32 %v2978, %v4658
        %v5032 = vmul.f32 %v2979, %v4660
        %v5033 = vmul.f32 %v2980, %v4662
        %v5034 = vmul.f32 %v2981, %v4664
        %v5035 = vmul.f32 %v2982, %v4666
        %v5036 = vmul.f32 %v2983, %v4668
        %v5037 = vmul.f32 %v2984, %v4670
        %v5038 = vmul.f32 %v2985, %v4672
        %v5039 = vmul.f32 %v2986, %v4674
        %v5040 = vmul.f32 %v2987, %v4676
        %v5041 = vmul.f32 %v2988, %v4678
        %v5042 = vmul.f32 %v2989, %v4680
        %v5043 = vmul.f32 %v2990, %v4682
        %v5044 = vmul.f32 %v2991, %v4684
        %v5045 = vmul.f32 %v2992, %v4686
        %v5046 = vmul.f32 %v2993, %v4688
        %v5047 = vmul.f32 %v2994, %v4690
        %v5048 = vmul.f32 %v2995, %v4692
        %v5049 = vmul.f32 %v2996, %v4694
        %v5050 = vmul.f32 %v2997, %v4696
        %v5051 = vmul.f32 %v2998, %v4698
        %v5052 = vmul.f32 %v2999, %v4700
        %v5053 = vmul.f32 %v3000, %v4702
        %v5054 = vmul.f32 %v3001, %v4704
        %v5055 = vmul.f32 %v3002, %v4706
        %v5056 = vmul.f32 %v3003, %v4708
        %v5057 = vmul.f32 %v3004, %v4710
        %v5058 = vmul.f32 %v3005, %v4712
        %v5059 = vmul.f32 %v3006, %v4714
        %v5060 = vmul.f32 %v3007, %v4716
        %v5061 = vmul.f32 %v3008, %v4718
        %v5062 = vmul.f32 %v3009, %v4720
        %v5063 = vmul.f32 %v3010, %v4722
        %v5064 = vmul.f32 %v3011, %v4724
        %v5065 = vmul.f32 %v3012, %v4726
        %v5066 = vmul.f32 %v3013, %v4728
        %v5067 = vmul.f32 %v3014, %v4730
        %v5068 = vmul.f32 %v3015, %v4732
        %v5069 = vmul.f32 %v3016, %v4734
        %v5070 = vmul.f32 %v3017, %v4736
        %v5071 = vmul.f32 %v3018, %v4738
        %v5072 = vmul.f32 %v3019, %v4740
        %v5073 = vmul.f32 %v3020, %v4742
        %v5074 = vmul.f32 %v3021, %v4744
        %v5075 = vmul.f32 %v3022, %v4746
        %v5076 = vmul.f32 %v3023, %v4748
        %v5077 = vmul.f32 %v3024, %v4750
        %v5078 = vmul.f32 %v3025, %v4752
        %v5079 = vmul.f32 %v3026, %v4754
        %v5080 = vmul.f32 %v3027, %v4756
        %v5081 = vmul.f32 %v3028, %v4758
        %v5082 = vmul.f32 %v3029, %v4760
        %v5083 = vmul.f32 %v3030, %v4762
        %v5084 = vmul.f32 %v3031, %v4764
        %v5085 = vmul.f32 %v3032, %v4766
        %v5086 = vmul.f32 %v3033, %v4768
        %v5087 = vmul.f32 %v3034, %v4770
        %v5088 = vmul.f32 %v3035, %v4772
        %v5089 = vmul.f32 %v3036, %v4774
        %v5090 = vmul.f32 %v3037, %v4776
        %v5091 = vmul.f32 %v3038, %v4778
        %v5092 = vmul.f32 %v3039, %v4780
        %v5093 = vmul.f32 %v3040, %v4782
        %v5094 = vmul.f32 %v3041, %v4784
        %v5095 = vmul.f32 %v3042, %v4786
        %v5096 = vmul.f32 %v3043, %v4788
        %v5097 = vmul.f32 %v3044, %v4790
        %v5098 = vmul.f32 %v3045, %v4792
        %v5099 = vmul.f32 %v3046, %v4794
        %v5100 = vmul.f32 %v3047, %v4796
        %v5101 = vmul.f32 %v3048, %v4798
        %v5102 = vmul.f32 %v3049, %v4800
        %v5103 = vmul.f32 %v3050, %v4802
        %v5104 = vmul.f32 %v3051, %v4804
        %v5105 = vmul.f32 %v3052, %v4806
        %v5106 = vmul.f32 %v3053, %v4808
        %v5107 = vmul.f32 %v3054, %v4810
        %v5108 = vmul.f32 %v3055, %v4812
        %v5109 = vmul.f32 %v3056, %v4814
        %v5110 = vmul.f32 %v3057, %v4816
        %v5111 = vmul.f32 %v3058, %v4818
        %v5112 = vmul.f32 %v3059, %v4820
        %v5113 = vmul.f32 %v3060, %v4822
        %v5114 = vmul.f32 %v3061, %v4824
        %v5115 = vmul.f32 %v3062, %v4826
        %v5116 = vmul.f32 %v3063, %v4828
        %v5117 = vmul.f32 %v3064, %v4830
        %v5118 = vmul.f32 %v3065, %v4832
        %v5119 = vmul.f32 %v3066, %v4834
        %v5120 = vmul.f32 %v3067, %v4836
        %v5121 = vmul.f32 %v3068, %v4838
        %v5122 = vmul.f32 %v3069, %v4840
        %v5123 = vmul.f32 %v3070, %v4842
        %v5124 = vmul.f32 %v3071, %v4844
        %v5125 = vmul.f32 %v3072, %v4846
        %v5126 = vmul.f32 %v3073, %v4848
        %v5127 = vmul.f32 %v3074, %v4850
        %v5128 = vmul.f32 %v3075, %v4852
        %v5129 = vmul.f32 %v3076, %v4854
        %v5130 = vmul.f32 %v3077, %v4856
        %v5131 = vmul.f32 %v3078, %v4858
        %v5132 = vmul.f32 %v3079, %v4860
        %v5133 = vmul.f32 %v3080, %v4862
        %v5134 = vmul.f32 %v3081, %v4864
        %v5135 = vmul.f32 %v3082, %v4866
        %v5136 = vmul.f32 %v3083, %v4868
        %v5137 = vmul.f32 %v3084, %v4870
        %v5138 = vmul.f32 %v3085, %v4872
        %v5139 = vmul.f32 %v3086, %v4874
        %v5140 = vmul.f32 %v3087, %v4876
        %v5141 = vmul.f32 %v3088, %v4878
        %v5142 = vmul.f32 %v3089, %v4880
        %v5143 = vmul.f32 %v3090, %v4882
        %v5144 = vmul.f32 %v3091, %v4884
        %v5145 = vmul.f32 %v3092, %v4886
        %v5146 = vmul.f32 %v3093, %v4888
        %v5147 = vmul.f32 %v3094, %v4890
        %v5148 = vmul.f32 %v3095, %v4892
        %v5149 = vld [vmem:[%s2 + $0x2] sm:$0x1]
        %v5150 = vlaneseq
        %v5151 = vshrl.u32 %v5150, 7
        %v5152 = vsub.s32 0, %v5151
        %v5153 = vrot.slane %v5149, %v5152
        %v5154 = vmul.f32 %v4893, %v5153
        %v5155 = vmul.f32 %v4894, %v5153
        %v5156 = vmul.f32 %v4895, %v5153
        %v5157 = vmul.f32 %v4896, %v5153
        %v5158 = vmul.f32 %v4897, %v5153
        %v5159 = vmul.f32 %v4898, %v5153
        %v5160 = vmul.f32 %v4899, %v5153
        %v5161 = vmul.f32 %v4900, %v5153
        %v5162 = vmul.f32 %v4901, %v5153
        %v5163 = vmul.f32 %v4902, %v5153
        %v5164 = vmul.f32 %v4903, %v5153
        %v5165 = vmul.f32 %v4904, %v5153
        %v5166 = vmul.f32 %v4905, %v5153
        %v5167 = vmul.f32 %v4906, %v5153
        %v5168 = vmul.f32 %v4907, %v5153
        %v5169 = vmul.f32 %v4908, %v5153
        %v5170 = vmul.f32 %v4909, %v5153
        %v5171 = vmul.f32 %v4910, %v5153
        %v5172 = vmul.f32 %v4911, %v5153
        %v5173 = vmul.f32 %v4912, %v5153
        %v5174 = vmul.f32 %v4913, %v5153
        %v5175 = vmul.f32 %v4914, %v5153
        %v5176 = vmul.f32 %v4915, %v5153
        %v5177 = vmul.f32 %v4916, %v5153
        %v5178 = vmul.f32 %v4917, %v5153
        %v5179 = vmul.f32 %v4918, %v5153
        %v5180 = vmul.f32 %v4919, %v5153
        %v5181 = vmul.f32 %v4920, %v5153
        %v5182 = vmul.f32 %v4921, %v5153
        %v5183 = vmul.f32 %v4922, %v5153
        %v5184 = vmul.f32 %v4923, %v5153
        %v5185 = vmul.f32 %v4924, %v5153
        %v5186 = vmul.f32 %v4925, %v5153
        %v5187 = vmul.f32 %v4926, %v5153
        %v5188 = vmul.f32 %v4927, %v5153
        %v5189 = vmul.f32 %v4928, %v5153
        %v5190 = vmul.f32 %v4929, %v5153
        %v5191 = vmul.f32 %v4930, %v5153
        %v5192 = vmul.f32 %v4931, %v5153
        %v5193 = vmul.f32 %v4932, %v5153
        %v5194 = vmul.f32 %v4933, %v5153
        %v5195 = vmul.f32 %v4934, %v5153
        %v5196 = vmul.f32 %v4935, %v5153
        %v5197 = vmul.f32 %v4936, %v5153
        %v5198 = vmul.f32 %v4937, %v5153
        %v5199 = vmul.f32 %v4938, %v5153
        %v5200 = vmul.f32 %v4939, %v5153
        %v5201 = vmul.f32 %v4940, %v5153
        %v5202 = vmul.f32 %v4941, %v5153
        %v5203 = vmul.f32 %v4942, %v5153
        %v5204 = vmul.f32 %v4943, %v5153
        %v5205 = vmul.f32 %v4944, %v5153
        %v5206 = vmul.f32 %v4945, %v5153
        %v5207 = vmul.f32 %v4946, %v5153
        %v5208 = vmul.f32 %v4947, %v5153
        %v5209 = vmul.f32 %v4948, %v5153
        %v5210 = vmul.f32 %v4949, %v5153
        %v5211 = vmul.f32 %v4950, %v5153
        %v5212 = vmul.f32 %v4951, %v5153
        %v5213 = vmul.f32 %v4952, %v5153
        %v5214 = vmul.f32 %v4953, %v5153
        %v5215 = vmul.f32 %v4954, %v5153
        %v5216 = vmul.f32 %v4955, %v5153
        %v5217 = vmul.f32 %v4956, %v5153
        %v5218 = vmul.f32 %v4957, %v5153
        %v5219 = vmul.f32 %v4958, %v5153
        %v5220 = vmul.f32 %v4959, %v5153
        %v5221 = vmul.f32 %v4960, %v5153
        %v5222 = vmul.f32 %v4961, %v5153
        %v5223 = vmul.f32 %v4962, %v5153
        %v5224 = vmul.f32 %v4963, %v5153
        %v5225 = vmul.f32 %v4964, %v5153
        %v5226 = vmul.f32 %v4965, %v5153
        %v5227 = vmul.f32 %v4966, %v5153
        %v5228 = vmul.f32 %v4967, %v5153
        %v5229 = vmul.f32 %v4968, %v5153
        %v5230 = vmul.f32 %v4969, %v5153
        %v5231 = vmul.f32 %v4970, %v5153
        %v5232 = vmul.f32 %v4971, %v5153
        %v5233 = vmul.f32 %v4972, %v5153
        %v5234 = vmul.f32 %v4973, %v5153
        %v5235 = vmul.f32 %v4974, %v5153
        %v5236 = vmul.f32 %v4975, %v5153
        %v5237 = vmul.f32 %v4976, %v5153
        %v5238 = vmul.f32 %v4977, %v5153
        %v5239 = vmul.f32 %v4978, %v5153
        %v5240 = vmul.f32 %v4979, %v5153
        %v5241 = vmul.f32 %v4980, %v5153
        %v5242 = vmul.f32 %v4981, %v5153
        %v5243 = vmul.f32 %v4982, %v5153
        %v5244 = vmul.f32 %v4983, %v5153
        %v5245 = vmul.f32 %v4984, %v5153
        %v5246 = vmul.f32 %v4985, %v5153
        %v5247 = vmul.f32 %v4986, %v5153
        %v5248 = vmul.f32 %v4987, %v5153
        %v5249 = vmul.f32 %v4988, %v5153
        %v5250 = vmul.f32 %v4989, %v5153
        %v5251 = vmul.f32 %v4990, %v5153
        %v5252 = vmul.f32 %v4991, %v5153
        %v5253 = vmul.f32 %v4992, %v5153
        %v5254 = vmul.f32 %v4993, %v5153
        %v5255 = vmul.f32 %v4994, %v5153
        %v5256 = vmul.f32 %v4995, %v5153
        %v5257 = vmul.f32 %v4996, %v5153
        %v5258 = vmul.f32 %v4997, %v5153
        %v5259 = vmul.f32 %v4998, %v5153
        %v5260 = vmul.f32 %v4999, %v5153
        %v5261 = vmul.f32 %v5000, %v5153
        %v5262 = vmul.f32 %v5001, %v5153
        %v5263 = vmul.f32 %v5002, %v5153
        %v5264 = vmul.f32 %v5003, %v5153
        %v5265 = vmul.f32 %v5004, %v5153
        %v5266 = vmul.f32 %v5005, %v5153
        %v5267 = vmul.f32 %v5006, %v5153
        %v5268 = vmul.f32 %v5007, %v5153
        %v5269 = vmul.f32 %v5008, %v5153
        %v5270 = vmul.f32 %v5009, %v5153
        %v5271 = vmul.f32 %v5010, %v5153
        %v5272 = vmul.f32 %v5011, %v5153
        %v5273 = vmul.f32 %v5012, %v5153
        %v5274 = vmul.f32 %v5013, %v5153
        %v5275 = vmul.f32 %v5014, %v5153
        %v5276 = vmul.f32 %v5015, %v5153
        %v5277 = vmul.f32 %v5016, %v5153
        %v5278 = vmul.f32 %v5017, %v5153
        %v5279 = vmul.f32 %v5018, %v5153
        %v5280 = vmul.f32 %v5019, %v5153
        %v5281 = vmul.f32 %v5020, %v5153
        %v5282 = vmul.f32 %v5021, %v5153
        %v5283 = vmul.f32 %v5022, %v5153
        %v5284 = vmul.f32 %v5023, %v5153
        %v5285 = vmul.f32 %v5024, %v5153
        %v5286 = vmul.f32 %v5025, %v5153
        %v5287 = vmul.f32 %v5026, %v5153
        %v5288 = vmul.f32 %v5027, %v5153
        %v5289 = vmul.f32 %v5028, %v5153
        %v5290 = vmul.f32 %v5029, %v5153
        %v5291 = vmul.f32 %v5030, %v5153
        %v5292 = vmul.f32 %v5031, %v5153
        %v5293 = vmul.f32 %v5032, %v5153
        %v5294 = vmul.f32 %v5033, %v5153
        %v5295 = vmul.f32 %v5034, %v5153
        %v5296 = vmul.f32 %v5035, %v5153
        %v5297 = vmul.f32 %v5036, %v5153
        %v5298 = vmul.f32 %v5037, %v5153
        %v5299 = vmul.f32 %v5038, %v5153
        %v5300 = vmul.f32 %v5039, %v5153
        %v5301 = vmul.f32 %v5040, %v5153
        %v5302 = vmul.f32 %v5041, %v5153
        %v5303 = vmul.f32 %v5042, %v5153
        %v5304 = vmul.f32 %v5043, %v5153
        %v5305 = vmul.f32 %v5044, %v5153
        %v5306 = vmul.f32 %v5045, %v5153
        %v5307 = vmul.f32 %v5046, %v5153
        %v5308 = vmul.f32 %v5047, %v5153
        %v5309 = vmul.f32 %v5048, %v5153
        %v5310 = vmul.f32 %v5049, %v5153
        %v5311 = vmul.f32 %v5050, %v5153
        %v5312 = vmul.f32 %v5051, %v5153
        %v5313 = vmul.f32 %v5052, %v5153
        %v5314 = vmul.f32 %v5053, %v5153
        %v5315 = vmul.f32 %v5054, %v5153
        %v5316 = vmul.f32 %v5055, %v5153
        %v5317 = vmul.f32 %v5056, %v5153
        %v5318 = vmul.f32 %v5057, %v5153
        %v5319 = vmul.f32 %v5058, %v5153
        %v5320 = vmul.f32 %v5059, %v5153
        %v5321 = vmul.f32 %v5060, %v5153
        %v5322 = vmul.f32 %v5061, %v5153
        %v5323 = vmul.f32 %v5062, %v5153
        %v5324 = vmul.f32 %v5063, %v5153
        %v5325 = vmul.f32 %v5064, %v5153
        %v5326 = vmul.f32 %v5065, %v5153
        %v5327 = vmul.f32 %v5066, %v5153
        %v5328 = vmul.f32 %v5067, %v5153
        %v5329 = vmul.f32 %v5068, %v5153
        %v5330 = vmul.f32 %v5069, %v5153
        %v5331 = vmul.f32 %v5070, %v5153
        %v5332 = vmul.f32 %v5071, %v5153
        %v5333 = vmul.f32 %v5072, %v5153
        %v5334 = vmul.f32 %v5073, %v5153
        %v5335 = vmul.f32 %v5074, %v5153
        %v5336 = vmul.f32 %v5075, %v5153
        %v5337 = vmul.f32 %v5076, %v5153
        %v5338 = vmul.f32 %v5077, %v5153
        %v5339 = vmul.f32 %v5078, %v5153
        %v5340 = vmul.f32 %v5079, %v5153
        %v5341 = vmul.f32 %v5080, %v5153
        %v5342 = vmul.f32 %v5081, %v5153
        %v5343 = vmul.f32 %v5082, %v5153
        %v5344 = vmul.f32 %v5083, %v5153
        %v5345 = vmul.f32 %v5084, %v5153
        %v5346 = vmul.f32 %v5085, %v5153
        %v5347 = vmul.f32 %v5086, %v5153
        %v5348 = vmul.f32 %v5087, %v5153
        %v5349 = vmul.f32 %v5088, %v5153
        %v5350 = vmul.f32 %v5089, %v5153
        %v5351 = vmul.f32 %v5090, %v5153
        %v5352 = vmul.f32 %v5091, %v5153
        %v5353 = vmul.f32 %v5092, %v5153
        %v5354 = vmul.f32 %v5093, %v5153
        %v5355 = vmul.f32 %v5094, %v5153
        %v5356 = vmul.f32 %v5095, %v5153
        %v5357 = vmul.f32 %v5096, %v5153
        %v5358 = vmul.f32 %v5097, %v5153
        %v5359 = vmul.f32 %v5098, %v5153
        %v5360 = vmul.f32 %v5099, %v5153
        %v5361 = vmul.f32 %v5100, %v5153
        %v5362 = vmul.f32 %v5101, %v5153
        %v5363 = vmul.f32 %v5102, %v5153
        %v5364 = vmul.f32 %v5103, %v5153
        %v5365 = vmul.f32 %v5104, %v5153
        %v5366 = vmul.f32 %v5105, %v5153
        %v5367 = vmul.f32 %v5106, %v5153
        %v5368 = vmul.f32 %v5107, %v5153
        %v5369 = vmul.f32 %v5108, %v5153
        %v5370 = vmul.f32 %v5109, %v5153
        %v5371 = vmul.f32 %v5110, %v5153
        %v5372 = vmul.f32 %v5111, %v5153
        %v5373 = vmul.f32 %v5112, %v5153
        %v5374 = vmul.f32 %v5113, %v5153
        %v5375 = vmul.f32 %v5114, %v5153
        %v5376 = vmul.f32 %v5115, %v5153
        %v5377 = vmul.f32 %v5116, %v5153
        %v5378 = vmul.f32 %v5117, %v5153
        %v5379 = vmul.f32 %v5118, %v5153
        %v5380 = vmul.f32 %v5119, %v5153
        %v5381 = vmul.f32 %v5120, %v5153
        %v5382 = vmul.f32 %v5121, %v5153
        %v5383 = vmul.f32 %v5122, %v5153
        %v5384 = vmul.f32 %v5123, %v5153
        %v5385 = vmul.f32 %v5124, %v5153
        %v5386 = vmul.f32 %v5125, %v5153
        %v5387 = vmul.f32 %v5126, %v5153
        %v5388 = vmul.f32 %v5127, %v5153
        %v5389 = vmul.f32 %v5128, %v5153
        %v5390 = vmul.f32 %v5129, %v5153
        %v5391 = vmul.f32 %v5130, %v5153
        %v5392 = vmul.f32 %v5131, %v5153
        %v5393 = vmul.f32 %v5132, %v5153
        %v5394 = vmul.f32 %v5133, %v5153
        %v5395 = vmul.f32 %v5134, %v5153
        %v5396 = vmul.f32 %v5135, %v5153
        %v5397 = vmul.f32 %v5136, %v5153
        %v5398 = vmul.f32 %v5137, %v5153
        %v5399 = vmul.f32 %v5138, %v5153
        %v5400 = vmul.f32 %v5139, %v5153
        %v5401 = vmul.f32 %v5140, %v5153
        %v5402 = vmul.f32 %v5141, %v5153
        %v5403 = vmul.f32 %v5142, %v5153
        %v5404 = vmul.f32 %v5143, %v5153
        %v5405 = vmul.f32 %v5144, %v5153
        %v5406 = vmul.f32 %v5145, %v5153
        %v5407 = vmul.f32 %v5146, %v5153
        %v5408 = vmul.f32 %v5147, %v5153
        %v5409 = vmul.f32 %v5148, %v5153
        %v5410 = vld [vmem:[%s2 + $0x3] sm:$0x1]
        %v5411 = vlaneseq
        %v5412 = vshrl.u32 %v5411, 7
        %v5413 = vsub.s32 0, %v5412
        %v5414 = vrot.slane %v5410, %v5413
        %v5415 = vadd.f32 %v5154, %v5414
        %v5416 = vadd.f32 %v5155, %v5414
        %v5417 = vadd.f32 %v5156, %v5414
        %v5418 = vadd.f32 %v5157, %v5414
        %v5419 = vadd.f32 %v5158, %v5414
        %v5420 = vadd.f32 %v5159, %v5414
        %v5421 = vadd.f32 %v5160, %v5414
        %v5422 = vadd.f32 %v5161, %v5414
        %v5423 = vadd.f32 %v5162, %v5414
        %v5424 = vadd.f32 %v5163, %v5414
        %v5425 = vadd.f32 %v5164, %v5414
        %v5426 = vadd.f32 %v5165, %v5414
        %v5427 = vadd.f32 %v5166, %v5414
        %v5428 = vadd.f32 %v5167, %v5414
        %v5429 = vadd.f32 %v5168, %v5414
        %v5430 = vadd.f32 %v5169, %v5414
        %v5431 = vadd.f32 %v5170, %v5414
        %v5432 = vadd.f32 %v5171, %v5414
        %v5433 = vadd.f32 %v5172, %v5414
        %v5434 = vadd.f32 %v5173, %v5414
        %v5435 = vadd.f32 %v5174, %v5414
        %v5436 = vadd.f32 %v5175, %v5414
        %v5437 = vadd.f32 %v5176, %v5414
        %v5438 = vadd.f32 %v5177, %v5414
        %v5439 = vadd.f32 %v5178, %v5414
        %v5440 = vadd.f32 %v5179, %v5414
        %v5441 = vadd.f32 %v5180, %v5414
        %v5442 = vadd.f32 %v5181, %v5414
        %v5443 = vadd.f32 %v5182, %v5414
        %v5444 = vadd.f32 %v5183, %v5414
        %v5445 = vadd.f32 %v5184, %v5414
        %v5446 = vadd.f32 %v5185, %v5414
        %v5447 = vadd.f32 %v5186, %v5414
        %v5448 = vadd.f32 %v5187, %v5414
        %v5449 = vadd.f32 %v5188, %v5414
        %v5450 = vadd.f32 %v5189, %v5414
        %v5451 = vadd.f32 %v5190, %v5414
        %v5452 = vadd.f32 %v5191, %v5414
        %v5453 = vadd.f32 %v5192, %v5414
        %v5454 = vadd.f32 %v5193, %v5414
        %v5455 = vadd.f32 %v5194, %v5414
        %v5456 = vadd.f32 %v5195, %v5414
        %v5457 = vadd.f32 %v5196, %v5414
        %v5458 = vadd.f32 %v5197, %v5414
        %v5459 = vadd.f32 %v5198, %v5414
        %v5460 = vadd.f32 %v5199, %v5414
        %v5461 = vadd.f32 %v5200, %v5414
        %v5462 = vadd.f32 %v5201, %v5414
        %v5463 = vadd.f32 %v5202, %v5414
        %v5464 = vadd.f32 %v5203, %v5414
        %v5465 = vadd.f32 %v5204, %v5414
        %v5466 = vadd.f32 %v5205, %v5414
        %v5467 = vadd.f32 %v5206, %v5414
        %v5468 = vadd.f32 %v5207, %v5414
        %v5469 = vadd.f32 %v5208, %v5414
        %v5470 = vadd.f32 %v5209, %v5414
        %v5471 = vadd.f32 %v5210, %v5414
        %v5472 = vadd.f32 %v5211, %v5414
        %v5473 = vadd.f32 %v5212, %v5414
        %v5474 = vadd.f32 %v5213, %v5414
        %v5475 = vadd.f32 %v5214, %v5414
        %v5476 = vadd.f32 %v5215, %v5414
        %v5477 = vadd.f32 %v5216, %v5414
        %v5478 = vadd.f32 %v5217, %v5414
        %v5479 = vadd.f32 %v5218, %v5414
        %v5480 = vadd.f32 %v5219, %v5414
        %v5481 = vadd.f32 %v5220, %v5414
        %v5482 = vadd.f32 %v5221, %v5414
        %v5483 = vadd.f32 %v5222, %v5414
        %v5484 = vadd.f32 %v5223, %v5414
        %v5485 = vadd.f32 %v5224, %v5414
        %v5486 = vadd.f32 %v5225, %v5414
        %v5487 = vadd.f32 %v5226, %v5414
        %v5488 = vadd.f32 %v5227, %v5414
        %v5489 = vadd.f32 %v5228, %v5414
        %v5490 = vadd.f32 %v5229, %v5414
        %v5491 = vadd.f32 %v5230, %v5414
        %v5492 = vadd.f32 %v5231, %v5414
        %v5493 = vadd.f32 %v5232, %v5414
        %v5494 = vadd.f32 %v5233, %v5414
        %v5495 = vadd.f32 %v5234, %v5414
        %v5496 = vadd.f32 %v5235, %v5414
        %v5497 = vadd.f32 %v5236, %v5414
        %v5498 = vadd.f32 %v5237, %v5414
        %v5499 = vadd.f32 %v5238, %v5414
        %v5500 = vadd.f32 %v5239, %v5414
        %v5501 = vadd.f32 %v5240, %v5414
        %v5502 = vadd.f32 %v5241, %v5414
        %v5503 = vadd.f32 %v5242, %v5414
        %v5504 = vadd.f32 %v5243, %v5414
        %v5505 = vadd.f32 %v5244, %v5414
        %v5506 = vadd.f32 %v5245, %v5414
        %v5507 = vadd.f32 %v5246, %v5414
        %v5508 = vadd.f32 %v5247, %v5414
        %v5509 = vadd.f32 %v5248, %v5414
        %v5510 = vadd.f32 %v5249, %v5414
        %v5511 = vadd.f32 %v5250, %v5414
        %v5512 = vadd.f32 %v5251, %v5414
        %v5513 = vadd.f32 %v5252, %v5414
        %v5514 = vadd.f32 %v5253, %v5414
        %v5515 = vadd.f32 %v5254, %v5414
        %v5516 = vadd.f32 %v5255, %v5414
        %v5517 = vadd.f32 %v5256, %v5414
        %v5518 = vadd.f32 %v5257, %v5414
        %v5519 = vadd.f32 %v5258, %v5414
        %v5520 = vadd.f32 %v5259, %v5414
        %v5521 = vadd.f32 %v5260, %v5414
        %v5522 = vadd.f32 %v5261, %v5414
        %v5523 = vadd.f32 %v5262, %v5414
        %v5524 = vadd.f32 %v5263, %v5414
        %v5525 = vadd.f32 %v5264, %v5414
        %v5526 = vadd.f32 %v5265, %v5414
        %v5527 = vadd.f32 %v5266, %v5414
        %v5528 = vadd.f32 %v5267, %v5414
        %v5529 = vadd.f32 %v5268, %v5414
        %v5530 = vadd.f32 %v5269, %v5414
        %v5531 = vadd.f32 %v5270, %v5414
        %v5532 = vadd.f32 %v5271, %v5414
        %v5533 = vadd.f32 %v5272, %v5414
        %v5534 = vadd.f32 %v5273, %v5414
        %v5535 = vadd.f32 %v5274, %v5414
        %v5536 = vadd.f32 %v5275, %v5414
        %v5537 = vadd.f32 %v5276, %v5414
        %v5538 = vadd.f32 %v5277, %v5414
        %v5539 = vadd.f32 %v5278, %v5414
        %v5540 = vadd.f32 %v5279, %v5414
        %v5541 = vadd.f32 %v5280, %v5414
        %v5542 = vadd.f32 %v5281, %v5414
        %v5543 = vadd.f32 %v5282, %v5414
        %v5544 = vadd.f32 %v5283, %v5414
        %v5545 = vadd.f32 %v5284, %v5414
        %v5546 = vadd.f32 %v5285, %v5414
        %v5547 = vadd.f32 %v5286, %v5414
        %v5548 = vadd.f32 %v5287, %v5414
        %v5549 = vadd.f32 %v5288, %v5414
        %v5550 = vadd.f32 %v5289, %v5414
        %v5551 = vadd.f32 %v5290, %v5414
        %v5552 = vadd.f32 %v5291, %v5414
        %v5553 = vadd.f32 %v5292, %v5414
        %v5554 = vadd.f32 %v5293, %v5414
        %v5555 = vadd.f32 %v5294, %v5414
        %v5556 = vadd.f32 %v5295, %v5414
        %v5557 = vadd.f32 %v5296, %v5414
        %v5558 = vadd.f32 %v5297, %v5414
        %v5559 = vadd.f32 %v5298, %v5414
        %v5560 = vadd.f32 %v5299, %v5414
        %v5561 = vadd.f32 %v5300, %v5414
        %v5562 = vadd.f32 %v5301, %v5414
        %v5563 = vadd.f32 %v5302, %v5414
        %v5564 = vadd.f32 %v5303, %v5414
        %v5565 = vadd.f32 %v5304, %v5414
        %v5566 = vadd.f32 %v5305, %v5414
        %v5567 = vadd.f32 %v5306, %v5414
        %v5568 = vadd.f32 %v5307, %v5414
        %v5569 = vadd.f32 %v5308, %v5414
        %v5570 = vadd.f32 %v5309, %v5414
        %v5571 = vadd.f32 %v5310, %v5414
        %v5572 = vadd.f32 %v5311, %v5414
        %v5573 = vadd.f32 %v5312, %v5414
        %v5574 = vadd.f32 %v5313, %v5414
        %v5575 = vadd.f32 %v5314, %v5414
        %v5576 = vadd.f32 %v5315, %v5414
        %v5577 = vadd.f32 %v5316, %v5414
        %v5578 = vadd.f32 %v5317, %v5414
        %v5579 = vadd.f32 %v5318, %v5414
        %v5580 = vadd.f32 %v5319, %v5414
        %v5581 = vadd.f32 %v5320, %v5414
        %v5582 = vadd.f32 %v5321, %v5414
        %v5583 = vadd.f32 %v5322, %v5414
        %v5584 = vadd.f32 %v5323, %v5414
        %v5585 = vadd.f32 %v5324, %v5414
        %v5586 = vadd.f32 %v5325, %v5414
        %v5587 = vadd.f32 %v5326, %v5414
        %v5588 = vadd.f32 %v5327, %v5414
        %v5589 = vadd.f32 %v5328, %v5414
        %v5590 = vadd.f32 %v5329, %v5414
        %v5591 = vadd.f32 %v5330, %v5414
        %v5592 = vadd.f32 %v5331, %v5414
        %v5593 = vadd.f32 %v5332, %v5414
        %v5594 = vadd.f32 %v5333, %v5414
        %v5595 = vadd.f32 %v5334, %v5414
        %v5596 = vadd.f32 %v5335, %v5414
        %v5597 = vadd.f32 %v5336, %v5414
        %v5598 = vadd.f32 %v5337, %v5414
        %v5599 = vadd.f32 %v5338, %v5414
        %v5600 = vadd.f32 %v5339, %v5414
        %v5601 = vadd.f32 %v5340, %v5414
        %v5602 = vadd.f32 %v5341, %v5414
        %v5603 = vadd.f32 %v5342, %v5414
        %v5604 = vadd.f32 %v5343, %v5414
        %v5605 = vadd.f32 %v5344, %v5414
        %v5606 = vadd.f32 %v5345, %v5414
        %v5607 = vadd.f32 %v5346, %v5414
        %v5608 = vadd.f32 %v5347, %v5414
        %v5609 = vadd.f32 %v5348, %v5414
        %v5610 = vadd.f32 %v5349, %v5414
        %v5611 = vadd.f32 %v5350, %v5414
        %v5612 = vadd.f32 %v5351, %v5414
        %v5613 = vadd.f32 %v5352, %v5414
        %v5614 = vadd.f32 %v5353, %v5414
        %v5615 = vadd.f32 %v5354, %v5414
        %v5616 = vadd.f32 %v5355, %v5414
        %v5617 = vadd.f32 %v5356, %v5414
        %v5618 = vadd.f32 %v5357, %v5414
        %v5619 = vadd.f32 %v5358, %v5414
        %v5620 = vadd.f32 %v5359, %v5414
        %v5621 = vadd.f32 %v5360, %v5414
        %v5622 = vadd.f32 %v5361, %v5414
        %v5623 = vadd.f32 %v5362, %v5414
        %v5624 = vadd.f32 %v5363, %v5414
        %v5625 = vadd.f32 %v5364, %v5414
        %v5626 = vadd.f32 %v5365, %v5414
        %v5627 = vadd.f32 %v5366, %v5414
        %v5628 = vadd.f32 %v5367, %v5414
        %v5629 = vadd.f32 %v5368, %v5414
        %v5630 = vadd.f32 %v5369, %v5414
        %v5631 = vadd.f32 %v5370, %v5414
        %v5632 = vadd.f32 %v5371, %v5414
        %v5633 = vadd.f32 %v5372, %v5414
        %v5634 = vadd.f32 %v5373, %v5414
        %v5635 = vadd.f32 %v5374, %v5414
        %v5636 = vadd.f32 %v5375, %v5414
        %v5637 = vadd.f32 %v5376, %v5414
        %v5638 = vadd.f32 %v5377, %v5414
        %v5639 = vadd.f32 %v5378, %v5414
        %v5640 = vadd.f32 %v5379, %v5414
        %v5641 = vadd.f32 %v5380, %v5414
        %v5642 = vadd.f32 %v5381, %v5414
        %v5643 = vadd.f32 %v5382, %v5414
        %v5644 = vadd.f32 %v5383, %v5414
        %v5645 = vadd.f32 %v5384, %v5414
        %v5646 = vadd.f32 %v5385, %v5414
        %v5647 = vadd.f32 %v5386, %v5414
        %v5648 = vadd.f32 %v5387, %v5414
        %v5649 = vadd.f32 %v5388, %v5414
        %v5650 = vadd.f32 %v5389, %v5414
        %v5651 = vadd.f32 %v5390, %v5414
        %v5652 = vadd.f32 %v5391, %v5414
        %v5653 = vadd.f32 %v5392, %v5414
        %v5654 = vadd.f32 %v5393, %v5414
        %v5655 = vadd.f32 %v5394, %v5414
        %v5656 = vadd.f32 %v5395, %v5414
        %v5657 = vadd.f32 %v5396, %v5414
        %v5658 = vadd.f32 %v5397, %v5414
        %v5659 = vadd.f32 %v5398, %v5414
        %v5660 = vadd.f32 %v5399, %v5414
        %v5661 = vadd.f32 %v5400, %v5414
        %v5662 = vadd.f32 %v5401, %v5414
        %v5663 = vadd.f32 %v5402, %v5414
        %v5664 = vadd.f32 %v5403, %v5414
        %v5665 = vadd.f32 %v5404, %v5414
        %v5666 = vadd.f32 %v5405, %v5414
        %v5667 = vadd.f32 %v5406, %v5414
        %v5668 = vadd.f32 %v5407, %v5414
        %v5669 = vadd.f32 %v5408, %v5414
        %v5670 = vadd.f32 %v5409, %v5414
        %v5671 = vpack.c.bf16 %v5416, %v5415
        %v5672 = vpack.c.bf16 %v5418, %v5417
        %v5673 = vpack.c.bf16 %v5420, %v5419
        %v5674 = vpack.c.bf16 %v5422, %v5421
        %v5675 = vpack.c.bf16 %v5424, %v5423
        %v5676 = vpack.c.bf16 %v5426, %v5425
        %v5677 = vpack.c.bf16 %v5428, %v5427
        %v5678 = vpack.c.bf16 %v5430, %v5429
        %v5679 = vpack.c.bf16 %v5432, %v5431
        %v5680 = vpack.c.bf16 %v5434, %v5433
        %v5681 = vpack.c.bf16 %v5436, %v5435
        %v5682 = vpack.c.bf16 %v5438, %v5437
        %v5683 = vpack.c.bf16 %v5440, %v5439
        %v5684 = vpack.c.bf16 %v5442, %v5441
        %v5685 = vpack.c.bf16 %v5444, %v5443
        %v5686 = vpack.c.bf16 %v5446, %v5445
        %v5687 = vpack.c.bf16 %v5448, %v5447
        %v5688 = vpack.c.bf16 %v5450, %v5449
        %v5689 = vpack.c.bf16 %v5452, %v5451
        %v5690 = vpack.c.bf16 %v5454, %v5453
        %v5691 = vpack.c.bf16 %v5456, %v5455
        %v5692 = vpack.c.bf16 %v5458, %v5457
        %v5693 = vpack.c.bf16 %v5460, %v5459
        %v5694 = vpack.c.bf16 %v5462, %v5461
        %v5695 = vpack.c.bf16 %v5464, %v5463
        %v5696 = vpack.c.bf16 %v5466, %v5465
        %v5697 = vpack.c.bf16 %v5468, %v5467
        %v5698 = vpack.c.bf16 %v5470, %v5469
        %v5699 = vpack.c.bf16 %v5472, %v5471
        %v5700 = vpack.c.bf16 %v5474, %v5473
        %v5701 = vpack.c.bf16 %v5476, %v5475
        %v5702 = vpack.c.bf16 %v5478, %v5477
        %v5703 = vpack.c.bf16 %v5480, %v5479
        %v5704 = vpack.c.bf16 %v5482, %v5481
        %v5705 = vpack.c.bf16 %v5484, %v5483
        %v5706 = vpack.c.bf16 %v5486, %v5485
        %v5707 = vpack.c.bf16 %v5488, %v5487
        %v5708 = vpack.c.bf16 %v5490, %v5489
        %v5709 = vpack.c.bf16 %v5492, %v5491
        %v5710 = vpack.c.bf16 %v5494, %v5493
        %v5711 = vpack.c.bf16 %v5496, %v5495
        %v5712 = vpack.c.bf16 %v5498, %v5497
        %v5713 = vpack.c.bf16 %v5500, %v5499
        %v5714 = vpack.c.bf16 %v5502, %v5501
        %v5715 = vpack.c.bf16 %v5504, %v5503
        %v5716 = vpack.c.bf16 %v5506, %v5505
        %v5717 = vpack.c.bf16 %v5508, %v5507
        %v5718 = vpack.c.bf16 %v5510, %v5509
        %v5719 = vpack.c.bf16 %v5512, %v5511
        %v5720 = vpack.c.bf16 %v5514, %v5513
        %v5721 = vpack.c.bf16 %v5516, %v5515
        %v5722 = vpack.c.bf16 %v5518, %v5517
        %v5723 = vpack.c.bf16 %v5520, %v5519
        %v5724 = vpack.c.bf16 %v5522, %v5521
        %v5725 = vpack.c.bf16 %v5524, %v5523
        %v5726 = vpack.c.bf16 %v5526, %v5525
        %v5727 = vpack.c.bf16 %v5528, %v5527
        %v5728 = vpack.c.bf16 %v5530, %v5529
        %v5729 = vpack.c.bf16 %v5532, %v5531
        %v5730 = vpack.c.bf16 %v5534, %v5533
        %v5731 = vpack.c.bf16 %v5536, %v5535
        %v5732 = vpack.c.bf16 %v5538, %v5537
        %v5733 = vpack.c.bf16 %v5540, %v5539
        %v5734 = vpack.c.bf16 %v5542, %v5541
        %v5735 = vpack.c.bf16 %v5544, %v5543
        %v5736 = vpack.c.bf16 %v5546, %v5545
        %v5737 = vpack.c.bf16 %v5548, %v5547
        %v5738 = vpack.c.bf16 %v5550, %v5549
        %v5739 = vpack.c.bf16 %v5552, %v5551
        %v5740 = vpack.c.bf16 %v5554, %v5553
        %v5741 = vpack.c.bf16 %v5556, %v5555
        %v5742 = vpack.c.bf16 %v5558, %v5557
        %v5743 = vpack.c.bf16 %v5560, %v5559
        %v5744 = vpack.c.bf16 %v5562, %v5561
        %v5745 = vpack.c.bf16 %v5564, %v5563
        %v5746 = vpack.c.bf16 %v5566, %v5565
        %v5747 = vpack.c.bf16 %v5568, %v5567
        %v5748 = vpack.c.bf16 %v5570, %v5569
        %v5749 = vpack.c.bf16 %v5572, %v5571
        %v5750 = vpack.c.bf16 %v5574, %v5573
        %v5751 = vpack.c.bf16 %v5576, %v5575
        %v5752 = vpack.c.bf16 %v5578, %v5577
        %v5753 = vpack.c.bf16 %v5580, %v5579
        %v5754 = vpack.c.bf16 %v5582, %v5581
        %v5755 = vpack.c.bf16 %v5584, %v5583
        %v5756 = vpack.c.bf16 %v5586, %v5585
        %v5757 = vpack.c.bf16 %v5588, %v5587
        %v5758 = vpack.c.bf16 %v5590, %v5589
        %v5759 = vpack.c.bf16 %v5592, %v5591
        %v5760 = vpack.c.bf16 %v5594, %v5593
        %v5761 = vpack.c.bf16 %v5596, %v5595
        %v5762 = vpack.c.bf16 %v5598, %v5597
        %v5763 = vpack.c.bf16 %v5600, %v5599
        %v5764 = vpack.c.bf16 %v5602, %v5601
        %v5765 = vpack.c.bf16 %v5604, %v5603
        %v5766 = vpack.c.bf16 %v5606, %v5605
        %v5767 = vpack.c.bf16 %v5608, %v5607
        %v5768 = vpack.c.bf16 %v5610, %v5609
        %v5769 = vpack.c.bf16 %v5612, %v5611
        %v5770 = vpack.c.bf16 %v5614, %v5613
        %v5771 = vpack.c.bf16 %v5616, %v5615
        %v5772 = vpack.c.bf16 %v5618, %v5617
        %v5773 = vpack.c.bf16 %v5620, %v5619
        %v5774 = vpack.c.bf16 %v5622, %v5621
        %v5775 = vpack.c.bf16 %v5624, %v5623
        %v5776 = vpack.c.bf16 %v5626, %v5625
        %v5777 = vpack.c.bf16 %v5628, %v5627
        %v5778 = vpack.c.bf16 %v5630, %v5629
        %v5779 = vpack.c.bf16 %v5632, %v5631
        %v5780 = vpack.c.bf16 %v5634, %v5633
        %v5781 = vpack.c.bf16 %v5636, %v5635
        %v5782 = vpack.c.bf16 %v5638, %v5637
        %v5783 = vpack.c.bf16 %v5640, %v5639
        %v5784 = vpack.c.bf16 %v5642, %v5641
        %v5785 = vpack.c.bf16 %v5644, %v5643
        %v5786 = vpack.c.bf16 %v5646, %v5645
        %v5787 = vpack.c.bf16 %v5648, %v5647
        %v5788 = vpack.c.bf16 %v5650, %v5649
        %v5789 = vpack.c.bf16 %v5652, %v5651
        %v5790 = vpack.c.bf16 %v5654, %v5653
        %v5791 = vpack.c.bf16 %v5656, %v5655
        %v5792 = vpack.c.bf16 %v5658, %v5657
        %v5793 = vpack.c.bf16 %v5660, %v5659
        %v5794 = vpack.c.bf16 %v5662, %v5661
        %v5795 = vpack.c.bf16 %v5664, %v5663
        %v5796 = vpack.c.bf16 %v5666, %v5665
        %v5797 = vpack.c.bf16 %v5668, %v5667
        %v5798 = vpack.c.bf16 %v5670, %v5669
        %v5927 = vunpack.c.l.b16 %v5671
        %v5928 = vunpack.c.h.b16 %v5671
        %v5929 = vunpack.c.l.b16 %v5672
        %v5930 = vunpack.c.h.b16 %v5672
        %v5931 = vunpack.c.l.b16 %v5673
        %v5932 = vunpack.c.h.b16 %v5673
        %v5933 = vunpack.c.l.b16 %v5674
        %v5934 = vunpack.c.h.b16 %v5674
        %v5935 = vunpack.c.l.b16 %v5675
        %v5936 = vunpack.c.h.b16 %v5675
        %v5937 = vunpack.c.l.b16 %v5676
        %v5938 = vunpack.c.h.b16 %v5676
        %v5939 = vunpack.c.l.b16 %v5677
        %v5940 = vunpack.c.h.b16 %v5677
        %v5941 = vunpack.c.l.b16 %v5678
        %v5942 = vunpack.c.h.b16 %v5678
        %v5943 = vunpack.c.l.b16 %v5679
        %v5944 = vunpack.c.h.b16 %v5679
        %v5945 = vunpack.c.l.b16 %v5680
        %v5946 = vunpack.c.h.b16 %v5680
        %v5947 = vunpack.c.l.b16 %v5681
        %v5948 = vunpack.c.h.b16 %v5681
        %v5949 = vunpack.c.l.b16 %v5682
        %v5950 = vunpack.c.h.b16 %v5682
        %v5951 = vunpack.c.l.b16 %v5683
        %v5952 = vunpack.c.h.b16 %v5683
        %v5953 = vunpack.c.l.b16 %v5684
        %v5954 = vunpack.c.h.b16 %v5684
        %v5955 = vunpack.c.l.b16 %v5685
        %v5956 = vunpack.c.h.b16 %v5685
        %v5957 = vunpack.c.l.b16 %v5686
        %v5958 = vunpack.c.h.b16 %v5686
        %v5959 = vunpack.c.l.b16 %v5687
        %v5960 = vunpack.c.h.b16 %v5687
        %v5961 = vunpack.c.l.b16 %v5688
        %v5962 = vunpack.c.h.b16 %v5688
        %v5963 = vunpack.c.l.b16 %v5689
        %v5964 = vunpack.c.h.b16 %v5689
        %v5965 = vunpack.c.l.b16 %v5690
        %v5966 = vunpack.c.h.b16 %v5690
        %v5967 = vunpack.c.l.b16 %v5691
        %v5968 = vunpack.c.h.b16 %v5691
        %v5969 = vunpack.c.l.b16 %v5692
        %v5970 = vunpack.c.h.b16 %v5692
        %v5971 = vunpack.c.l.b16 %v5693
        %v5972 = vunpack.c.h.b16 %v5693
        %v5973 = vunpack.c.l.b16 %v5694
        %v5974 = vunpack.c.h.b16 %v5694
        %v5975 = vunpack.c.l.b16 %v5695
        %v5976 = vunpack.c.h.b16 %v5695
        %v5977 = vunpack.c.l.b16 %v5696
        %v5978 = vunpack.c.h.b16 %v5696
        %v5979 = vunpack.c.l.b16 %v5697
        %v5980 = vunpack.c.h.b16 %v5697
        %v5981 = vunpack.c.l.b16 %v5698
        %v5982 = vunpack.c.h.b16 %v5698
        %v5983 = vunpack.c.l.b16 %v5699
        %v5984 = vunpack.c.h.b16 %v5699
        %v5985 = vunpack.c.l.b16 %v5700
        %v5986 = vunpack.c.h.b16 %v5700
        %v5987 = vunpack.c.l.b16 %v5701
        %v5988 = vunpack.c.h.b16 %v5701
        %v5989 = vunpack.c.l.b16 %v5702
        %v5990 = vunpack.c.h.b16 %v5702
        %v5991 = vunpack.c.l.b16 %v5703
        %v5992 = vunpack.c.h.b16 %v5703
        %v5993 = vunpack.c.l.b16 %v5704
        %v5994 = vunpack.c.h.b16 %v5704
        %v5995 = vunpack.c.l.b16 %v5705
        %v5996 = vunpack.c.h.b16 %v5705
        %v5997 = vunpack.c.l.b16 %v5706
        %v5998 = vunpack.c.h.b16 %v5706
        %v5999 = vunpack.c.l.b16 %v5707
        %v6000 = vunpack.c.h.b16 %v5707
        %v6001 = vunpack.c.l.b16 %v5708
        %v6002 = vunpack.c.h.b16 %v5708
        %v6003 = vunpack.c.l.b16 %v5709
        %v6004 = vunpack.c.h.b16 %v5709
        %v6005 = vunpack.c.l.b16 %v5710
        %v6006 = vunpack.c.h.b16 %v5710
        %v6007 = vunpack.c.l.b16 %v5711
        %v6008 = vunpack.c.h.b16 %v5711
        %v6009 = vunpack.c.l.b16 %v5712
        %v6010 = vunpack.c.h.b16 %v5712
        %v6011 = vunpack.c.l.b16 %v5713
        %v6012 = vunpack.c.h.b16 %v5713
        %v6013 = vunpack.c.l.b16 %v5714
        %v6014 = vunpack.c.h.b16 %v5714
        %v6015 = vunpack.c.l.b16 %v5715
        %v6016 = vunpack.c.h.b16 %v5715
        %v6017 = vunpack.c.l.b16 %v5716
        %v6018 = vunpack.c.h.b16 %v5716
        %v6019 = vunpack.c.l.b16 %v5717
        %v6020 = vunpack.c.h.b16 %v5717
        %v6021 = vunpack.c.l.b16 %v5718
        %v6022 = vunpack.c.h.b16 %v5718
        %v6023 = vunpack.c.l.b16 %v5719
        %v6024 = vunpack.c.h.b16 %v5719
        %v6025 = vunpack.c.l.b16 %v5720
        %v6026 = vunpack.c.h.b16 %v5720
        %v6027 = vunpack.c.l.b16 %v5721
        %v6028 = vunpack.c.h.b16 %v5721
        %v6029 = vunpack.c.l.b16 %v5722
        %v6030 = vunpack.c.h.b16 %v5722
        %v6031 = vunpack.c.l.b16 %v5723
        %v6032 = vunpack.c.h.b16 %v5723
        %v6033 = vunpack.c.l.b16 %v5724
        %v6034 = vunpack.c.h.b16 %v5724
        %v6035 = vunpack.c.l.b16 %v5725
        %v6036 = vunpack.c.h.b16 %v5725
        %v6037 = vunpack.c.l.b16 %v5726
        %v6038 = vunpack.c.h.b16 %v5726
        %v6039 = vunpack.c.l.b16 %v5727
        %v6040 = vunpack.c.h.b16 %v5727
        %v6041 = vunpack.c.l.b16 %v5728
        %v6042 = vunpack.c.h.b16 %v5728
        %v6043 = vunpack.c.l.b16 %v5729
        %v6044 = vunpack.c.h.b16 %v5729
        %v6045 = vunpack.c.l.b16 %v5730
        %v6046 = vunpack.c.h.b16 %v5730
        %v6047 = vunpack.c.l.b16 %v5731
        %v6048 = vunpack.c.h.b16 %v5731
        %v6049 = vunpack.c.l.b16 %v5732
        %v6050 = vunpack.c.h.b16 %v5732
        %v6051 = vunpack.c.l.b16 %v5733
        %v6052 = vunpack.c.h.b16 %v5733
        %v6053 = vunpack.c.l.b16 %v5734
        %v6054 = vunpack.c.h.b16 %v5734
        %v6055 = vunpack.c.l.b16 %v5735
        %v6056 = vunpack.c.h.b16 %v5735
        %v6057 = vunpack.c.l.b16 %v5736
        %v6058 = vunpack.c.h.b16 %v5736
        %v6059 = vunpack.c.l.b16 %v5737
        %v6060 = vunpack.c.h.b16 %v5737
        %v6061 = vunpack.c.l.b16 %v5738
        %v6062 = vunpack.c.h.b16 %v5738
        %v6063 = vunpack.c.l.b16 %v5739
        %v6064 = vunpack.c.h.b16 %v5739
        %v6065 = vunpack.c.l.b16 %v5740
        %v6066 = vunpack.c.h.b16 %v5740
        %v6067 = vunpack.c.l.b16 %v5741
        %v6068 = vunpack.c.h.b16 %v5741
        %v6069 = vunpack.c.l.b16 %v5742
        %v6070 = vunpack.c.h.b16 %v5742
        %v6071 = vunpack.c.l.b16 %v5743
        %v6072 = vunpack.c.h.b16 %v5743
        %v6073 = vunpack.c.l.b16 %v5744
        %v6074 = vunpack.c.h.b16 %v5744
        %v6075 = vunpack.c.l.b16 %v5745
        %v6076 = vunpack.c.h.b16 %v5745
        %v6077 = vunpack.c.l.b16 %v5746
        %v6078 = vunpack.c.h.b16 %v5746
        %v6079 = vunpack.c.l.b16 %v5747
        %v6080 = vunpack.c.h.b16 %v5747
        %v6081 = vunpack.c.l.b16 %v5748
        %v6082 = vunpack.c.h.b16 %v5748
        %v6083 = vunpack.c.l.b16 %v5749
        %v6084 = vunpack.c.h.b16 %v5749
        %v6085 = vunpack.c.l.b16 %v5750
        %v6086 = vunpack.c.h.b16 %v5750
        %v6087 = vunpack.c.l.b16 %v5751
        %v6088 = vunpack.c.h.b16 %v5751
        %v6089 = vunpack.c.l.b16 %v5752
        %v6090 = vunpack.c.h.b16 %v5752
        %v6091 = vunpack.c.l.b16 %v5753
        %v6092 = vunpack.c.h.b16 %v5753
        %v6093 = vunpack.c.l.b16 %v5754
        %v6094 = vunpack.c.h.b16 %v5754
        %v6095 = vunpack.c.l.b16 %v5755
        %v6096 = vunpack.c.h.b16 %v5755
        %v6097 = vunpack.c.l.b16 %v5756
        %v6098 = vunpack.c.h.b16 %v5756
        %v6099 = vunpack.c.l.b16 %v5757
        %v6100 = vunpack.c.h.b16 %v5757
        %v6101 = vunpack.c.l.b16 %v5758
        %v6102 = vunpack.c.h.b16 %v5758
        %v6103 = vunpack.c.l.b16 %v5759
        %v6104 = vunpack.c.h.b16 %v5759
        %v6105 = vunpack.c.l.b16 %v5760
        %v6106 = vunpack.c.h.b16 %v5760
        %v6107 = vunpack.c.l.b16 %v5761
        %v6108 = vunpack.c.h.b16 %v5761
        %v6109 = vunpack.c.l.b16 %v5762
        %v6110 = vunpack.c.h.b16 %v5762
        %v6111 = vunpack.c.l.b16 %v5763
        %v6112 = vunpack.c.h.b16 %v5763
        %v6113 = vunpack.c.l.b16 %v5764
        %v6114 = vunpack.c.h.b16 %v5764
        %v6115 = vunpack.c.l.b16 %v5765
        %v6116 = vunpack.c.h.b16 %v5765
        %v6117 = vunpack.c.l.b16 %v5766
        %v6118 = vunpack.c.h.b16 %v5766
        %v6119 = vunpack.c.l.b16 %v5767
        %v6120 = vunpack.c.h.b16 %v5767
        %v6121 = vunpack.c.l.b16 %v5768
        %v6122 = vunpack.c.h.b16 %v5768
        %v6123 = vunpack.c.l.b16 %v5769
        %v6124 = vunpack.c.h.b16 %v5769
        %v6125 = vunpack.c.l.b16 %v5770
        %v6126 = vunpack.c.h.b16 %v5770
        %v6127 = vunpack.c.l.b16 %v5771
        %v6128 = vunpack.c.h.b16 %v5771
        %v6129 = vunpack.c.l.b16 %v5772
        %v6130 = vunpack.c.h.b16 %v5772
        %v6131 = vunpack.c.l.b16 %v5773
        %v6132 = vunpack.c.h.b16 %v5773
        %v6133 = vunpack.c.l.b16 %v5774
        %v6134 = vunpack.c.h.b16 %v5774
        %v6135 = vunpack.c.l.b16 %v5775
        %v6136 = vunpack.c.h.b16 %v5775
        %v6137 = vunpack.c.l.b16 %v5776
        %v6138 = vunpack.c.h.b16 %v5776
        %v6139 = vunpack.c.l.b16 %v5777
        %v6140 = vunpack.c.h.b16 %v5777
        %v6141 = vunpack.c.l.b16 %v5778
        %v6142 = vunpack.c.h.b16 %v5778
        %v6143 = vunpack.c.l.b16 %v5779
        %v6144 = vunpack.c.h.b16 %v5779
        %v6145 = vunpack.c.l.b16 %v5780
        %v6146 = vunpack.c.h.b16 %v5780
        %v6147 = vunpack.c.l.b16 %v5781
        %v6148 = vunpack.c.h.b16 %v5781
        %v6149 = vunpack.c.l.b16 %v5782
        %v6150 = vunpack.c.h.b16 %v5782
        %v6151 = vunpack.c.l.b16 %v5783
        %v6152 = vunpack.c.h.b16 %v5783
        %v6153 = vunpack.c.l.b16 %v5784
        %v6154 = vunpack.c.h.b16 %v5784
        %v6155 = vunpack.c.l.b16 %v5785
        %v6156 = vunpack.c.h.b16 %v5785
        %v6157 = vunpack.c.l.b16 %v5786
        %v6158 = vunpack.c.h.b16 %v5786
        %v6159 = vunpack.c.l.b16 %v5787
        %v6160 = vunpack.c.h.b16 %v5787
        %v6161 = vunpack.c.l.b16 %v5788
        %v6162 = vunpack.c.h.b16 %v5788
        %v6163 = vunpack.c.l.b16 %v5789
        %v6164 = vunpack.c.h.b16 %v5789
        %v6165 = vunpack.c.l.b16 %v5790
        %v6166 = vunpack.c.h.b16 %v5790
        %v6167 = vunpack.c.l.b16 %v5791
        %v6168 = vunpack.c.h.b16 %v5791
        %v6169 = vunpack.c.l.b16 %v5792
        %v6170 = vunpack.c.h.b16 %v5792
        %v6171 = vunpack.c.l.b16 %v5793
        %v6172 = vunpack.c.h.b16 %v5793
        %v6173 = vunpack.c.l.b16 %v5794
        %v6174 = vunpack.c.h.b16 %v5794
        %v6175 = vunpack.c.l.b16 %v5795
        %v6176 = vunpack.c.h.b16 %v5795
        %v6177 = vunpack.c.l.b16 %v5796
        %v6178 = vunpack.c.h.b16 %v5796
        %v6179 = vunpack.c.l.b16 %v5797
        %v6180 = vunpack.c.h.b16 %v5797
        %v6181 = vunpack.c.l.b16 %v5798
        %v6182 = vunpack.c.h.b16 %v5798
        %v6183 = vpack.c.b16 %v5927, %v5927
        %v6184 = vpack.c.b16 %v5928, %v5928
        %v6185 = vpack.c.b16 %v5929, %v5929
        %v6186 = vpack.c.b16 %v5930, %v5930
        %v6187 = vpack.c.b16 %v5931, %v5931
        %v6188 = vpack.c.b16 %v5932, %v5932
        %v6189 = vpack.c.b16 %v5933, %v5933
        %v6190 = vpack.c.b16 %v5934, %v5934
        %v6191 = vpack.c.b16 %v5935, %v5935
        %v6192 = vpack.c.b16 %v5936, %v5936
        %v6193 = vpack.c.b16 %v5937, %v5937
        %v6194 = vpack.c.b16 %v5938, %v5938
        %v6195 = vpack.c.b16 %v5939, %v5939
        %v6196 = vpack.c.b16 %v5940, %v5940
        %v6197 = vpack.c.b16 %v5941, %v5941
        %v6198 = vpack.c.b16 %v5942, %v5942
        %v6199 = vpack.c.b16 %v5943, %v5943
        %v6200 = vpack.c.b16 %v5944, %v5944
        %v6201 = vpack.c.b16 %v5945, %v5945
        %v6202 = vpack.c.b16 %v5946, %v5946
        %v6203 = vpack.c.b16 %v5947, %v5947
        %v6204 = vpack.c.b16 %v5948, %v5948
        %v6205 = vpack.c.b16 %v5949, %v5949
        %v6206 = vpack.c.b16 %v5950, %v5950
        %v6207 = vpack.c.b16 %v5951, %v5951
        %v6208 = vpack.c.b16 %v5952, %v5952
        %v6209 = vpack.c.b16 %v5953, %v5953
        %v6210 = vpack.c.b16 %v5954, %v5954
        %v6211 = vpack.c.b16 %v5955, %v5955
        %v6212 = vpack.c.b16 %v5956, %v5956
        %v6213 = vpack.c.b16 %v5957, %v5957
        %v6214 = vpack.c.b16 %v5958, %v5958
        %v6215 = vpack.c.b16 %v5959, %v5959
        %v6216 = vpack.c.b16 %v5960, %v5960
        %v6217 = vpack.c.b16 %v5961, %v5961
        %v6218 = vpack.c.b16 %v5962, %v5962
        %v6219 = vpack.c.b16 %v5963, %v5963
        %v6220 = vpack.c.b16 %v5964, %v5964
        %v6221 = vpack.c.b16 %v5965, %v5965
        %v6222 = vpack.c.b16 %v5966, %v5966
        %v6223 = vpack.c.b16 %v5967, %v5967
        %v6224 = vpack.c.b16 %v5968, %v5968
        %v6225 = vpack.c.b16 %v5969, %v5969
        %v6226 = vpack.c.b16 %v5970, %v5970
        %v6227 = vpack.c.b16 %v5971, %v5971
        %v6228 = vpack.c.b16 %v5972, %v5972
        %v6229 = vpack.c.b16 %v5973, %v5973
        %v6230 = vpack.c.b16 %v5974, %v5974
        %v6231 = vpack.c.b16 %v5975, %v5975
        %v6232 = vpack.c.b16 %v5976, %v5976
        %v6233 = vpack.c.b16 %v5977, %v5977
        %v6234 = vpack.c.b16 %v5978, %v5978
        %v6235 = vpack.c.b16 %v5979, %v5979
        %v6236 = vpack.c.b16 %v5980, %v5980
        %v6237 = vpack.c.b16 %v5981, %v5981
        %v6238 = vpack.c.b16 %v5982, %v5982
        %v6239 = vpack.c.b16 %v5983, %v5983
        %v6240 = vpack.c.b16 %v5984, %v5984
        %v6241 = vpack.c.b16 %v5985, %v5985
        %v6242 = vpack.c.b16 %v5986, %v5986
        %v6243 = vpack.c.b16 %v5987, %v5987
        %v6244 = vpack.c.b16 %v5988, %v5988
        %v6245 = vpack.c.b16 %v5989, %v5989
        %v6246 = vpack.c.b16 %v5990, %v5990
        %v6247 = vpack.c.b16 %v5991, %v5991
        %v6248 = vpack.c.b16 %v5992, %v5992
        %v6249 = vpack.c.b16 %v5993, %v5993
        %v6250 = vpack.c.b16 %v5994, %v5994
        %v6251 = vpack.c.b16 %v5995, %v5995
        %v6252 = vpack.c.b16 %v5996, %v5996
        %v6253 = vpack.c.b16 %v5997, %v5997
        %v6254 = vpack.c.b16 %v5998, %v5998
        %v6255 = vpack.c.b16 %v5999, %v5999
        %v6256 = vpack.c.b16 %v6000, %v6000
        %v6257 = vpack.c.b16 %v6001, %v6001
        %v6258 = vpack.c.b16 %v6002, %v6002
        %v6259 = vpack.c.b16 %v6003, %v6003
        %v6260 = vpack.c.b16 %v6004, %v6004
        %v6261 = vpack.c.b16 %v6005, %v6005
        %v6262 = vpack.c.b16 %v6006, %v6006
        %v6263 = vpack.c.b16 %v6007, %v6007
        %v6264 = vpack.c.b16 %v6008, %v6008
        %v6265 = vpack.c.b16 %v6009, %v6009
        %v6266 = vpack.c.b16 %v6010, %v6010
        %v6267 = vpack.c.b16 %v6011, %v6011
        %v6268 = vpack.c.b16 %v6012, %v6012
        %v6269 = vpack.c.b16 %v6013, %v6013
        %v6270 = vpack.c.b16 %v6014, %v6014
        %v6271 = vpack.c.b16 %v6015, %v6015
        %v6272 = vpack.c.b16 %v6016, %v6016
        %v6273 = vpack.c.b16 %v6017, %v6017
        %v6274 = vpack.c.b16 %v6018, %v6018
        %v6275 = vpack.c.b16 %v6019, %v6019
        %v6276 = vpack.c.b16 %v6020, %v6020
        %v6277 = vpack.c.b16 %v6021, %v6021
        %v6278 = vpack.c.b16 %v6022, %v6022
        %v6279 = vpack.c.b16 %v6023, %v6023
        %v6280 = vpack.c.b16 %v6024, %v6024
        %v6281 = vpack.c.b16 %v6025, %v6025
        %v6282 = vpack.c.b16 %v6026, %v6026
        %v6283 = vpack.c.b16 %v6027, %v6027
        %v6284 = vpack.c.b16 %v6028, %v6028
        %v6285 = vpack.c.b16 %v6029, %v6029
        %v6286 = vpack.c.b16 %v6030, %v6030
        %v6287 = vpack.c.b16 %v6031, %v6031
        %v6288 = vpack.c.b16 %v6032, %v6032
        %v6289 = vpack.c.b16 %v6033, %v6033
        %v6290 = vpack.c.b16 %v6034, %v6034
        %v6291 = vpack.c.b16 %v6035, %v6035
        %v6292 = vpack.c.b16 %v6036, %v6036
        %v6293 = vpack.c.b16 %v6037, %v6037
        %v6294 = vpack.c.b16 %v6038, %v6038
        %v6295 = vpack.c.b16 %v6039, %v6039
        %v6296 = vpack.c.b16 %v6040, %v6040
        %v6297 = vpack.c.b16 %v6041, %v6041
        %v6298 = vpack.c.b16 %v6042, %v6042
        %v6299 = vpack.c.b16 %v6043, %v6043
        %v6300 = vpack.c.b16 %v6044, %v6044
        %v6301 = vpack.c.b16 %v6045, %v6045
        %v6302 = vpack.c.b16 %v6046, %v6046
        %v6303 = vpack.c.b16 %v6047, %v6047
        %v6304 = vpack.c.b16 %v6048, %v6048
        %v6305 = vpack.c.b16 %v6049, %v6049
        %v6306 = vpack.c.b16 %v6050, %v6050
        %v6307 = vpack.c.b16 %v6051, %v6051
        %v6308 = vpack.c.b16 %v6052, %v6052
        %v6309 = vpack.c.b16 %v6053, %v6053
        %v6310 = vpack.c.b16 %v6054, %v6054
        %v6311 = vpack.c.b16 %v6055, %v6055
        %v6312 = vpack.c.b16 %v6056, %v6056
        %v6313 = vpack.c.b16 %v6057, %v6057
        %v6314 = vpack.c.b16 %v6058, %v6058
        %v6315 = vpack.c.b16 %v6059, %v6059
        %v6316 = vpack.c.b16 %v6060, %v6060
        %v6317 = vpack.c.b16 %v6061, %v6061
        %v6318 = vpack.c.b16 %v6062, %v6062
        %v6319 = vpack.c.b16 %v6063, %v6063
        %v6320 = vpack.c.b16 %v6064, %v6064
        %v6321 = vpack.c.b16 %v6065, %v6065
        %v6322 = vpack.c.b16 %v6066, %v6066
        %v6323 = vpack.c.b16 %v6067, %v6067
        %v6324 = vpack.c.b16 %v6068, %v6068
        %v6325 = vpack.c.b16 %v6069, %v6069
        %v6326 = vpack.c.b16 %v6070, %v6070
        %v6327 = vpack.c.b16 %v6071, %v6071
        %v6328 = vpack.c.b16 %v6072, %v6072
        %v6329 = vpack.c.b16 %v6073, %v6073
        %v6330 = vpack.c.b16 %v6074, %v6074
        %v6331 = vpack.c.b16 %v6075, %v6075
        %v6332 = vpack.c.b16 %v6076, %v6076
        %v6333 = vpack.c.b16 %v6077, %v6077
        %v6334 = vpack.c.b16 %v6078, %v6078
        %v6335 = vpack.c.b16 %v6079, %v6079
        %v6336 = vpack.c.b16 %v6080, %v6080
        %v6337 = vpack.c.b16 %v6081, %v6081
        %v6338 = vpack.c.b16 %v6082, %v6082
        %v6339 = vpack.c.b16 %v6083, %v6083
        %v6340 = vpack.c.b16 %v6084, %v6084
        %v6341 = vpack.c.b16 %v6085, %v6085
        %v6342 = vpack.c.b16 %v6086, %v6086
        %v6343 = vpack.c.b16 %v6087, %v6087
        %v6344 = vpack.c.b16 %v6088, %v6088
        %v6345 = vpack.c.b16 %v6089, %v6089
        %v6346 = vpack.c.b16 %v6090, %v6090
        %v6347 = vpack.c.b16 %v6091, %v6091
        %v6348 = vpack.c.b16 %v6092, %v6092
        %v6349 = vpack.c.b16 %v6093, %v6093
        %v6350 = vpack.c.b16 %v6094, %v6094
        %v6351 = vpack.c.b16 %v6095, %v6095
        %v6352 = vpack.c.b16 %v6096, %v6096
        %v6353 = vpack.c.b16 %v6097, %v6097
        %v6354 = vpack.c.b16 %v6098, %v6098
        %v6355 = vpack.c.b16 %v6099, %v6099
        %v6356 = vpack.c.b16 %v6100, %v6100
        %v6357 = vpack.c.b16 %v6101, %v6101
        %v6358 = vpack.c.b16 %v6102, %v6102
        %v6359 = vpack.c.b16 %v6103, %v6103
        %v6360 = vpack.c.b16 %v6104, %v6104
        %v6361 = vpack.c.b16 %v6105, %v6105
        %v6362 = vpack.c.b16 %v6106, %v6106
        %v6363 = vpack.c.b16 %v6107, %v6107
        %v6364 = vpack.c.b16 %v6108, %v6108
        %v6365 = vpack.c.b16 %v6109, %v6109
        %v6366 = vpack.c.b16 %v6110, %v6110
        %v6367 = vpack.c.b16 %v6111, %v6111
        %v6368 = vpack.c.b16 %v6112, %v6112
        %v6369 = vpack.c.b16 %v6113, %v6113
        %v6370 = vpack.c.b16 %v6114, %v6114
        %v6371 = vpack.c.b16 %v6115, %v6115
        %v6372 = vpack.c.b16 %v6116, %v6116
        %v6373 = vpack.c.b16 %v6117, %v6117
        %v6374 = vpack.c.b16 %v6118, %v6118
        %v6375 = vpack.c.b16 %v6119, %v6119
        %v6376 = vpack.c.b16 %v6120, %v6120
        %v6377 = vpack.c.b16 %v6121, %v6121
        %v6378 = vpack.c.b16 %v6122, %v6122
        %v6379 = vpack.c.b16 %v6123, %v6123
        %v6380 = vpack.c.b16 %v6124, %v6124
        %v6381 = vpack.c.b16 %v6125, %v6125
        %v6382 = vpack.c.b16 %v6126, %v6126
        %v6383 = vpack.c.b16 %v6127, %v6127
        %v6384 = vpack.c.b16 %v6128, %v6128
        %v6385 = vpack.c.b16 %v6129, %v6129
        %v6386 = vpack.c.b16 %v6130, %v6130
        %v6387 = vpack.c.b16 %v6131, %v6131
        %v6388 = vpack.c.b16 %v6132, %v6132
        %v6389 = vpack.c.b16 %v6133, %v6133
        %v6390 = vpack.c.b16 %v6134, %v6134
        %v6391 = vpack.c.b16 %v6135, %v6135
        %v6392 = vpack.c.b16 %v6136, %v6136
        %v6393 = vpack.c.b16 %v6137, %v6137
        %v6394 = vpack.c.b16 %v6138, %v6138
        %v6395 = vpack.c.b16 %v6139, %v6139
        %v6396 = vpack.c.b16 %v6140, %v6140
        %v6397 = vpack.c.b16 %v6141, %v6141
        %v6398 = vpack.c.b16 %v6142, %v6142
        %v6399 = vpack.c.b16 %v6143, %v6143
        %v6400 = vpack.c.b16 %v6144, %v6144
        %v6401 = vpack.c.b16 %v6145, %v6145
        %v6402 = vpack.c.b16 %v6146, %v6146
        %v6403 = vpack.c.b16 %v6147, %v6147
        %v6404 = vpack.c.b16 %v6148, %v6148
        %v6405 = vpack.c.b16 %v6149, %v6149
        %v6406 = vpack.c.b16 %v6150, %v6150
        %v6407 = vpack.c.b16 %v6151, %v6151
        %v6408 = vpack.c.b16 %v6152, %v6152
        %v6409 = vpack.c.b16 %v6153, %v6153
        %v6410 = vpack.c.b16 %v6154, %v6154
        %v6411 = vpack.c.b16 %v6155, %v6155
        %v6412 = vpack.c.b16 %v6156, %v6156
        %v6413 = vpack.c.b16 %v6157, %v6157
        %v6414 = vpack.c.b16 %v6158, %v6158
        %v6415 = vpack.c.b16 %v6159, %v6159
        %v6416 = vpack.c.b16 %v6160, %v6160
        %v6417 = vpack.c.b16 %v6161, %v6161
        %v6418 = vpack.c.b16 %v6162, %v6162
        %v6419 = vpack.c.b16 %v6163, %v6163
        %v6420 = vpack.c.b16 %v6164, %v6164
        %v6421 = vpack.c.b16 %v6165, %v6165
        %v6422 = vpack.c.b16 %v6166, %v6166
        %v6423 = vpack.c.b16 %v6167, %v6167
        %v6424 = vpack.c.b16 %v6168, %v6168
        %v6425 = vpack.c.b16 %v6169, %v6169
        %v6426 = vpack.c.b16 %v6170, %v6170
        %v6427 = vpack.c.b16 %v6171, %v6171
        %v6428 = vpack.c.b16 %v6172, %v6172
        %v6429 = vpack.c.b16 %v6173, %v6173
        %v6430 = vpack.c.b16 %v6174, %v6174
        %v6431 = vpack.c.b16 %v6175, %v6175
        %v6432 = vpack.c.b16 %v6176, %v6176
        %v6433 = vpack.c.b16 %v6177, %v6177
        %v6434 = vpack.c.b16 %v6178, %v6178
        %v6435 = vpack.c.b16 %v6179, %v6179
        %v6436 = vpack.c.b16 %v6180, %v6180
        %v6437 = vpack.c.b16 %v6181, %v6181
        %v6438 = vpack.c.b16 %v6182, %v6182
        %6695 = vst [vmem:[%s190] sm:$0xf] %v6183
        %6696 = vst [vmem:[%s190 + $0x4] sm:$0xf] %v6184
        %6697 = vst [vmem:[%s190 + $0x8] sm:$0xf] %v6185
        %6698 = vst [vmem:[%s190 + $0xc] sm:$0xf] %v6186
        %6699 = vst [vmem:[%s190 + $0x10] sm:$0xf] %v6187
        %6700 = vst [vmem:[%s190 + $0x14] sm:$0xf] %v6188
        %6701 = vst [vmem:[%s190 + $0x18] sm:$0xf] %v6189
        %6702 = vst [vmem:[%s190 + $0x1c] sm:$0xf] %v6190
        %6703 = vst [vmem:[%s190 + $0x20] sm:$0xf] %v6191
        %6704 = vst [vmem:[%s190 + $0x24] sm:$0xf] %v6192
        %6705 = vst [vmem:[%s190 + $0x28] sm:$0xf] %v6193
        %6706 = vst [vmem:[%s190 + $0x2c] sm:$0xf] %v6194
        %6707 = vst [vmem:[%s190 + $0x30] sm:$0xf] %v6195
        %6708 = vst [vmem:[%s190 + $0x34] sm:$0xf] %v6196
        %6709 = vst [vmem:[%s190 + $0x38] sm:$0xf] %v6197
        %6710 = vst [vmem:[%s190 + $0x3c] sm:$0xf] %v6198
        %6711 = vst [vmem:[%s190 + $0x40] sm:$0xf] %v6199
        %6712 = vst [vmem:[%s190 + $0x44] sm:$0xf] %v6200
        %6713 = vst [vmem:[%s190 + $0x48] sm:$0xf] %v6201
        %6714 = vst [vmem:[%s190 + $0x4c] sm:$0xf] %v6202
        %6715 = vst [vmem:[%s190 + $0x50] sm:$0xf] %v6203
        %6716 = vst [vmem:[%s190 + $0x54] sm:$0xf] %v6204
        %6717 = vst [vmem:[%s190 + $0x58] sm:$0xf] %v6205
        %6718 = vst [vmem:[%s190 + $0x5c] sm:$0xf] %v6206
        %6719 = vst [vmem:[%s190 + $0x60] sm:$0xf] %v6207
        %6720 = vst [vmem:[%s190 + $0x64] sm:$0xf] %v6208
        %6721 = vst [vmem:[%s190 + $0x68] sm:$0xf] %v6209
        %6722 = vst [vmem:[%s190 + $0x6c] sm:$0xf] %v6210
        %6723 = vst [vmem:[%s190 + $0x70] sm:$0xf] %v6211
        %6724 = vst [vmem:[%s190 + $0x74] sm:$0xf] %v6212
        %6725 = vst [vmem:[%s190 + $0x78] sm:$0xf] %v6213
        %6726 = vst [vmem:[%s190 + $0x7c] sm:$0xf] %v6214
        %6727 = vst [vmem:[%s190 + $0x80] sm:$0xf] %v6215
        %6728 = vst [vmem:[%s190 + $0x84] sm:$0xf] %v6216
        %6729 = vst [vmem:[%s190 + $0x88] sm:$0xf] %v6217
        %6730 = vst [vmem:[%s190 + $0x8c] sm:$0xf] %v6218
        %6731 = vst [vmem:[%s190 + $0x90] sm:$0xf] %v6219
        %6732 = vst [vmem:[%s190 + $0x94] sm:$0xf] %v6220
        %6733 = vst [vmem:[%s190 + $0x98] sm:$0xf] %v6221
        %6734 = vst [vmem:[%s190 + $0x9c] sm:$0xf] %v6222
        %6735 = vst [vmem:[%s190 + $0xa0] sm:$0xf] %v6223
        %6736 = vst [vmem:[%s190 + $0xa4] sm:$0xf] %v6224
        %6737 = vst [vmem:[%s190 + $0xa8] sm:$0xf] %v6225
        %6738 = vst [vmem:[%s190 + $0xac] sm:$0xf] %v6226
        %6739 = vst [vmem:[%s190 + $0xb0] sm:$0xf] %v6227
        %6740 = vst [vmem:[%s190 + $0xb4] sm:$0xf] %v6228
        %6741 = vst [vmem:[%s190 + $0xb8] sm:$0xf] %v6229
        %6742 = vst [vmem:[%s190 + $0xbc] sm:$0xf] %v6230
        %6743 = vst [vmem:[%s190 + $0xc0] sm:$0xf] %v6231
        %6744 = vst [vmem:[%s190 + $0xc4] sm:$0xf] %v6232
        %6745 = vst [vmem:[%s190 + $0xc8] sm:$0xf] %v6233
        %6746 = vst [vmem:[%s190 + $0xcc] sm:$0xf] %v6234
        %6747 = vst [vmem:[%s190 + $0xd0] sm:$0xf] %v6235
        %6748 = vst [vmem:[%s190 + $0xd4] sm:$0xf] %v6236
        %6749 = vst [vmem:[%s190 + $0xd8] sm:$0xf] %v6237
        %6750 = vst [vmem:[%s190 + $0xdc] sm:$0xf] %v6238
        %6751 = vst [vmem:[%s190 + $0xe0] sm:$0xf] %v6239
        %6752 = vst [vmem:[%s190 + $0xe4] sm:$0xf] %v6240
        %6753 = vst [vmem:[%s190 + $0xe8] sm:$0xf] %v6241
        %6754 = vst [vmem:[%s190 + $0xec] sm:$0xf] %v6242
        %6755 = vst [vmem:[%s190 + $0xf0] sm:$0xf] %v6243
        %6756 = vst [vmem:[%s190 + $0xf4] sm:$0xf] %v6244
        %6757 = vst [vmem:[%s190 + $0xf8] sm:$0xf] %v6245
        %6758 = vst [vmem:[%s190 + $0xfc] sm:$0xf] %v6246
        %6759 = vst [vmem:[%s190 + $0x100] sm:$0xf] %v6247
        %6760 = vst [vmem:[%s190 + $0x104] sm:$0xf] %v6248
        %6761 = vst [vmem:[%s190 + $0x108] sm:$0xf] %v6249
        %6762 = vst [vmem:[%s190 + $0x10c] sm:$0xf] %v6250
        %6763 = vst [vmem:[%s190 + $0x110] sm:$0xf] %v6251
        %6764 = vst [vmem:[%s190 + $0x114] sm:$0xf] %v6252
        %6765 = vst [vmem:[%s190 + $0x118] sm:$0xf] %v6253
        %6766 = vst [vmem:[%s190 + $0x11c] sm:$0xf] %v6254
        %6767 = vst [vmem:[%s190 + $0x120] sm:$0xf] %v6255
        %6768 = vst [vmem:[%s190 + $0x124] sm:$0xf] %v6256
        %6769 = vst [vmem:[%s190 + $0x128] sm:$0xf] %v6257
        %6770 = vst [vmem:[%s190 + $0x12c] sm:$0xf] %v6258
        %6771 = vst [vmem:[%s190 + $0x130] sm:$0xf] %v6259
        %6772 = vst [vmem:[%s190 + $0x134] sm:$0xf] %v6260
        %6773 = vst [vmem:[%s190 + $0x138] sm:$0xf] %v6261
        %6774 = vst [vmem:[%s190 + $0x13c] sm:$0xf] %v6262
        %6775 = vst [vmem:[%s190 + $0x140] sm:$0xf] %v6263
        %6776 = vst [vmem:[%s190 + $0x144] sm:$0xf] %v6264
        %6777 = vst [vmem:[%s190 + $0x148] sm:$0xf] %v6265
        %6778 = vst [vmem:[%s190 + $0x14c] sm:$0xf] %v6266
        %6779 = vst [vmem:[%s190 + $0x150] sm:$0xf] %v6267
        %6780 = vst [vmem:[%s190 + $0x154] sm:$0xf] %v6268
        %6781 = vst [vmem:[%s190 + $0x158] sm:$0xf] %v6269
        %6782 = vst [vmem:[%s190 + $0x15c] sm:$0xf] %v6270
        %6783 = vst [vmem:[%s190 + $0x160] sm:$0xf] %v6271
        %6784 = vst [vmem:[%s190 + $0x164] sm:$0xf] %v6272
        %6785 = vst [vmem:[%s190 + $0x168] sm:$0xf] %v6273
        %6786 = vst [vmem:[%s190 + $0x16c] sm:$0xf] %v6274
        %6787 = vst [vmem:[%s190 + $0x170] sm:$0xf] %v6275
        %6788 = vst [vmem:[%s190 + $0x174] sm:$0xf] %v6276
        %6789 = vst [vmem:[%s190 + $0x178] sm:$0xf] %v6277
        %6790 = vst [vmem:[%s190 + $0x17c] sm:$0xf] %v6278
        %6791 = vst [vmem:[%s190 + $0x180] sm:$0xf] %v6279
        %6792 = vst [vmem:[%s190 + $0x184] sm:$0xf] %v6280
        %6793 = vst [vmem:[%s190 + $0x188] sm:$0xf] %v6281
        %6794 = vst [vmem:[%s190 + $0x18c] sm:$0xf] %v6282
        %6795 = vst [vmem:[%s190 + $0x190] sm:$0xf] %v6283
        %6796 = vst [vmem:[%s190 + $0x194] sm:$0xf] %v6284
        %6797 = vst [vmem:[%s190 + $0x198] sm:$0xf] %v6285
        %6798 = vst [vmem:[%s190 + $0x19c] sm:$0xf] %v6286
        %6799 = vst [vmem:[%s190 + $0x1a0] sm:$0xf] %v6287
        %6800 = vst [vmem:[%s190 + $0x1a4] sm:$0xf] %v6288
        %6801 = vst [vmem:[%s190 + $0x1a8] sm:$0xf] %v6289
        %6802 = vst [vmem:[%s190 + $0x1ac] sm:$0xf] %v6290
        %6803 = vst [vmem:[%s190 + $0x1b0] sm:$0xf] %v6291
        %6804 = vst [vmem:[%s190 + $0x1b4] sm:$0xf] %v6292
        %6805 = vst [vmem:[%s190 + $0x1b8] sm:$0xf] %v6293
        %6806 = vst [vmem:[%s190 + $0x1bc] sm:$0xf] %v6294
        %6807 = vst [vmem:[%s190 + $0x1c0] sm:$0xf] %v6295
        %6808 = vst [vmem:[%s190 + $0x1c4] sm:$0xf] %v6296
        %6809 = vst [vmem:[%s190 + $0x1c8] sm:$0xf] %v6297
        %6810 = vst [vmem:[%s190 + $0x1cc] sm:$0xf] %v6298
        %6811 = vst [vmem:[%s190 + $0x1d0] sm:$0xf] %v6299
        %6812 = vst [vmem:[%s190 + $0x1d4] sm:$0xf] %v6300
        %6813 = vst [vmem:[%s190 + $0x1d8] sm:$0xf] %v6301
        %6814 = vst [vmem:[%s190 + $0x1dc] sm:$0xf] %v6302
        %6815 = vst [vmem:[%s190 + $0x1e0] sm:$0xf] %v6303
        %6816 = vst [vmem:[%s190 + $0x1e4] sm:$0xf] %v6304
        %6817 = vst [vmem:[%s190 + $0x1e8] sm:$0xf] %v6305
        %6818 = vst [vmem:[%s190 + $0x1ec] sm:$0xf] %v6306
        %6819 = vst [vmem:[%s190 + $0x1f0] sm:$0xf] %v6307
        %6820 = vst [vmem:[%s190 + $0x1f4] sm:$0xf] %v6308
        %6821 = vst [vmem:[%s190 + $0x1f8] sm:$0xf] %v6309
        %6822 = vst [vmem:[%s190 + $0x1fc] sm:$0xf] %v6310
        %6823 = vst [vmem:[%s190 + $0x200] sm:$0xf] %v6311
        %6824 = vst [vmem:[%s190 + $0x204] sm:$0xf] %v6312
        %6825 = vst [vmem:[%s190 + $0x208] sm:$0xf] %v6313
        %6826 = vst [vmem:[%s190 + $0x20c] sm:$0xf] %v6314
        %6827 = vst [vmem:[%s190 + $0x210] sm:$0xf] %v6315
        %6828 = vst [vmem:[%s190 + $0x214] sm:$0xf] %v6316
        %6829 = vst [vmem:[%s190 + $0x218] sm:$0xf] %v6317
        %6830 = vst [vmem:[%s190 + $0x21c] sm:$0xf] %v6318
        %6831 = vst [vmem:[%s190 + $0x220] sm:$0xf] %v6319
        %6832 = vst [vmem:[%s190 + $0x224] sm:$0xf] %v6320
        %6833 = vst [vmem:[%s190 + $0x228] sm:$0xf] %v6321
        %6834 = vst [vmem:[%s190 + $0x22c] sm:$0xf] %v6322
        %6835 = vst [vmem:[%s190 + $0x230] sm:$0xf] %v6323
        %6836 = vst [vmem:[%s190 + $0x234] sm:$0xf] %v6324
        %6837 = vst [vmem:[%s190 + $0x238] sm:$0xf] %v6325
        %6838 = vst [vmem:[%s190 + $0x23c] sm:$0xf] %v6326
        %6839 = vst [vmem:[%s190 + $0x240] sm:$0xf] %v6327
        %6840 = vst [vmem:[%s190 + $0x244] sm:$0xf] %v6328
        %6841 = vst [vmem:[%s190 + $0x248] sm:$0xf] %v6329
        %6842 = vst [vmem:[%s190 + $0x24c] sm:$0xf] %v6330
        %6843 = vst [vmem:[%s190 + $0x250] sm:$0xf] %v6331
        %6844 = vst [vmem:[%s190 + $0x254] sm:$0xf] %v6332
        %6845 = vst [vmem:[%s190 + $0x258] sm:$0xf] %v6333
        %6846 = vst [vmem:[%s190 + $0x25c] sm:$0xf] %v6334
        %6847 = vst [vmem:[%s190 + $0x260] sm:$0xf] %v6335
        %6848 = vst [vmem:[%s190 + $0x264] sm:$0xf] %v6336
        %6849 = vst [vmem:[%s190 + $0x268] sm:$0xf] %v6337
        %6850 = vst [vmem:[%s190 + $0x26c] sm:$0xf] %v6338
        %6851 = vst [vmem:[%s190 + $0x270] sm:$0xf] %v6339
        %6852 = vst [vmem:[%s190 + $0x274] sm:$0xf] %v6340
        %6853 = vst [vmem:[%s190 + $0x278] sm:$0xf] %v6341
        %6854 = vst [vmem:[%s190 + $0x27c] sm:$0xf] %v6342
        %6855 = vst [vmem:[%s190 + $0x280] sm:$0xf] %v6343
        %6856 = vst [vmem:[%s190 + $0x284] sm:$0xf] %v6344
        %6857 = vst [vmem:[%s190 + $0x288] sm:$0xf] %v6345
        %6858 = vst [vmem:[%s190 + $0x28c] sm:$0xf] %v6346
        %6859 = vst [vmem:[%s190 + $0x290] sm:$0xf] %v6347
        %6860 = vst [vmem:[%s190 + $0x294] sm:$0xf] %v6348
        %6861 = vst [vmem:[%s190 + $0x298] sm:$0xf] %v6349
        %6862 = vst [vmem:[%s190 + $0x29c] sm:$0xf] %v6350
        %6863 = vst [vmem:[%s190 + $0x2a0] sm:$0xf] %v6351
        %6864 = vst [vmem:[%s190 + $0x2a4] sm:$0xf] %v6352
        %6865 = vst [vmem:[%s190 + $0x2a8] sm:$0xf] %v6353
        %6866 = vst [vmem:[%s190 + $0x2ac] sm:$0xf] %v6354
        %6867 = vst [vmem:[%s190 + $0x2b0] sm:$0xf] %v6355
        %6868 = vst [vmem:[%s190 + $0x2b4] sm:$0xf] %v6356
        %6869 = vst [vmem:[%s190 + $0x2b8] sm:$0xf] %v6357
        %6870 = vst [vmem:[%s190 + $0x2bc] sm:$0xf] %v6358
        %6871 = vst [vmem:[%s190 + $0x2c0] sm:$0xf] %v6359
        %6872 = vst [vmem:[%s190 + $0x2c4] sm:$0xf] %v6360
        %6873 = vst [vmem:[%s190 + $0x2c8] sm:$0xf] %v6361
        %6874 = vst [vmem:[%s190 + $0x2cc] sm:$0xf] %v6362
        %6875 = vst [vmem:[%s190 + $0x2d0] sm:$0xf] %v6363
        %6876 = vst [vmem:[%s190 + $0x2d4] sm:$0xf] %v6364
        %6877 = vst [vmem:[%s190 + $0x2d8] sm:$0xf] %v6365
        %6878 = vst [vmem:[%s190 + $0x2dc] sm:$0xf] %v6366
        %6879 = vst [vmem:[%s190 + $0x2e0] sm:$0xf] %v6367
        %6880 = vst [vmem:[%s190 + $0x2e4] sm:$0xf] %v6368
        %6881 = vst [vmem:[%s190 + $0x2e8] sm:$0xf] %v6369
        %6882 = vst [vmem:[%s190 + $0x2ec] sm:$0xf] %v6370
        %6883 = vst [vmem:[%s190 + $0x2f0] sm:$0xf] %v6371
        %6884 = vst [vmem:[%s190 + $0x2f4] sm:$0xf] %v6372
        %6885 = vst [vmem:[%s190 + $0x2f8] sm:$0xf] %v6373
        %6886 = vst [vmem:[%s190 + $0x2fc] sm:$0xf] %v6374
        %6887 = vst [vmem:[%s190 + $0x300] sm:$0xf] %v6375
        %6888 = vst [vmem:[%s190 + $0x304] sm:$0xf] %v6376
        %6889 = vst [vmem:[%s190 + $0x308] sm:$0xf] %v6377
        %6890 = vst [vmem:[%s190 + $0x30c] sm:$0xf] %v6378
        %6891 = vst [vmem:[%s190 + $0x310] sm:$0xf] %v6379
        %6892 = vst [vmem:[%s190 + $0x314] sm:$0xf] %v6380
        %6893 = vst [vmem:[%s190 + $0x318] sm:$0xf] %v6381
        %6894 = vst [vmem:[%s190 + $0x31c] sm:$0xf] %v6382
        %6895 = vst [vmem:[%s190 + $0x320] sm:$0xf] %v6383
        %6896 = vst [vmem:[%s190 + $0x324] sm:$0xf] %v6384
        %6897 = vst [vmem:[%s190 + $0x328] sm:$0xf] %v6385
        %6898 = vst [vmem:[%s190 + $0x32c] sm:$0xf] %v6386
        %6899 = vst [vmem:[%s190 + $0x330] sm:$0xf] %v6387
        %6900 = vst [vmem:[%s190 + $0x334] sm:$0xf] %v6388
        %6901 = vst [vmem:[%s190 + $0x338] sm:$0xf] %v6389
        %6902 = vst [vmem:[%s190 + $0x33c] sm:$0xf] %v6390
        %6903 = vst [vmem:[%s190 + $0x340] sm:$0xf] %v6391
        %6904 = vst [vmem:[%s190 + $0x344] sm:$0xf] %v6392
        %6905 = vst [vmem:[%s190 + $0x348] sm:$0xf] %v6393
        %6906 = vst [vmem:[%s190 + $0x34c] sm:$0xf] %v6394
        %6907 = vst [vmem:[%s190 + $0x350] sm:$0xf] %v6395
        %6908 = vst [vmem:[%s190 + $0x354] sm:$0xf] %v6396
        %6909 = vst [vmem:[%s190 + $0x358] sm:$0xf] %v6397
        %6910 = vst [vmem:[%s190 + $0x35c] sm:$0xf] %v6398
        %6911 = vst [vmem:[%s190 + $0x360] sm:$0xf] %v6399
        %6912 = vst [vmem:[%s190 + $0x364] sm:$0xf] %v6400
        %6913 = vst [vmem:[%s190 + $0x368] sm:$0xf] %v6401
        %6914 = vst [vmem:[%s190 + $0x36c] sm:$0xf] %v6402
        %6915 = vst [vmem:[%s190 + $0x370] sm:$0xf] %v6403
        %6916 = vst [vmem:[%s190 + $0x374] sm:$0xf] %v6404
        %6917 = vst [vmem:[%s190 + $0x378] sm:$0xf] %v6405
        %6918 = vst [vmem:[%s190 + $0x37c] sm:$0xf] %v6406
        %6919 = vst [vmem:[%s190 + $0x380] sm:$0xf] %v6407
        %6920 = vst [vmem:[%s190 + $0x384] sm:$0xf] %v6408
        %6921 = vst [vmem:[%s190 + $0x388] sm:$0xf] %v6409
        %6922 = vst [vmem:[%s190 + $0x38c] sm:$0xf] %v6410
        %6923 = vst [vmem:[%s190 + $0x390] sm:$0xf] %v6411
        %6924 = vst [vmem:[%s190 + $0x394] sm:$0xf] %v6412
        %6925 = vst [vmem:[%s190 + $0x398] sm:$0xf] %v6413
        %6926 = vst [vmem:[%s190 + $0x39c] sm:$0xf] %v6414
        %6927 = vst [vmem:[%s190 + $0x3a0] sm:$0xf] %v6415
        %6928 = vst [vmem:[%s190 + $0x3a4] sm:$0xf] %v6416
        %6929 = vst [vmem:[%s190 + $0x3a8] sm:$0xf] %v6417
        %6930 = vst [vmem:[%s190 + $0x3ac] sm:$0xf] %v6418
        %6931 = vst [vmem:[%s190 + $0x3b0] sm:$0xf] %v6419
        %6932 = vst [vmem:[%s190 + $0x3b4] sm:$0xf] %v6420
        %6933 = vst [vmem:[%s190 + $0x3b8] sm:$0xf] %v6421
        %6934 = vst [vmem:[%s190 + $0x3bc] sm:$0xf] %v6422
        %6935 = vst [vmem:[%s190 + $0x3c0] sm:$0xf] %v6423
        %6936 = vst [vmem:[%s190 + $0x3c4] sm:$0xf] %v6424
        %6937 = vst [vmem:[%s190 + $0x3c8] sm:$0xf] %v6425
        %6938 = vst [vmem:[%s190 + $0x3cc] sm:$0xf] %v6426
        %6939 = vst [vmem:[%s190 + $0x3d0] sm:$0xf] %v6427
        %6940 = vst [vmem:[%s190 + $0x3d4] sm:$0xf] %v6428
        %6941 = vst [vmem:[%s190 + $0x3d8] sm:$0xf] %v6429
        %6942 = vst [vmem:[%s190 + $0x3dc] sm:$0xf] %v6430
        %6943 = vst [vmem:[%s190 + $0x3e0] sm:$0xf] %v6431
        %6944 = vst [vmem:[%s190 + $0x3e4] sm:$0xf] %v6432
        %6945 = vst [vmem:[%s190 + $0x3e8] sm:$0xf] %v6433
        %6946 = vst [vmem:[%s190 + $0x3ec] sm:$0xf] %v6434
        %6947 = vst [vmem:[%s190 + $0x3f0] sm:$0xf] %v6435
        %6948 = vst [vmem:[%s190 + $0x3f4] sm:$0xf] %v6436
        %6949 = vst [vmem:[%s190 + $0x3f8] sm:$0xf] %v6437
        %6950 = vst [vmem:[%s190 + $0x3fc] sm:$0xf] %v6438
        %s6951 = sand.u32 %s109, 1
        %s6952 = scalar_lea.sflag [#allocation3], %s6951
        %s6953 = sand.u32 %s109, 1
        %s6954 = smul.addr %s6953, 1024
        %s6955 = scalar_lea.vmem [#allocation2], %s6954
        // Predicated region
        $region33: #{tpu_custom_call.1} parent=31 // pred_check
          %p6956 = pneg %p119
        $region34: #{tpu_custom_call.1} parent=31 // pred_check_branch
          %6958 = sbr.rel (%p6956) target = $region36
        $region35: #{tpu_custom_call.1} parent=31 // pred_region
          %s6959 = smul.u32 128, %s22
          %s6961 = ssub.s32 16384, 16384
          %6962 = vsyncadd %s6952, %s6961
          %s6963 = smul.addr %s6959, 2
          %s6964 = smul.addr %s21, 512
          %s6965 = sadd.s32 %s6963, %s6964
          %s6966 = smul.addr %s6965, 64
          %s6967 = scalar_lea.hbm %s3, %s6966
          %s6968 = sshll.u32 %s6955, 4
          %s6969 = int_to_ptr.vmem [resolvable:$true] %s6968
          %6974 = dma.vmem_to_hbm [thread:$0]  %s6969, 16384, %s6967, %s6952, 64, 64, 4
        $region36: #{tpu_custom_call.1} parent=31 // pred_fallthru
          _
      $region32: #{tpu_custom_call.1} parent=5 // pred_fallthru
        _
      %p6975 = scmp.le.s32.totalorder 2, %s12
      // Predicated region
      $region37: #{tpu_custom_call.1} parent=5 // pred_check
        %p6976 = pneg %p6975
      $region38: #{tpu_custom_call.1} parent=5 // pred_check_branch
        %6978 = sbr.rel (%p6976) target = $region40
      $region39: #{tpu_custom_call.1} parent=5 // pred_region
        %s6979 = ssub.s32 %s12, 2
        // Predicated region
        $region41: #{tpu_custom_call.1} parent=39 // pred_check
          %p6980 = pneg %p125
        $region42: #{tpu_custom_call.1} parent=39 // pred_check_branch
          %6982 = sbr.rel (%p6980) target = $region44
        $region43: #{tpu_custom_call.1} parent=39 // pred_region
          %s6983 = sand.u32 %s110, 1
          %s6984 = scalar_lea.sflag [#allocation3], %s6983
          %s6985 = sand.u32 %s110, 1
          %s6986 = smul.addr %s6985, 1024
          %s6987 = scalar_lea.vmem [#allocation2], %s6986
          %6988 = dma.done %s6984, 16384
        $region44: #{tpu_custom_call.1} parent=39 // pred_fallthru
          _
      $region40: #{tpu_custom_call.1} parent=5 // pred_fallthru
        _
    $region6: #{tpu_custom_call.1} parent=1 // loop_footer
      %s16 = sadd.s32 1, %s12
    $region7: #{tpu_custom_call.1} parent=1 // loop_footer_branch
      %11 = sbr.rel target = $region3
    $region8: #{tpu_custom_call.1} parent=1 // loop_exit
      _
    %6989 = vsyncpa [#allocation3], 1
    %s6990 = scalar_lea.sflag [#allocation3], 1
    %6991 = vsyncpa %s6990, 1

</llo_original>
